<compile_context>
chip_gen: v6e
topology: v6e:2x2x1
jax: 0.10.0
libtpu: 0.0.40
codegen_flags: <defaults>
</compile_context>

<pallas_src>
import numpy as np
import jax
import jax.numpy as jnp
from jax import lax
from jax.experimental import pallas as pl
from jax.experimental.pallas import tpu as pltpu


_VMEM = pl.BlockSpec(memory_space=pltpu.MemorySpace.VMEM)
_OUT_PAD = 128   # lane-dense head output width; sliced back to 3 in the wrapper


# ----------------------------- fused Pallas kernel ---------------------------

def make_fused_kernel(num_layers, seq, batch, H, in_dim):
    """Builds a kernel fusing all LSTM layers + max-over-batch + MLP head."""

    def kernel(*refs):
        x_ref = refs[0]
        nw = 3 * num_layers
        layer_refs = refs[1:1 + nw]
        w1_ref, b1_ref, w2_ref, b2_ref = refs[1 + nw:1 + nw + 4]
        y_ref = refs[1 + nw + 4]                 # (seq, _OUT_PAD) output
        act_scr = refs[1 + nw + 5]               # (seq, batch, H) scratch

        # Per-timestep inputs of layer 0, kept as traced values (stay in vregs).
        layer_in = [x_ref[t] for t in range(seq)]          # each (batch, in_dim)

        for layer in range(num_layers):
            wih = layer_refs[3 * layer][...]               # (d, 4H)
            whh = layer_refs[3 * layer + 1][...]           # (H, 4H)
            bias = layer_refs[3 * layer + 2][...]          # (1, 4H) = b_ih + b_hh

            # Hoisted input projection + bias: independent of the recurrence,
            # so these matmuls/adds overlap with the serial h-chain.
            gx = [jnp.dot(layer_in[t], wih, preferred_element_type=jnp.float32)
                  + bias
                  for t in range(seq)]                     # each (batch, 4H)

            h = jnp.zeros((batch, H), jnp.float32)
            c = jnp.zeros((batch, H), jnp.float32)
            outs = []
            # Fully unrolled time loop (seq is small & static).
            for t in range(seq):
                gates = gx[t] + jnp.dot(h, whh,
                                        preferred_element_type=jnp.float32)
                # Two full-vreg EUP ops instead of four narrow 32-lane ones.
                sig = jax.nn.sigmoid(gates)                # (batch, 4H)
                th = jnp.tanh(gates)                       # (batch, 4H)
                i = sig[:, 0 * H:1 * H]
                f = sig[:, 1 * H:2 * H]
                g = th[:, 2 * H:3 * H]
                o = sig[:, 3 * H:4 * H]
                c = f * c + i * g
                h = o * jnp.tanh(c)
                outs.append(h)
                if layer == num_layers - 1:
                    act_scr[t] = h                         # only last layer stored
            layer_in = outs

        # Head: max over the batch dim (dim=1, as in the PyTorch module) + MLP.
        m = jnp.max(act_scr[...], axis=1)                                  # (seq, H)
        hid = jnp.maximum(
            jnp.dot(m, w1_ref[...], preferred_element_type=jnp.float32)
            + b1_ref[...], 0.0)                                            # (seq, 32)
        y_ref[...] = (jnp.dot(hid, w2_ref[...],
                              preferred_element_type=jnp.float32)
                      + b2_ref[...])                                       # (seq, 128)

    return kernel


# --------------------------------- wrapper -----------------------------------

def rnn_model_forward(x, params):
    seq, batch, in_dim = x.shape
    lstm = params["lstm"]
    num_layers = len(lstm)
    H = lstm[0][1].shape[0]
    w1, b1, w2, b2 = params["fc"]
    n_out = w2.shape[1]

    # Lane-dense head output: pad final Linear to 128 output columns.
    w2p = jnp.pad(w2, ((0, 0), (0, _OUT_PAD - n_out)))
    b2p = jnp.pad(b2, ((0, 0), (0, _OUT_PAD - n_out)))

    flat_w = []
    for (w_ih, w_hh, b) in lstm:
        flat_w += [w_ih, w_hh, b]

    kernel = make_fused_kernel(num_layers, seq, batch, H, in_dim)
    n_in = 1 + 3 * num_layers + 4
    y_pad = pl.pallas_call(
        kernel,
        out_shape=jax.ShapeDtypeStruct((seq, _OUT_PAD), jnp.float32),
        in_specs=[_VMEM] * n_in,
        out_specs=_VMEM,
        scratch_shapes=[pltpu.VMEM((seq, batch, H), jnp.float32)],
    )(x, *flat_w, w1, b1, w2p, b2p)
    return y_pad[:, :n_out]


# ---------------------------- params / reference ------------------------------

def init_params(key, num_filters, num_layers, input_size=4):
    H = num_filters
    k = 1.0 / np.sqrt(H)
    keys = iter(jax.random.split(key, 3 * num_layers + 4))
    lstm = []
    in_dim = input_size
    for _ in range(num_layers):
        w_ih = jax.random.uniform(next(keys), (in_dim, 4 * H), jnp.float32, -k, k)
        w_hh = jax.random.uniform(next(keys), (H, 4 * H), jnp.float32, -k, k)
        b = jax.random.uniform(next(keys), (1, 4 * H), jnp.float32, -2 * k, 2 * k)
        lstm.append((w_ih, w_hh, b))
        in_dim = H
    w1 = jax.random.uniform(next(keys), (H, 32), jnp.float32, -k, k)
    b1 = jax.random.uniform(next(keys), (1, 32), jnp.float32, -k, k)
    k2 = 1.0 / np.sqrt(32)
    w2 = jax.random.uniform(next(keys), (32, 3), jnp.float32, -k2, k2)
    b2 = jax.random.uniform(next(keys), (1, 3), jnp.float32, -k2, k2)
    return {"lstm": lstm, "fc": (w1, b1, w2, b2)}


def reference_forward(x, params):
    """Pure-JAX reference matching the PyTorch module semantics."""
    out = x
    for (w_ih, w_hh, b) in params["lstm"]:
        _, batch, _ = out.shape
        H = w_hh.shape[0]

        def step(carry, xt, w_ih=w_ih, w_hh=w_hh, b=b, H=H):
            h, c = carry
            gates = xt @ w_ih + h @ w_hh + b
            i = jax.nn.sigmoid(gates[:, 0 * H:1 * H])
            f = jax.nn.sigmoid(gates[:, 1 * H:2 * H])
            g = jnp.tanh(gates[:, 2 * H:3 * H])
            o = jax.nn.sigmoid(gates[:, 3 * H:4 * H])
            c = f * c + i * g
            h = o * jnp.tanh(c)
            return (h, c), h

        init = (jnp.zeros((batch, H), jnp.float32),
                jnp.zeros((batch, H), jnp.float32))
        _, out = lax.scan(step, init, out)
    m = jnp.max(out, axis=1)                     # max over batch dim (dim=1)
    w1, b1, w2, b2 = params["fc"]
    h = jnp.maximum(m @ w1 + b1, 0.0)
    return h @ w2 + b2


# ----------------------------------- main -------------------------------------

if __name__ == "__main__":
    num_filters = 32
    num_layers = 2
    seq_len, batch, input_size = 8, 2, 4

    key = jax.random.PRNGKey(0)
    kx, kp = jax.random.split(key)
    x = jax.random.normal(kx, (seq_len, batch, input_size), jnp.float32)
    params = init_params(kp, num_filters, num_layers, input_size)

    fwd = jax.jit(rnn_model_forward)
    y = jax.block_until_ready(fwd(x, params))

    y_ref = jax.block_until_ready(reference_forward(x, params))
    np.testing.assert_allclose(np.asarray(y), np.asarray(y_ref),
                               rtol=1e-5, atol=1e-5)
    assert y.shape == (seq_len, 3)
    print("KERNEL_OK")
</pallas_src>

<mosaic_0001>
module attributes {stable_mosaic.version = 11 : i64} {
  func.func @kernel(%arg0: memref<8x2x4xf32, #tpu.memory_space<vmem>>, %arg1: memref<4x128xf32, #tpu.memory_space<vmem>>, %arg2: memref<32x128xf32, #tpu.memory_space<vmem>>, %arg3: memref<1x128xf32, #tpu.memory_space<vmem>>, %arg4: memref<32x128xf32, #tpu.memory_space<vmem>>, %arg5: memref<32x128xf32, #tpu.memory_space<vmem>>, %arg6: memref<1x128xf32, #tpu.memory_space<vmem>>, %arg7: memref<32x32xf32, #tpu.memory_space<vmem>>, %arg8: memref<1x32xf32, #tpu.memory_space<vmem>>, %arg9: memref<32x128xf32, #tpu.memory_space<vmem>>, %arg10: memref<1x128xf32, #tpu.memory_space<vmem>>, %arg11: memref<8x128xf32, #tpu.memory_space<vmem>>, %arg12: memref<8x2x32xf32, #tpu.memory_space<vmem>>) attributes {dimension_semantics = [], scalar_prefetch = 0 : i64, scratch_operands = 1 : i64, tpu.core_type = #tpu.core_type<tc>} {
    %c0 = arith.constant 0 : index
    %c0_0 = arith.constant 0 : index
    %c0_1 = arith.constant 0 : index
    %0 = vector.load %arg0[%c0, %c0_0, %c0_1] : memref<8x2x4xf32, #tpu.memory_space<vmem>>, vector<1x2x4xf32>
    %1 = vector.shape_cast %0 : vector<1x2x4xf32> to vector<2x4xf32>
    %c1 = arith.constant 1 : index
    %c0_2 = arith.constant 0 : index
    %c0_3 = arith.constant 0 : index
    %2 = vector.load %arg0[%c1, %c0_2, %c0_3] : memref<8x2x4xf32, #tpu.memory_space<vmem>>, vector<1x2x4xf32>
    %3 = vector.shape_cast %2 : vector<1x2x4xf32> to vector<2x4xf32>
    %c2 = arith.constant 2 : index
    %c0_4 = arith.constant 0 : index
    %c0_5 = arith.constant 0 : index
    %4 = vector.load %arg0[%c2, %c0_4, %c0_5] : memref<8x2x4xf32, #tpu.memory_space<vmem>>, vector<1x2x4xf32>
    %5 = vector.shape_cast %4 : vector<1x2x4xf32> to vector<2x4xf32>
    %c3 = arith.constant 3 : index
    %c0_6 = arith.constant 0 : index
    %c0_7 = arith.constant 0 : index
    %6 = vector.load %arg0[%c3, %c0_6, %c0_7] : memref<8x2x4xf32, #tpu.memory_space<vmem>>, vector<1x2x4xf32>
    %7 = vector.shape_cast %6 : vector<1x2x4xf32> to vector<2x4xf32>
    %c4 = arith.constant 4 : index
    %c0_8 = arith.constant 0 : index
    %c0_9 = arith.constant 0 : index
    %8 = vector.load %arg0[%c4, %c0_8, %c0_9] : memref<8x2x4xf32, #tpu.memory_space<vmem>>, vector<1x2x4xf32>
    %9 = vector.shape_cast %8 : vector<1x2x4xf32> to vector<2x4xf32>
    %c5 = arith.constant 5 : index
    %c0_10 = arith.constant 0 : index
    %c0_11 = arith.constant 0 : index
    %10 = vector.load %arg0[%c5, %c0_10, %c0_11] : memref<8x2x4xf32, #tpu.memory_space<vmem>>, vector<1x2x4xf32>
    %11 = vector.shape_cast %10 : vector<1x2x4xf32> to vector<2x4xf32>
    %c6 = arith.constant 6 : index
    %c0_12 = arith.constant 0 : index
    %c0_13 = arith.constant 0 : index
    %12 = vector.load %arg0[%c6, %c0_12, %c0_13] : memref<8x2x4xf32, #tpu.memory_space<vmem>>, vector<1x2x4xf32>
    %13 = vector.shape_cast %12 : vector<1x2x4xf32> to vector<2x4xf32>
    %c7 = arith.constant 7 : index
    %c0_14 = arith.constant 0 : index
    %c0_15 = arith.constant 0 : index
    %14 = vector.load %arg0[%c7, %c0_14, %c0_15] : memref<8x2x4xf32, #tpu.memory_space<vmem>>, vector<1x2x4xf32>
    %15 = vector.shape_cast %14 : vector<1x2x4xf32> to vector<2x4xf32>
    %c0_16 = arith.constant 0 : index
    %c0_17 = arith.constant 0 : index
    %16 = vector.load %arg1[%c0_16, %c0_17] : memref<4x128xf32, #tpu.memory_space<vmem>>, vector<4x128xf32>
    %c0_18 = arith.constant 0 : index
    %c0_19 = arith.constant 0 : index
    %17 = vector.load %arg2[%c0_18, %c0_19] : memref<32x128xf32, #tpu.memory_space<vmem>>, vector<32x128xf32>
    %c0_20 = arith.constant 0 : index
    %c0_21 = arith.constant 0 : index
    %18 = vector.load %arg3[%c0_20, %c0_21] : memref<1x128xf32, #tpu.memory_space<vmem>>, vector<1x128xf32>
    %cst = arith.constant dense<0.000000e+00> : vector<2x128xf32>
    %19 = tpu.matmul %1, %16, %cst {dimension_numbers = #tpu.dot_dimension_numbers<[1], [0], [0], [1], [0, 0, 1, 1], [], []>} : vector<2x4xf32>, vector<4x128xf32>, vector<2x128xf32> -> vector<2x128xf32>
    %20 = vector.broadcast %18 : vector<1x128xf32> to vector<2x128xf32>
    %21 = arith.addf %19, %20 : vector<2x128xf32>
    %cst_22 = arith.constant dense<0.000000e+00> : vector<2x128xf32>
    %22 = tpu.matmul %3, %16, %cst_22 {dimension_numbers = #tpu.dot_dimension_numbers<[1], [0], [0], [1], [0, 0, 1, 1], [], []>} : vector<2x4xf32>, vector<4x128xf32>, vector<2x128xf32> -> vector<2x128xf32>
    %23 = vector.broadcast %18 : vector<1x128xf32> to vector<2x128xf32>
    %24 = arith.addf %22, %23 : vector<2x128xf32>
    %cst_23 = arith.constant dense<0.000000e+00> : vector<2x128xf32>
    %25 = tpu.matmul %5, %16, %cst_23 {dimension_numbers = #tpu.dot_dimension_numbers<[1], [0], [0], [1], [0, 0, 1, 1], [], []>} : vector<2x4xf32>, vector<4x128xf32>, vector<2x128xf32> -> vector<2x128xf32>
    %26 = vector.broadcast %18 : vector<1x128xf32> to vector<2x128xf32>
    %27 = arith.addf %25, %26 : vector<2x128xf32>
    %cst_24 = arith.constant dense<0.000000e+00> : vector<2x128xf32>
    %28 = tpu.matmul %7, %16, %cst_24 {dimension_numbers = #tpu.dot_dimension_numbers<[1], [0], [0], [1], [0, 0, 1, 1], [], []>} : vector<2x4xf32>, vector<4x128xf32>, vector<2x128xf32> -> vector<2x128xf32>
    %29 = vector.broadcast %18 : vector<1x128xf32> to vector<2x128xf32>
    %30 = arith.addf %28, %29 : vector<2x128xf32>
    %cst_25 = arith.constant dense<0.000000e+00> : vector<2x128xf32>
    %31 = tpu.matmul %9, %16, %cst_25 {dimension_numbers = #tpu.dot_dimension_numbers<[1], [0], [0], [1], [0, 0, 1, 1], [], []>} : vector<2x4xf32>, vector<4x128xf32>, vector<2x128xf32> -> vector<2x128xf32>
    %32 = vector.broadcast %18 : vector<1x128xf32> to vector<2x128xf32>
    %33 = arith.addf %31, %32 : vector<2x128xf32>
    %cst_26 = arith.constant dense<0.000000e+00> : vector<2x128xf32>
    %34 = tpu.matmul %11, %16, %cst_26 {dimension_numbers = #tpu.dot_dimension_numbers<[1], [0], [0], [1], [0, 0, 1, 1], [], []>} : vector<2x4xf32>, vector<4x128xf32>, vector<2x128xf32> -> vector<2x128xf32>
    %35 = vector.broadcast %18 : vector<1x128xf32> to vector<2x128xf32>
    %36 = arith.addf %34, %35 : vector<2x128xf32>
    %cst_27 = arith.constant dense<0.000000e+00> : vector<2x128xf32>
    %37 = tpu.matmul %13, %16, %cst_27 {dimension_numbers = #tpu.dot_dimension_numbers<[1], [0], [0], [1], [0, 0, 1, 1], [], []>} : vector<2x4xf32>, vector<4x128xf32>, vector<2x128xf32> -> vector<2x128xf32>
    %38 = vector.broadcast %18 : vector<1x128xf32> to vector<2x128xf32>
    %39 = arith.addf %37, %38 : vector<2x128xf32>
    %cst_28 = arith.constant dense<0.000000e+00> : vector<2x128xf32>
    %40 = tpu.matmul %15, %16, %cst_28 {dimension_numbers = #tpu.dot_dimension_numbers<[1], [0], [0], [1], [0, 0, 1, 1], [], []>} : vector<2x4xf32>, vector<4x128xf32>, vector<2x128xf32> -> vector<2x128xf32>
    %41 = vector.broadcast %18 : vector<1x128xf32> to vector<2x128xf32>
    %42 = arith.addf %40, %41 : vector<2x128xf32>
    %cst_29 = arith.constant 0.000000e+00 : f32
    %43 = vector.broadcast %cst_29 : f32 to vector<2x32xf32>
    %cst_30 = arith.constant 0.000000e+00 : f32
    %44 = vector.broadcast %cst_30 : f32 to vector<2x32xf32>
    %cst_31 = arith.constant dense<0.000000e+00> : vector<2x128xf32>
    %45 = tpu.matmul %43, %17, %cst_31 {dimension_numbers = #tpu.dot_dimension_numbers<[1], [0], [0], [1], [0, 0, 1, 1], [], []>} : vector<2x32xf32>, vector<32x128xf32>, vector<2x128xf32> -> vector<2x128xf32>
    %46 = arith.addf %21, %45 : vector<2x128xf32>
    %47 = arith.negf %46 : vector<2x128xf32>
    %48 = math.exp %47 : vector<2x128xf32>
    %cst_32 = arith.constant 1.000000e+00 : f32
    %49 = vector.broadcast %cst_32 : f32 to vector<2x128xf32>
    %50 = arith.addf %49, %48 : vector<2x128xf32>
    %51 = arith.divf %49, %50 : vector<2x128xf32>
    %52 = math.tanh %46 : vector<2x128xf32>
    %53 = vector.extract_strided_slice %51 {offsets = [0, 0], sizes = [2, 32], strides = [1, 1]} : vector<2x128xf32> to vector<2x32xf32>
    %54 = vector.extract_strided_slice %51 {offsets = [0, 32], sizes = [2, 32], strides = [1, 1]} : vector<2x128xf32> to vector<2x32xf32>
    %55 = vector.extract_strided_slice %52 {offsets = [0, 64], sizes = [2, 32], strides = [1, 1]} : vector<2x128xf32> to vector<2x32xf32>
    %56 = vector.extract_strided_slice %51 {offsets = [0, 96], sizes = [2, 32], strides = [1, 1]} : vector<2x128xf32> to vector<2x32xf32>
    %57 = arith.mulf %54, %44 : vector<2x32xf32>
    %58 = arith.mulf %53, %55 : vector<2x32xf32>
    %59 = arith.addf %57, %58 : vector<2x32xf32>
    %60 = math.tanh %59 : vector<2x32xf32>
    %61 = arith.mulf %56, %60 : vector<2x32xf32>
    %cst_33 = arith.constant dense<0.000000e+00> : vector<2x128xf32>
    %62 = tpu.matmul %61, %17, %cst_33 {dimension_numbers = #tpu.dot_dimension_numbers<[1], [0], [0], [1], [0, 0, 1, 1], [], []>} : vector<2x32xf32>, vector<32x128xf32>, vector<2x128xf32> -> vector<2x128xf32>
    %63 = arith.addf %24, %62 : vector<2x128xf32>
    %64 = arith.negf %63 : vector<2x128xf32>
    %65 = math.exp %64 : vector<2x128xf32>
    %cst_34 = arith.constant 1.000000e+00 : f32
    %66 = vector.broadcast %cst_34 : f32 to vector<2x128xf32>
    %67 = arith.addf %66, %65 : vector<2x128xf32>
    %68 = arith.divf %66, %67 : vector<2x128xf32>
    %69 = math.tanh %63 : vector<2x128xf32>
    %70 = vector.extract_strided_slice %68 {offsets = [0, 0], sizes = [2, 32], strides = [1, 1]} : vector<2x128xf32> to vector<2x32xf32>
    %71 = vector.extract_strided_slice %68 {offsets = [0, 32], sizes = [2, 32], strides = [1, 1]} : vector<2x128xf32> to vector<2x32xf32>
    %72 = vector.extract_strided_slice %69 {offsets = [0, 64], sizes = [2, 32], strides = [1, 1]} : vector<2x128xf32> to vector<2x32xf32>
    %73 = vector.extract_strided_slice %68 {offsets = [0, 96], sizes = [2, 32], strides = [1, 1]} : vector<2x128xf32> to vector<2x32xf32>
    %74 = arith.mulf %71, %59 : vector<2x32xf32>
    %75 = arith.mulf %70, %72 : vector<2x32xf32>
    %76 = arith.addf %74, %75 : vector<2x32xf32>
    %77 = math.tanh %76 : vector<2x32xf32>
    %78 = arith.mulf %73, %77 : vector<2x32xf32>
    %cst_35 = arith.constant dense<0.000000e+00> : vector<2x128xf32>
    %79 = tpu.matmul %78, %17, %cst_35 {dimension_numbers = #tpu.dot_dimension_numbers<[1], [0], [0], [1], [0, 0, 1, 1], [], []>} : vector<2x32xf32>, vector<32x128xf32>, vector<2x128xf32> -> vector<2x128xf32>
    %80 = arith.addf %27, %79 : vector<2x128xf32>
    %81 = arith.negf %80 : vector<2x128xf32>
    %82 = math.exp %81 : vector<2x128xf32>
    %cst_36 = arith.constant 1.000000e+00 : f32
    %83 = vector.broadcast %cst_36 : f32 to vector<2x128xf32>
    %84 = arith.addf %83, %82 : vector<2x128xf32>
    %85 = arith.divf %83, %84 : vector<2x128xf32>
    %86 = math.tanh %80 : vector<2x128xf32>
    %87 = vector.extract_strided_slice %85 {offsets = [0, 0], sizes = [2, 32], strides = [1, 1]} : vector<2x128xf32> to vector<2x32xf32>
    %88 = vector.extract_strided_slice %85 {offsets = [0, 32], sizes = [2, 32], strides = [1, 1]} : vector<2x128xf32> to vector<2x32xf32>
    %89 = vector.extract_strided_slice %86 {offsets = [0, 64], sizes = [2, 32], strides = [1, 1]} : vector<2x128xf32> to vector<2x32xf32>
    %90 = vector.extract_strided_slice %85 {offsets = [0, 96], sizes = [2, 32], strides = [1, 1]} : vector<2x128xf32> to vector<2x32xf32>
    %91 = arith.mulf %88, %76 : vector<2x32xf32>
    %92 = arith.mulf %87, %89 : vector<2x32xf32>
    %93 = arith.addf %91, %92 : vector<2x32xf32>
    %94 = math.tanh %93 : vector<2x32xf32>
    %95 = arith.mulf %90, %94 : vector<2x32xf32>
    %cst_37 = arith.constant dense<0.000000e+00> : vector<2x128xf32>
    %96 = tpu.matmul %95, %17, %cst_37 {dimension_numbers = #tpu.dot_dimension_numbers<[1], [0], [0], [1], [0, 0, 1, 1], [], []>} : vector<2x32xf32>, vector<32x128xf32>, vector<2x128xf32> -> vector<2x128xf32>
    %97 = arith.addf %30, %96 : vector<2x128xf32>
    %98 = arith.negf %97 : vector<2x128xf32>
    %99 = math.exp %98 : vector<2x128xf32>
    %cst_38 = arith.constant 1.000000e+00 : f32
    %100 = vector.broadcast %cst_38 : f32 to vector<2x128xf32>
    %101 = arith.addf %100, %99 : vector<2x128xf32>
    %102 = arith.divf %100, %101 : vector<2x128xf32>
    %103 = math.tanh %97 : vector<2x128xf32>
    %104 = vector.extract_strided_slice %102 {offsets = [0, 0], sizes = [2, 32], strides = [1, 1]} : vector<2x128xf32> to vector<2x32xf32>
    %105 = vector.extract_strided_slice %102 {offsets = [0, 32], sizes = [2, 32], strides = [1, 1]} : vector<2x128xf32> to vector<2x32xf32>
    %106 = vector.extract_strided_slice %103 {offsets = [0, 64], sizes = [2, 32], strides = [1, 1]} : vector<2x128xf32> to vector<2x32xf32>
    %107 = vector.extract_strided_slice %102 {offsets = [0, 96], sizes = [2, 32], strides = [1, 1]} : vector<2x128xf32> to vector<2x32xf32>
    %108 = arith.mulf %105, %93 : vector<2x32xf32>
    %109 = arith.mulf %104, %106 : vector<2x32xf32>
    %110 = arith.addf %108, %109 : vector<2x32xf32>
    %111 = math.tanh %110 : vector<2x32xf32>
    %112 = arith.mulf %107, %111 : vector<2x32xf32>
    %cst_39 = arith.constant dense<0.000000e+00> : vector<2x128xf32>
    %113 = tpu.matmul %112, %17, %cst_39 {dimension_numbers = #tpu.dot_dimension_numbers<[1], [0], [0], [1], [0, 0, 1, 1], [], []>} : vector<2x32xf32>, vector<32x128xf32>, vector<2x128xf32> -> vector<2x128xf32>
    %114 = arith.addf %33, %113 : vector<2x128xf32>
    %115 = arith.negf %114 : vector<2x128xf32>
    %116 = math.exp %115 : vector<2x128xf32>
    %cst_40 = arith.constant 1.000000e+00 : f32
    %117 = vector.broadcast %cst_40 : f32 to vector<2x128xf32>
    %118 = arith.addf %117, %116 : vector<2x128xf32>
    %119 = arith.divf %117, %118 : vector<2x128xf32>
    %120 = math.tanh %114 : vector<2x128xf32>
    %121 = vector.extract_strided_slice %119 {offsets = [0, 0], sizes = [2, 32], strides = [1, 1]} : vector<2x128xf32> to vector<2x32xf32>
    %122 = vector.extract_strided_slice %119 {offsets = [0, 32], sizes = [2, 32], strides = [1, 1]} : vector<2x128xf32> to vector<2x32xf32>
    %123 = vector.extract_strided_slice %120 {offsets = [0, 64], sizes = [2, 32], strides = [1, 1]} : vector<2x128xf32> to vector<2x32xf32>
    %124 = vector.extract_strided_slice %119 {offsets = [0, 96], sizes = [2, 32], strides = [1, 1]} : vector<2x128xf32> to vector<2x32xf32>
    %125 = arith.mulf %122, %110 : vector<2x32xf32>
    %126 = arith.mulf %121, %123 : vector<2x32xf32>
    %127 = arith.addf %125, %126 : vector<2x32xf32>
    %128 = math.tanh %127 : vector<2x32xf32>
    %129 = arith.mulf %124, %128 : vector<2x32xf32>
    %cst_41 = arith.constant dense<0.000000e+00> : vector<2x128xf32>
    %130 = tpu.matmul %129, %17, %cst_41 {dimension_numbers = #tpu.dot_dimension_numbers<[1], [0], [0], [1], [0, 0, 1, 1], [], []>} : vector<2x32xf32>, vector<32x128xf32>, vector<2x128xf32> -> vector<2x128xf32>
    %131 = arith.addf %36, %130 : vector<2x128xf32>
    %132 = arith.negf %131 : vector<2x128xf32>
    %133 = math.exp %132 : vector<2x128xf32>
    %cst_42 = arith.constant 1.000000e+00 : f32
    %134 = vector.broadcast %cst_42 : f32 to vector<2x128xf32>
    %135 = arith.addf %134, %133 : vector<2x128xf32>
    %136 = arith.divf %134, %135 : vector<2x128xf32>
    %137 = math.tanh %131 : vector<2x128xf32>
    %138 = vector.extract_strided_slice %136 {offsets = [0, 0], sizes = [2, 32], strides = [1, 1]} : vector<2x128xf32> to vector<2x32xf32>
    %139 = vector.extract_strided_slice %136 {offsets = [0, 32], sizes = [2, 32], strides = [1, 1]} : vector<2x128xf32> to vector<2x32xf32>
    %140 = vector.extract_strided_slice %137 {offsets = [0, 64], sizes = [2, 32], strides = [1, 1]} : vector<2x128xf32> to vector<2x32xf32>
    %141 = vector.extract_strided_slice %136 {offsets = [0, 96], sizes = [2, 32], strides = [1, 1]} : vector<2x128xf32> to vector<2x32xf32>
    %142 = arith.mulf %139, %127 : vector<2x32xf32>
    %143 = arith.mulf %138, %140 : vector<2x32xf32>
    %144 = arith.addf %142, %143 : vector<2x32xf32>
    %145 = math.tanh %144 : vector<2x32xf32>
    %146 = arith.mulf %141, %145 : vector<2x32xf32>
    %cst_43 = arith.constant dense<0.000000e+00> : vector<2x128xf32>
    %147 = tpu.matmul %146, %17, %cst_43 {dimension_numbers = #tpu.dot_dimension_numbers<[1], [0], [0], [1], [0, 0, 1, 1], [], []>} : vector<2x32xf32>, vector<32x128xf32>, vector<2x128xf32> -> vector<2x128xf32>
    %148 = arith.addf %39, %147 : vector<2x128xf32>
    %149 = arith.negf %148 : vector<2x128xf32>
    %150 = math.exp %149 : vector<2x128xf32>
    %cst_44 = arith.constant 1.000000e+00 : f32
    %151 = vector.broadcast %cst_44 : f32 to vector<2x128xf32>
    %152 = arith.addf %151, %150 : vector<2x128xf32>
    %153 = arith.divf %151, %152 : vector<2x128xf32>
    %154 = math.tanh %148 : vector<2x128xf32>
    %155 = vector.extract_strided_slice %153 {offsets = [0, 0], sizes = [2, 32], strides = [1, 1]} : vector<2x128xf32> to vector<2x32xf32>
    %156 = vector.extract_strided_slice %153 {offsets = [0, 32], sizes = [2, 32], strides = [1, 1]} : vector<2x128xf32> to vector<2x32xf32>
    %157 = vector.extract_strided_slice %154 {offsets = [0, 64], sizes = [2, 32], strides = [1, 1]} : vector<2x128xf32> to vector<2x32xf32>
    %158 = vector.extract_strided_slice %153 {offsets = [0, 96], sizes = [2, 32], strides = [1, 1]} : vector<2x128xf32> to vector<2x32xf32>
    %159 = arith.mulf %156, %144 : vector<2x32xf32>
    %160 = arith.mulf %155, %157 : vector<2x32xf32>
    %161 = arith.addf %159, %160 : vector<2x32xf32>
    %162 = math.tanh %161 : vector<2x32xf32>
    %163 = arith.mulf %158, %162 : vector<2x32xf32>
    %cst_45 = arith.constant dense<0.000000e+00> : vector<2x128xf32>
    %164 = tpu.matmul %163, %17, %cst_45 {dimension_numbers = #tpu.dot_dimension_numbers<[1], [0], [0], [1], [0, 0, 1, 1], [], []>} : vector<2x32xf32>, vector<32x128xf32>, vector<2x128xf32> -> vector<2x128xf32>
    %165 = arith.addf %42, %164 : vector<2x128xf32>
    %166 = arith.negf %165 : vector<2x128xf32>
    %167 = math.exp %166 : vector<2x128xf32>
    %cst_46 = arith.constant 1.000000e+00 : f32
    %168 = vector.broadcast %cst_46 : f32 to vector<2x128xf32>
    %169 = arith.addf %168, %167 : vector<2x128xf32>
    %170 = arith.divf %168, %169 : vector<2x128xf32>
    %171 = math.tanh %165 : vector<2x128xf32>
    %172 = vector.extract_strided_slice %170 {offsets = [0, 0], sizes = [2, 32], strides = [1, 1]} : vector<2x128xf32> to vector<2x32xf32>
    %173 = vector.extract_strided_slice %170 {offsets = [0, 32], sizes = [2, 32], strides = [1, 1]} : vector<2x128xf32> to vector<2x32xf32>
    %174 = vector.extract_strided_slice %171 {offsets = [0, 64], sizes = [2, 32], strides = [1, 1]} : vector<2x128xf32> to vector<2x32xf32>
    %175 = vector.extract_strided_slice %170 {offsets = [0, 96], sizes = [2, 32], strides = [1, 1]} : vector<2x128xf32> to vector<2x32xf32>
    %176 = arith.mulf %173, %161 : vector<2x32xf32>
    %177 = arith.mulf %172, %174 : vector<2x32xf32>
    %178 = arith.addf %176, %177 : vector<2x32xf32>
    %179 = math.tanh %178 : vector<2x32xf32>
    %180 = arith.mulf %175, %179 : vector<2x32xf32>
    %c0_47 = arith.constant 0 : index
    %c0_48 = arith.constant 0 : index
    %181 = vector.load %arg4[%c0_47, %c0_48] : memref<32x128xf32, #tpu.memory_space<vmem>>, vector<32x128xf32>
    %c0_49 = arith.constant 0 : index
    %c0_50 = arith.constant 0 : index
    %182 = vector.load %arg5[%c0_49, %c0_50] : memref<32x128xf32, #tpu.memory_space<vmem>>, vector<32x128xf32>
    %c0_51 = arith.constant 0 : index
    %c0_52 = arith.constant 0 : index
    %183 = vector.load %arg6[%c0_51, %c0_52] : memref<1x128xf32, #tpu.memory_space<vmem>>, vector<1x128xf32>
    %cst_53 = arith.constant dense<0.000000e+00> : vector<2x128xf32>
    %184 = tpu.matmul %61, %181, %cst_53 {dimension_numbers = #tpu.dot_dimension_numbers<[1], [0], [0], [1], [0, 0, 1, 1], [], []>} : vector<2x32xf32>, vector<32x128xf32>, vector<2x128xf32> -> vector<2x128xf32>
    %185 = vector.broadcast %183 : vector<1x128xf32> to vector<2x128xf32>
    %186 = arith.addf %184, %185 : vector<2x128xf32>
    %cst_54 = arith.constant dense<0.000000e+00> : vector<2x128xf32>
    %187 = tpu.matmul %78, %181, %cst_54 {dimension_numbers = #tpu.dot_dimension_numbers<[1], [0], [0], [1], [0, 0, 1, 1], [], []>} : vector<2x32xf32>, vector<32x128xf32>, vector<2x128xf32> -> vector<2x128xf32>
    %188 = vector.broadcast %183 : vector<1x128xf32> to vector<2x128xf32>
    %189 = arith.addf %187, %188 : vector<2x128xf32>
    %cst_55 = arith.constant dense<0.000000e+00> : vector<2x128xf32>
    %190 = tpu.matmul %95, %181, %cst_55 {dimension_numbers = #tpu.dot_dimension_numbers<[1], [0], [0], [1], [0, 0, 1, 1], [], []>} : vector<2x32xf32>, vector<32x128xf32>, vector<2x128xf32> -> vector<2x128xf32>
    %191 = vector.broadcast %183 : vector<1x128xf32> to vector<2x128xf32>
    %192 = arith.addf %190, %191 : vector<2x128xf32>
    %cst_56 = arith.constant dense<0.000000e+00> : vector<2x128xf32>
    %193 = tpu.matmul %112, %181, %cst_56 {dimension_numbers = #tpu.dot_dimension_numbers<[1], [0], [0], [1], [0, 0, 1, 1], [], []>} : vector<2x32xf32>, vector<32x128xf32>, vector<2x128xf32> -> vector<2x128xf32>
    %194 = vector.broadcast %183 : vector<1x128xf32> to vector<2x128xf32>
    %195 = arith.addf %193, %194 : vector<2x128xf32>
    %cst_57 = arith.constant dense<0.000000e+00> : vector<2x128xf32>
    %196 = tpu.matmul %129, %181, %cst_57 {dimension_numbers = #tpu.dot_dimension_numbers<[1], [0], [0], [1], [0, 0, 1, 1], [], []>} : vector<2x32xf32>, vector<32x128xf32>, vector<2x128xf32> -> vector<2x128xf32>
    %197 = vector.broadcast %183 : vector<1x128xf32> to vector<2x128xf32>
    %198 = arith.addf %196, %197 : vector<2x128xf32>
    %cst_58 = arith.constant dense<0.000000e+00> : vector<2x128xf32>
    %199 = tpu.matmul %146, %181, %cst_58 {dimension_numbers = #tpu.dot_dimension_numbers<[1], [0], [0], [1], [0, 0, 1, 1], [], []>} : vector<2x32xf32>, vector<32x128xf32>, vector<2x128xf32> -> vector<2x128xf32>
    %200 = vector.broadcast %183 : vector<1x128xf32> to vector<2x128xf32>
    %201 = arith.addf %199, %200 : vector<2x128xf32>
    %cst_59 = arith.constant dense<0.000000e+00> : vector<2x128xf32>
    %202 = tpu.matmul %163, %181, %cst_59 {dimension_numbers = #tpu.dot_dimension_numbers<[1], [0], [0], [1], [0, 0, 1, 1], [], []>} : vector<2x32xf32>, vector<32x128xf32>, vector<2x128xf32> -> vector<2x128xf32>
    %203 = vector.broadcast %183 : vector<1x128xf32> to vector<2x128xf32>
    %204 = arith.addf %202, %203 : vector<2x128xf32>
    %cst_60 = arith.constant dense<0.000000e+00> : vector<2x128xf32>
    %205 = tpu.matmul %180, %181, %cst_60 {dimension_numbers = #tpu.dot_dimension_numbers<[1], [0], [0], [1], [0, 0, 1, 1], [], []>} : vector<2x32xf32>, vector<32x128xf32>, vector<2x128xf32> -> vector<2x128xf32>
    %206 = vector.broadcast %183 : vector<1x128xf32> to vector<2x128xf32>
    %207 = arith.addf %205, %206 : vector<2x128xf32>
    %cst_61 = arith.constant 0.000000e+00 : f32
    %208 = vector.broadcast %cst_61 : f32 to vector<2x32xf32>
    %cst_62 = arith.constant 0.000000e+00 : f32
    %209 = vector.broadcast %cst_62 : f32 to vector<2x32xf32>
    %cst_63 = arith.constant dense<0.000000e+00> : vector<2x128xf32>
    %210 = tpu.matmul %208, %182, %cst_63 {dimension_numbers = #tpu.dot_dimension_numbers<[1], [0], [0], [1], [0, 0, 1, 1], [], []>} : vector<2x32xf32>, vector<32x128xf32>, vector<2x128xf32> -> vector<2x128xf32>
    %211 = arith.addf %186, %210 : vector<2x128xf32>
    %212 = arith.negf %211 : vector<2x128xf32>
    %213 = math.exp %212 : vector<2x128xf32>
    %cst_64 = arith.constant 1.000000e+00 : f32
    %214 = vector.broadcast %cst_64 : f32 to vector<2x128xf32>
    %215 = arith.addf %214, %213 : vector<2x128xf32>
    %216 = arith.divf %214, %215 : vector<2x128xf32>
    %217 = math.tanh %211 : vector<2x128xf32>
    %218 = vector.extract_strided_slice %216 {offsets = [0, 0], sizes = [2, 32], strides = [1, 1]} : vector<2x128xf32> to vector<2x32xf32>
    %219 = vector.extract_strided_slice %216 {offsets = [0, 32], sizes = [2, 32], strides = [1, 1]} : vector<2x128xf32> to vector<2x32xf32>
    %220 = vector.extract_strided_slice %217 {offsets = [0, 64], sizes = [2, 32], strides = [1, 1]} : vector<2x128xf32> to vector<2x32xf32>
    %221 = vector.extract_strided_slice %216 {offsets = [0, 96], sizes = [2, 32], strides = [1, 1]} : vector<2x128xf32> to vector<2x32xf32>
    %222 = arith.mulf %219, %209 : vector<2x32xf32>
    %223 = arith.mulf %218, %220 : vector<2x32xf32>
    %224 = arith.addf %222, %223 : vector<2x32xf32>
    %225 = math.tanh %224 : vector<2x32xf32>
    %226 = arith.mulf %221, %225 : vector<2x32xf32>
    %c0_65 = arith.constant 0 : index
    %c0_66 = arith.constant 0 : index
    %c0_67 = arith.constant 0 : index
    %227 = vector.load %arg12[%c0_65, %c0_66, %c0_67] : memref<8x2x32xf32, #tpu.memory_space<vmem>>, vector<1x2x32xf32>
    %228 = vector.shape_cast %227 : vector<1x2x32xf32> to vector<2x32xf32>
    %229 = vector.shape_cast %226 : vector<2x32xf32> to vector<1x2x32xf32>
    tpu.vector_store %arg12[%c0_65, %c0_66, %c0_67], %229 {strides = array<i32>} : memref<8x2x32xf32, #tpu.memory_space<vmem>>, vector<1x2x32xf32>,
    %cst_68 = arith.constant dense<0.000000e+00> : vector<2x128xf32>
    %230 = tpu.matmul %226, %182, %cst_68 {dimension_numbers = #tpu.dot_dimension_numbers<[1], [0], [0], [1], [0, 0, 1, 1], [], []>} : vector<2x32xf32>, vector<32x128xf32>, vector<2x128xf32> -> vector<2x128xf32>
    %231 = arith.addf %189, %230 : vector<2x128xf32>
    %232 = arith.negf %231 : vector<2x128xf32>
    %233 = math.exp %232 : vector<2x128xf32>
    %cst_69 = arith.constant 1.000000e+00 : f32
    %234 = vector.broadcast %cst_69 : f32 to vector<2x128xf32>
    %235 = arith.addf %234, %233 : vector<2x128xf32>
    %236 = arith.divf %234, %235 : vector<2x128xf32>
    %237 = math.tanh %231 : vector<2x128xf32>
    %238 = vector.extract_strided_slice %236 {offsets = [0, 0], sizes = [2, 32], strides = [1, 1]} : vector<2x128xf32> to vector<2x32xf32>
    %239 = vector.extract_strided_slice %236 {offsets = [0, 32], sizes = [2, 32], strides = [1, 1]} : vector<2x128xf32> to vector<2x32xf32>
    %240 = vector.extract_strided_slice %237 {offsets = [0, 64], sizes = [2, 32], strides = [1, 1]} : vector<2x128xf32> to vector<2x32xf32>
    %241 = vector.extract_strided_slice %236 {offsets = [0, 96], sizes = [2, 32], strides = [1, 1]} : vector<2x128xf32> to vector<2x32xf32>
    %242 = arith.mulf %239, %224 : vector<2x32xf32>
    %243 = arith.mulf %238, %240 : vector<2x32xf32>
    %244 = arith.addf %242, %243 : vector<2x32xf32>
    %245 = math.tanh %244 : vector<2x32xf32>
    %246 = arith.mulf %241, %245 : vector<2x32xf32>
    %c1_70 = arith.constant 1 : index
    %c0_71 = arith.constant 0 : index
    %c0_72 = arith.constant 0 : index
    %247 = vector.load %arg12[%c1_70, %c0_71, %c0_72] : memref<8x2x32xf32, #tpu.memory_space<vmem>>, vector<1x2x32xf32>
    %248 = vector.shape_cast %247 : vector<1x2x32xf32> to vector<2x32xf32>
    %249 = vector.shape_cast %246 : vector<2x32xf32> to vector<1x2x32xf32>
    tpu.vector_store %arg12[%c1_70, %c0_71, %c0_72], %249 {strides = array<i32>} : memref<8x2x32xf32, #tpu.memory_space<vmem>>, vector<1x2x32xf32>,
    %cst_73 = arith.constant dense<0.000000e+00> : vector<2x128xf32>
    %250 = tpu.matmul %246, %182, %cst_73 {dimension_numbers = #tpu.dot_dimension_numbers<[1], [0], [0], [1], [0, 0, 1, 1], [], []>} : vector<2x32xf32>, vector<32x128xf32>, vector<2x128xf32> -> vector<2x128xf32>
    %251 = arith.addf %192, %250 : vector<2x128xf32>
    %252 = arith.negf %251 : vector<2x128xf32>
    %253 = math.exp %252 : vector<2x128xf32>
    %cst_74 = arith.constant 1.000000e+00 : f32
    %254 = vector.broadcast %cst_74 : f32 to vector<2x128xf32>
    %255 = arith.addf %254, %253 : vector<2x128xf32>
    %256 = arith.divf %254, %255 : vector<2x128xf32>
    %257 = math.tanh %251 : vector<2x128xf32>
    %258 = vector.extract_strided_slice %256 {offsets = [0, 0], sizes = [2, 32], strides = [1, 1]} : vector<2x128xf32> to vector<2x32xf32>
    %259 = vector.extract_strided_slice %256 {offsets = [0, 32], sizes = [2, 32], strides = [1, 1]} : vector<2x128xf32> to vector<2x32xf32>
    %260 = vector.extract_strided_slice %257 {offsets = [0, 64], sizes = [2, 32], strides = [1, 1]} : vector<2x128xf32> to vector<2x32xf32>
    %261 = vector.extract_strided_slice %256 {offsets = [0, 96], sizes = [2, 32], strides = [1, 1]} : vector<2x128xf32> to vector<2x32xf32>
    %262 = arith.mulf %259, %244 : vector<2x32xf32>
    %263 = arith.mulf %258, %260 : vector<2x32xf32>
    %264 = arith.addf %262, %263 : vector<2x32xf32>
    %265 = math.tanh %264 : vector<2x32xf32>
    %266 = arith.mulf %261, %265 : vector<2x32xf32>
    %c2_75 = arith.constant 2 : index
    %c0_76 = arith.constant 0 : index
    %c0_77 = arith.constant 0 : index
    %267 = vector.load %arg12[%c2_75, %c0_76, %c0_77] : memref<8x2x32xf32, #tpu.memory_space<vmem>>, vector<1x2x32xf32>
    %268 = vector.shape_cast %267 : vector<1x2x32xf32> to vector<2x32xf32>
    %269 = vector.shape_cast %266 : vector<2x32xf32> to vector<1x2x32xf32>
    tpu.vector_store %arg12[%c2_75, %c0_76, %c0_77], %269 {strides = array<i32>} : memref<8x2x32xf32, #tpu.memory_space<vmem>>, vector<1x2x32xf32>,
    %cst_78 = arith.constant dense<0.000000e+00> : vector<2x128xf32>
    %270 = tpu.matmul %266, %182, %cst_78 {dimension_numbers = #tpu.dot_dimension_numbers<[1], [0], [0], [1], [0, 0, 1, 1], [], []>} : vector<2x32xf32>, vector<32x128xf32>, vector<2x128xf32> -> vector<2x128xf32>
    %271 = arith.addf %195, %270 : vector<2x128xf32>
    %272 = arith.negf %271 : vector<2x128xf32>
    %273 = math.exp %272 : vector<2x128xf32>
    %cst_79 = arith.constant 1.000000e+00 : f32
    %274 = vector.broadcast %cst_79 : f32 to vector<2x128xf32>
    %275 = arith.addf %274, %273 : vector<2x128xf32>
    %276 = arith.divf %274, %275 : vector<2x128xf32>
    %277 = math.tanh %271 : vector<2x128xf32>
    %278 = vector.extract_strided_slice %276 {offsets = [0, 0], sizes = [2, 32], strides = [1, 1]} : vector<2x128xf32> to vector<2x32xf32>
    %279 = vector.extract_strided_slice %276 {offsets = [0, 32], sizes = [2, 32], strides = [1, 1]} : vector<2x128xf32> to vector<2x32xf32>
    %280 = vector.extract_strided_slice %277 {offsets = [0, 64], sizes = [2, 32], strides = [1, 1]} : vector<2x128xf32> to vector<2x32xf32>
    %281 = vector.extract_strided_slice %276 {offsets = [0, 96], sizes = [2, 32], strides = [1, 1]} : vector<2x128xf32> to vector<2x32xf32>
    %282 = arith.mulf %279, %264 : vector<2x32xf32>
    %283 = arith.mulf %278, %280 : vector<2x32xf32>
    %284 = arith.addf %282, %283 : vector<2x32xf32>
    %285 = math.tanh %284 : vector<2x32xf32>
    %286 = arith.mulf %281, %285 : vector<2x32xf32>
    %c3_80 = arith.constant 3 : index
    %c0_81 = arith.constant 0 : index
    %c0_82 = arith.constant 0 : index
    %287 = vector.load %arg12[%c3_80, %c0_81, %c0_82] : memref<8x2x32xf32, #tpu.memory_space<vmem>>, vector<1x2x32xf32>
    %288 = vector.shape_cast %287 : vector<1x2x32xf32> to vector<2x32xf32>
    %289 = vector.shape_cast %286 : vector<2x32xf32> to vector<1x2x32xf32>
    tpu.vector_store %arg12[%c3_80, %c0_81, %c0_82], %289 {strides = array<i32>} : memref<8x2x32xf32, #tpu.memory_space<vmem>>, vector<1x2x32xf32>,
    %cst_83 = arith.constant dense<0.000000e+00> : vector<2x128xf32>
    %290 = tpu.matmul %286, %182, %cst_83 {dimension_numbers = #tpu.dot_dimension_numbers<[1], [0], [0], [1], [0, 0, 1, 1], [], []>} : vector<2x32xf32>, vector<32x128xf32>, vector<2x128xf32> -> vector<2x128xf32>
    %291 = arith.addf %198, %290 : vector<2x128xf32>
    %292 = arith.negf %291 : vector<2x128xf32>
    %293 = math.exp %292 : vector<2x128xf32>
    %cst_84 = arith.constant 1.000000e+00 : f32
    %294 = vector.broadcast %cst_84 : f32 to vector<2x128xf32>
    %295 = arith.addf %294, %293 : vector<2x128xf32>
    %296 = arith.divf %294, %295 : vector<2x128xf32>
    %297 = math.tanh %291 : vector<2x128xf32>
    %298 = vector.extract_strided_slice %296 {offsets = [0, 0], sizes = [2, 32], strides = [1, 1]} : vector<2x128xf32> to vector<2x32xf32>
    %299 = vector.extract_strided_slice %296 {offsets = [0, 32], sizes = [2, 32], strides = [1, 1]} : vector<2x128xf32> to vector<2x32xf32>
    %300 = vector.extract_strided_slice %297 {offsets = [0, 64], sizes = [2, 32], strides = [1, 1]} : vector<2x128xf32> to vector<2x32xf32>
    %301 = vector.extract_strided_slice %296 {offsets = [0, 96], sizes = [2, 32], strides = [1, 1]} : vector<2x128xf32> to vector<2x32xf32>
    %302 = arith.mulf %299, %284 : vector<2x32xf32>
    %303 = arith.mulf %298, %300 : vector<2x32xf32>
    %304 = arith.addf %302, %303 : vector<2x32xf32>
    %305 = math.tanh %304 : vector<2x32xf32>
    %306 = arith.mulf %301, %305 : vector<2x32xf32>
    %c4_85 = arith.constant 4 : index
    %c0_86 = arith.constant 0 : index
    %c0_87 = arith.constant 0 : index
    %307 = vector.load %arg12[%c4_85, %c0_86, %c0_87] : memref<8x2x32xf32, #tpu.memory_space<vmem>>, vector<1x2x32xf32>
    %308 = vector.shape_cast %307 : vector<1x2x32xf32> to vector<2x32xf32>
    %309 = vector.shape_cast %306 : vector<2x32xf32> to vector<1x2x32xf32>
    tpu.vector_store %arg12[%c4_85, %c0_86, %c0_87], %309 {strides = array<i32>} : memref<8x2x32xf32, #tpu.memory_space<vmem>>, vector<1x2x32xf32>,
    %cst_88 = arith.constant dense<0.000000e+00> : vector<2x128xf32>
    %310 = tpu.matmul %306, %182, %cst_88 {dimension_numbers = #tpu.dot_dimension_numbers<[1], [0], [0], [1], [0, 0, 1, 1], [], []>} : vector<2x32xf32>, vector<32x128xf32>, vector<2x128xf32> -> vector<2x128xf32>
    %311 = arith.addf %201, %310 : vector<2x128xf32>
    %312 = arith.negf %311 : vector<2x128xf32>
    %313 = math.exp %312 : vector<2x128xf32>
    %cst_89 = arith.constant 1.000000e+00 : f32
    %314 = vector.broadcast %cst_89 : f32 to vector<2x128xf32>
    %315 = arith.addf %314, %313 : vector<2x128xf32>
    %316 = arith.divf %314, %315 : vector<2x128xf32>
    %317 = math.tanh %311 : vector<2x128xf32>
    %318 = vector.extract_strided_slice %316 {offsets = [0, 0], sizes = [2, 32], strides = [1, 1]} : vector<2x128xf32> to vector<2x32xf32>
    %319 = vector.extract_strided_slice %316 {offsets = [0, 32], sizes = [2, 32], strides = [1, 1]} : vector<2x128xf32> to vector<2x32xf32>
    %320 = vector.extract_strided_slice %317 {offsets = [0, 64], sizes = [2, 32], strides = [1, 1]} : vector<2x128xf32> to vector<2x32xf32>
    %321 = vector.extract_strided_slice %316 {offsets = [0, 96], sizes = [2, 32], strides = [1, 1]} : vector<2x128xf32> to vector<2x32xf32>
    %322 = arith.mulf %319, %304 : vector<2x32xf32>
    %323 = arith.mulf %318, %320 : vector<2x32xf32>
    %324 = arith.addf %322, %323 : vector<2x32xf32>
    %325 = math.tanh %324 : vector<2x32xf32>
    %326 = arith.mulf %321, %325 : vector<2x32xf32>
    %c5_90 = arith.constant 5 : index
    %c0_91 = arith.constant 0 : index
    %c0_92 = arith.constant 0 : index
    %327 = vector.load %arg12[%c5_90, %c0_91, %c0_92] : memref<8x2x32xf32, #tpu.memory_space<vmem>>, vector<1x2x32xf32>
    %328 = vector.shape_cast %327 : vector<1x2x32xf32> to vector<2x32xf32>
    %329 = vector.shape_cast %326 : vector<2x32xf32> to vector<1x2x32xf32>
    tpu.vector_store %arg12[%c5_90, %c0_91, %c0_92], %329 {strides = array<i32>} : memref<8x2x32xf32, #tpu.memory_space<vmem>>, vector<1x2x32xf32>,
    %cst_93 = arith.constant dense<0.000000e+00> : vector<2x128xf32>
    %330 = tpu.matmul %326, %182, %cst_93 {dimension_numbers = #tpu.dot_dimension_numbers<[1], [0], [0], [1], [0, 0, 1, 1], [], []>} : vector<2x32xf32>, vector<32x128xf32>, vector<2x128xf32> -> vector<2x128xf32>
    %331 = arith.addf %204, %330 : vector<2x128xf32>
    %332 = arith.negf %331 : vector<2x128xf32>
    %333 = math.exp %332 : vector<2x128xf32>
    %cst_94 = arith.constant 1.000000e+00 : f32
    %334 = vector.broadcast %cst_94 : f32 to vector<2x128xf32>
    %335 = arith.addf %334, %333 : vector<2x128xf32>
    %336 = arith.divf %334, %335 : vector<2x128xf32>
    %337 = math.tanh %331 : vector<2x128xf32>
    %338 = vector.extract_strided_slice %336 {offsets = [0, 0], sizes = [2, 32], strides = [1, 1]} : vector<2x128xf32> to vector<2x32xf32>
    %339 = vector.extract_strided_slice %336 {offsets = [0, 32], sizes = [2, 32], strides = [1, 1]} : vector<2x128xf32> to vector<2x32xf32>
    %340 = vector.extract_strided_slice %337 {offsets = [0, 64], sizes = [2, 32], strides = [1, 1]} : vector<2x128xf32> to vector<2x32xf32>
    %341 = vector.extract_strided_slice %336 {offsets = [0, 96], sizes = [2, 32], strides = [1, 1]} : vector<2x128xf32> to vector<2x32xf32>
    %342 = arith.mulf %339, %324 : vector<2x32xf32>
    %343 = arith.mulf %338, %340 : vector<2x32xf32>
    %344 = arith.addf %342, %343 : vector<2x32xf32>
    %345 = math.tanh %344 : vector<2x32xf32>
    %346 = arith.mulf %341, %345 : vector<2x32xf32>
    %c6_95 = arith.constant 6 : index
    %c0_96 = arith.constant 0 : index
    %c0_97 = arith.constant 0 : index
    %347 = vector.load %arg12[%c6_95, %c0_96, %c0_97] : memref<8x2x32xf32, #tpu.memory_space<vmem>>, vector<1x2x32xf32>
    %348 = vector.shape_cast %347 : vector<1x2x32xf32> to vector<2x32xf32>
    %349 = vector.shape_cast %346 : vector<2x32xf32> to vector<1x2x32xf32>
    tpu.vector_store %arg12[%c6_95, %c0_96, %c0_97], %349 {strides = array<i32>} : memref<8x2x32xf32, #tpu.memory_space<vmem>>, vector<1x2x32xf32>,
    %cst_98 = arith.constant dense<0.000000e+00> : vector<2x128xf32>
    %350 = tpu.matmul %346, %182, %cst_98 {dimension_numbers = #tpu.dot_dimension_numbers<[1], [0], [0], [1], [0, 0, 1, 1], [], []>} : vector<2x32xf32>, vector<32x128xf32>, vector<2x128xf32> -> vector<2x128xf32>
    %351 = arith.addf %207, %350 : vector<2x128xf32>
    %352 = arith.negf %351 : vector<2x128xf32>
    %353 = math.exp %352 : vector<2x128xf32>
    %cst_99 = arith.constant 1.000000e+00 : f32
    %354 = vector.broadcast %cst_99 : f32 to vector<2x128xf32>
    %355 = arith.addf %354, %353 : vector<2x128xf32>
    %356 = arith.divf %354, %355 : vector<2x128xf32>
    %357 = math.tanh %351 : vector<2x128xf32>
    %358 = vector.extract_strided_slice %356 {offsets = [0, 0], sizes = [2, 32], strides = [1, 1]} : vector<2x128xf32> to vector<2x32xf32>
    %359 = vector.extract_strided_slice %356 {offsets = [0, 32], sizes = [2, 32], strides = [1, 1]} : vector<2x128xf32> to vector<2x32xf32>
    %360 = vector.extract_strided_slice %357 {offsets = [0, 64], sizes = [2, 32], strides = [1, 1]} : vector<2x128xf32> to vector<2x32xf32>
    %361 = vector.extract_strided_slice %356 {offsets = [0, 96], sizes = [2, 32], strides = [1, 1]} : vector<2x128xf32> to vector<2x32xf32>
    %362 = arith.mulf %359, %344 : vector<2x32xf32>
    %363 = arith.mulf %358, %360 : vector<2x32xf32>
    %364 = arith.addf %362, %363 : vector<2x32xf32>
    %365 = math.tanh %364 : vector<2x32xf32>
    %366 = arith.mulf %361, %365 : vector<2x32xf32>
    %c7_100 = arith.constant 7 : index
    %c0_101 = arith.constant 0 : index
    %c0_102 = arith.constant 0 : index
    %367 = vector.load %arg12[%c7_100, %c0_101, %c0_102] : memref<8x2x32xf32, #tpu.memory_space<vmem>>, vector<1x2x32xf32>
    %368 = vector.shape_cast %367 : vector<1x2x32xf32> to vector<2x32xf32>
    %369 = vector.shape_cast %366 : vector<2x32xf32> to vector<1x2x32xf32>
    tpu.vector_store %arg12[%c7_100, %c0_101, %c0_102], %369 {strides = array<i32>} : memref<8x2x32xf32, #tpu.memory_space<vmem>>, vector<1x2x32xf32>,
    %c0_103 = arith.constant 0 : index
    %c0_104 = arith.constant 0 : index
    %c0_105 = arith.constant 0 : index
    %370 = vector.load %arg12[%c0_103, %c0_104, %c0_105] : memref<8x2x32xf32, #tpu.memory_space<vmem>>, vector<8x2x32xf32>
    %cst_106 = arith.constant dense<0xFF800000> : vector<8x32xf32>
    %371 = vector.multi_reduction <maximumf>, %370, %cst_106 [1] : vector<8x2x32xf32> to vector<8x32xf32>
    %c0_107 = arith.constant 0 : index
    %c0_108 = arith.constant 0 : index
    %372 = vector.load %arg7[%c0_107, %c0_108] : memref<32x32xf32, #tpu.memory_space<vmem>>, vector<32x32xf32>
    %cst_109 = arith.constant dense<0.000000e+00> : vector<8x32xf32>
    %373 = tpu.matmul %371, %372, %cst_109 {dimension_numbers = #tpu.dot_dimension_numbers<[1], [0], [0], [1], [0, 0, 1, 1], [], []>} : vector<8x32xf32>, vector<32x32xf32>, vector<8x32xf32> -> vector<8x32xf32>
    %c0_110 = arith.constant 0 : index
    %c0_111 = arith.constant 0 : index
    %374 = vector.load %arg8[%c0_110, %c0_111] : memref<1x32xf32, #tpu.memory_space<vmem>>, vector<1x32xf32>
    %375 = vector.broadcast %374 : vector<1x32xf32> to vector<8x32xf32>
    %376 = arith.addf %373, %375 : vector<8x32xf32>
    %cst_112 = arith.constant 0.000000e+00 : f32
    %377 = vector.broadcast %cst_112 : f32 to vector<8x32xf32>
    %378 = arith.maximumf %376, %377 : vector<8x32xf32>
    %c0_113 = arith.constant 0 : index
    %c0_114 = arith.constant 0 : index
    %379 = vector.load %arg9[%c0_113, %c0_114] : memref<32x128xf32, #tpu.memory_space<vmem>>, vector<32x128xf32>
    %cst_115 = arith.constant dense<0.000000e+00> : vector<8x128xf32>
    %380 = tpu.matmul %378, %379, %cst_115 {dimension_numbers = #tpu.dot_dimension_numbers<[1], [0], [0], [1], [0, 0, 1, 1], [], []>} : vector<8x32xf32>, vector<32x128xf32>, vector<8x128xf32> -> vector<8x128xf32>
    %c0_116 = arith.constant 0 : index
    %c0_117 = arith.constant 0 : index
    %381 = vector.load %arg10[%c0_116, %c0_117] : memref<1x128xf32, #tpu.memory_space<vmem>>, vector<1x128xf32>
    %382 = vector.broadcast %381 : vector<1x128xf32> to vector<8x128xf32>
    %383 = arith.addf %380, %382 : vector<8x128xf32>
    %c0_118 = arith.constant 0 : index
    %c0_119 = arith.constant 0 : index
    %384 = vector.load %arg11[%c0_118, %c0_119] : memref<8x128xf32, #tpu.memory_space<vmem>>, vector<8x128xf32>
    tpu.vector_store %arg11[%c0_118, %c0_119], %383 {strides = array<i32>} : memref<8x128xf32, #tpu.memory_space<vmem>>, vector<8x128xf32>,
    return
  }
}

</mosaic_0001>

<llo_original>
// kernel: rnn_model_forward.1
$region0: #{rnn_model_forward.1}
  #allocation0 [shape = 'u32[]', space=smem, size = 0x4, offset = 0x4, fixed_abs, tag = 'smem constant byte address 0x4 - core index']
  #allocation1 [shape = 'u32[144,128]{1,0:T(1,128)}', space=vmem, size = 0x12000, scoped, tag = 'internal scratch']
  #allocation2 [shape = 'f32[8,2,32]{2,1,0:T(2,128)}', space=vmem, size = 0x2000, scoped, tag = 'scratch operand']
  %s0 = inlined_call_operand.vmem [shape: f32[8,2,4], index: 0, kind: input, shape index: {}]
  %s1 = inlined_call_operand.hbm [shape: f32[4,128], index: 1, kind: input, shape index: {}]
  %s2 = inlined_call_operand.vmem [shape: f32[32,128], index: 2, kind: input, shape index: {}]
  %s3 = inlined_call_operand.hbm [shape: f32[1,128], index: 3, kind: input, shape index: {}]
  %s4 = inlined_call_operand.vmem [shape: f32[32,128], index: 4, kind: input, shape index: {}]
  %s5 = inlined_call_operand.vmem [shape: f32[32,128], index: 5, kind: input, shape index: {}]
  %s6 = inlined_call_operand.hbm [shape: f32[1,128], index: 6, kind: input, shape index: {}]
  %s7 = inlined_call_operand.vmem [shape: f32[32,32], index: 7, kind: input, shape index: {}]
  %s8 = inlined_call_operand.hbm [shape: f32[1,32], index: 8, kind: input, shape index: {}]
  %s9 = inlined_call_operand.vmem [shape: f32[32,128], index: 9, kind: input, shape index: {}]
  %s10 = inlined_call_operand.vmem [shape: f32[1,128], index: 10, kind: input, shape index: {}]
  %s11 = inlined_call_operand.vmem [shape: f32[8,128], index: 11, kind: output, shape index: {}]
  %s12 = sld [smem:[#allocation0]]
  $region70: #{rnn_model_forward.1} parent=0
    _
  %s14 = ssub.s32 1, %s12
  %s15 = scalar_select 0, %s14, %s12
  $region1: #{rnn_model_forward.1} parent=0
    #allocation3 [shape = 'u8[2048]{0}', space=vmem, size = 0x800, scoped, tag = 'input window, operand 1, single buffered']
    #allocation4 [shape = 's32[1]{0}', space=sflag, size = 0x4, scoped, tag = 'scoped memory for rnn_model_forward.1']
    #allocation5 [shape = 'u8[512]{0}', space=vmem, size = 0x400, scoped, tag = 'input window, operand 3, single buffered']
    #allocation6 [shape = 's32[1]{0}', space=sflag, size = 0x4, scoped, tag = 'scoped memory for rnn_model_forward.1']
    #allocation7 [shape = 'u8[512]{0}', space=vmem, size = 0x400, scoped, tag = 'input window, operand 6, single buffered']
    #allocation8 [shape = 'u8[512]{0}', space=vmem, size = 0x400, scoped, tag = 'input window, operand 8, single buffered']
    #allocation9 [shape = 's32[1]{0}', space=sflag, size = 0x4, scoped, tag = 'scoped memory for rnn_model_forward.1']
    %16 = vsyncpa [#allocation4], 0
    %17 = vsyncpa [#allocation6], 0
    %18 = vsyncpa [#allocation9], 0
    // Predicated region
    $region2: #{rnn_model_forward.1} parent=1 // pred_check
      _
    $region3: #{rnn_model_forward.1} parent=1 // pred_check_branch
      %20 = sbr.rel (0) target = $region5
    $region4: #{rnn_model_forward.1} parent=1 // pred_region
      _
    $region5: #{rnn_model_forward.1} parent=1 // pred_fallthru
      _
    // Predicated region
    $region6: #{rnn_model_forward.1} parent=1 // pred_check
      _
    $region7: #{rnn_model_forward.1} parent=1 // pred_check_branch
      %22 = sbr.rel (0) target = $region9
    $region8: #{rnn_model_forward.1} parent=1 // pred_region
      %s24 = ssub.s32 64, 64
      %25 = vsyncadd [#allocation4], %s24
      %s27 = sshll.u32 [#allocation3], 4
      %s28 = int_to_ptr.vmem [resolvable:$true] %s27
      %30 = dma.hbm_to_vmem [thread:$0]  %s1, 64, %s28, [#allocation4]
    $region9: #{rnn_model_forward.1} parent=1 // pred_fallthru
      _
    // Predicated region
    $region10: #{rnn_model_forward.1} parent=1 // pred_check
      _
    $region11: #{rnn_model_forward.1} parent=1 // pred_check_branch
      %32 = sbr.rel (0) target = $region13
    $region12: #{rnn_model_forward.1} parent=1 // pred_region
      _
    $region13: #{rnn_model_forward.1} parent=1 // pred_fallthru
      _
    // Predicated region
    $region14: #{rnn_model_forward.1} parent=1 // pred_check
      _
    $region15: #{rnn_model_forward.1} parent=1 // pred_check_branch
      %34 = sbr.rel (0) target = $region17
    $region16: #{rnn_model_forward.1} parent=1 // pred_region
      %s36 = ssub.s32 16, 16
      %37 = vsyncadd [#allocation6], %s36
      %s39 = sshll.u32 [#allocation5], 4
      %s40 = int_to_ptr.vmem [resolvable:$true] %s39
      %42 = dma.hbm_to_vmem [thread:$0]  %s3, 16, %s40, [#allocation6]
    $region17: #{rnn_model_forward.1} parent=1 // pred_fallthru
      _
    // Predicated region
    $region18: #{rnn_model_forward.1} parent=1 // pred_check
      _
    $region19: #{rnn_model_forward.1} parent=1 // pred_check_branch
      %44 = sbr.rel (0) target = $region21
    $region20: #{rnn_model_forward.1} parent=1 // pred_region
      _
    $region21: #{rnn_model_forward.1} parent=1 // pred_fallthru
      _
    // Predicated region
    $region22: #{rnn_model_forward.1} parent=1 // pred_check
      _
    $region23: #{rnn_model_forward.1} parent=1 // pred_check_branch
      %46 = sbr.rel (0) target = $region25
    $region24: #{rnn_model_forward.1} parent=1 // pred_region
      _
    $region25: #{rnn_model_forward.1} parent=1 // pred_fallthru
      _
    // Predicated region
    $region26: #{rnn_model_forward.1} parent=1 // pred_check
      _
    $region27: #{rnn_model_forward.1} parent=1 // pred_check_branch
      %48 = sbr.rel (0) target = $region29
    $region28: #{rnn_model_forward.1} parent=1 // pred_region
      %s50 = ssub.s32 16, 16
      %51 = vsyncadd [#allocation6], %s50
      %s53 = sshll.u32 [#allocation7], 4
      %s54 = int_to_ptr.vmem [resolvable:$true] %s53
      %56 = dma.hbm_to_vmem [thread:$0]  %s6, 16, %s54, [#allocation6]
    $region29: #{rnn_model_forward.1} parent=1 // pred_fallthru
      _
    // Predicated region
    $region30: #{rnn_model_forward.1} parent=1 // pred_check
      _
    $region31: #{rnn_model_forward.1} parent=1 // pred_check_branch
      %58 = sbr.rel (0) target = $region33
    $region32: #{rnn_model_forward.1} parent=1 // pred_region
      _
    $region33: #{rnn_model_forward.1} parent=1 // pred_fallthru
      _
    // Predicated region
    $region34: #{rnn_model_forward.1} parent=1 // pred_check
      _
    $region35: #{rnn_model_forward.1} parent=1 // pred_check_branch
      %60 = sbr.rel (0) target = $region37
    $region36: #{rnn_model_forward.1} parent=1 // pred_region
      %s62 = ssub.s32 16, 16
      %63 = vsyncadd [#allocation9], %s62
      %s65 = sshll.u32 [#allocation8], 4
      %s66 = int_to_ptr.vmem [resolvable:$true] %s65
      %68 = dma.hbm_to_vmem [thread:$0]  %s8, 16, %s66, [#allocation9]
    $region37: #{rnn_model_forward.1} parent=1 // pred_fallthru
      _
    // Predicated region
    $region38: #{rnn_model_forward.1} parent=1 // pred_check
      _
    $region39: #{rnn_model_forward.1} parent=1 // pred_check_branch
      %70 = sbr.rel (0) target = $region41
    $region40: #{rnn_model_forward.1} parent=1 // pred_region
      _
    $region41: #{rnn_model_forward.1} parent=1 // pred_fallthru
      _
    // Predicated region
    $region42: #{rnn_model_forward.1} parent=1 // pred_check
      _
    $region43: #{rnn_model_forward.1} parent=1 // pred_check_branch
      %72 = sbr.rel (0) target = $region45
    $region44: #{rnn_model_forward.1} parent=1 // pred_region
      _
    $region45: #{rnn_model_forward.1} parent=1 // pred_fallthru
      _
    // Predicated region
    $region46: #{rnn_model_forward.1} parent=1 // pred_check
      _
    $region47: #{rnn_model_forward.1} parent=1 // pred_check_branch
      %74 = sbr.rel (0) target = $region49
    $region48: #{rnn_model_forward.1} parent=1 // pred_region
      %75 = dma.done [#allocation4], 64
    $region49: #{rnn_model_forward.1} parent=1 // pred_fallthru
      _
    // Predicated region
    $region50: #{rnn_model_forward.1} parent=1 // pred_check
      _
    $region51: #{rnn_model_forward.1} parent=1 // pred_check_branch
      %77 = sbr.rel (0) target = $region53
    $region52: #{rnn_model_forward.1} parent=1 // pred_region
      %78 = dma.done [#allocation6], 16
    $region53: #{rnn_model_forward.1} parent=1 // pred_fallthru
      _
    // Predicated region
    $region54: #{rnn_model_forward.1} parent=1 // pred_check
      _
    $region55: #{rnn_model_forward.1} parent=1 // pred_check_branch
      %80 = sbr.rel (0) target = $region57
    $region56: #{rnn_model_forward.1} parent=1 // pred_region
      %81 = dma.done [#allocation6], 16
    $region57: #{rnn_model_forward.1} parent=1 // pred_fallthru
      _
    // Predicated region
    $region58: #{rnn_model_forward.1} parent=1 // pred_check
      _
    $region59: #{rnn_model_forward.1} parent=1 // pred_check_branch
      %83 = sbr.rel (0) target = $region61
    $region60: #{rnn_model_forward.1} parent=1 // pred_region
      %84 = dma.done [#allocation9], 16
    $region61: #{rnn_model_forward.1} parent=1 // pred_fallthru
      _
    %v85 = vld [vmem:[%s0] sm:$0x3]
    %s86 = scalar_lea.vmem %s0, 2
    %v87 = vld [vmem:[%s86] sm:$0x3]
    %s88 = scalar_lea.vmem %s0, 4
    %v89 = vld [vmem:[%s88] sm:$0x3]
    %s90 = scalar_lea.vmem %s0, 6
    %v91 = vld [vmem:[%s90] sm:$0x3]
    %s92 = scalar_lea.vmem %s0, 8
    %v93 = vld [vmem:[%s92] sm:$0x3]
    %s94 = scalar_lea.vmem %s0, 10
    %v95 = vld [vmem:[%s94] sm:$0x3]
    %s96 = scalar_lea.vmem %s0, 12
    %v97 = vld [vmem:[%s96] sm:$0x3]
    %s98 = scalar_lea.vmem %s0, 14
    %v99 = vld [vmem:[%s98] sm:$0x3]
    %v100 = vld [vmem:[#allocation3] sm:$0xf]
    %v101 = vld [vmem:[%s2] sm:$0xff]
    %v102 = vld [vmem:[%s2 + $0x8] sm:$0xff]
    %v103 = vld [vmem:[%s2 + $0x10] sm:$0xff]
    %v104 = vld [vmem:[%s2 + $0x18] sm:$0xff]
    %v105 = vld [vmem:[#allocation5] sm:$0x1]
    %v107 = vlaneseq
    %v108 = vshrl.u32 %v107, 7
    %v109 = vsub.s32 0, %v108
    %v110 = vrot.slane %v105, %v109
    %vm112 = vcmask 31744
    %v114 = vsel %vm112, %v85, 0
    %vm116 = vcmask 1043456
    %v118 = vsel %vm116, %v100, 0
    %120 = vmatprep.subr.mxu0 0.0
    %121 = vmatpush1.msra.mxu0 0.0
    %122 = vmatprep.subr.mxu0 0.0
    %123 = vmatpush1.msra.mxu0 0.0
    %124 = vmatprep.subr.mxu0 0.0
    %125 = vmatpush1.msra.mxu0 0.0
    %126 = vmatprep.subr.mxu0 0.0
    %127 = vmatpush1.msra.mxu0 0.0
    %128 = vmatprep.subr.mxu0 0.0
    %129 = vmatpush1.msra.mxu0 0.0
    %130 = vmatprep.subr.mxu0 0.0
    %131 = vmatpush1.msra.mxu0 0.0
    %132 = vmatprep.subr.mxu0 0.0
    %133 = vmatpush1.msra.mxu0 0.0
    %134 = vmatprep.subr.mxu0 0.0
    %135 = vmatpush1.msra.mxu0 0.0
    %136 = vmatprep.subr.mxu0 0.0
    %137 = vmatpush1.msra.mxu0 0.0
    %138 = vmatprep.subr.mxu0 0.0
    %139 = vmatpush1.msra.mxu0 0.0
    %140 = vmatprep.subr.mxu0 0.0
    %141 = vmatpush1.msra.mxu0 0.0
    %142 = vmatprep.subr.mxu0 0.0
    %143 = vmatpush1.msra.mxu0 0.0
    %144 = vmatprep.subr.mxu0 0.0
    %145 = vmatpush1.msra.mxu0 0.0
    %146 = vmatprep.subr.mxu0 0.0
    %147 = vmatpush1.msra.mxu0 0.0
    %148 = vmatprep.subr.mxu0 0.0
    %149 = vmatpush1.msra.mxu0 0.0
    %150 = vmatprep.subr.mxu0 0.0
    %151 = vmatpush1.msra.mxu0 %v118
    %152 = vmatprep.subr.mxu0 0.0
    %153 = vmatpush2.msra.mxu0 0.0
    %154 = vmatprep.subr.mxu0 0.0
    %155 = vmatpush2.msra.mxu0 0.0
    %156 = vmatprep.subr.mxu0 0.0
    %157 = vmatpush2.msra.mxu0 0.0
    %158 = vmatprep.subr.mxu0 0.0
    %159 = vmatpush2.msra.mxu0 0.0
    %160 = vmatprep.subr.mxu0 0.0
    %161 = vmatpush2.msra.mxu0 0.0
    %162 = vmatprep.subr.mxu0 0.0
    %163 = vmatpush2.msra.mxu0 0.0
    %164 = vmatprep.subr.mxu0 0.0
    %165 = vmatpush2.msra.mxu0 0.0
    %166 = vmatprep.subr.mxu0 0.0
    %167 = vmatpush2.msra.mxu0 0.0
    %168 = vmatprep.subr.mxu0 0.0
    %169 = vmatpush2.msra.mxu0 0.0
    %170 = vmatprep.subr.mxu0 0.0
    %171 = vmatpush2.msra.mxu0 0.0
    %172 = vmatprep.subr.mxu0 0.0
    %173 = vmatpush2.msra.mxu0 0.0
    %174 = vmatprep.subr.mxu0 0.0
    %175 = vmatpush2.msra.mxu0 0.0
    %176 = vmatprep.subr.mxu0 0.0
    %177 = vmatpush2.msra.mxu0 0.0
    %178 = vmatprep.subr.mxu0 0.0
    %179 = vmatpush2.msra.mxu0 0.0
    %180 = vmatprep.subr.mxu0 0.0
    %181 = vmatpush2.msra.mxu0 0.0
    %182 = vmatprep.subr.mxu0 0.0
    %183 = vmatpush2.msra.mxu0 0.0
    %184 = vmatprep.mubr.f32.mxu0 0.0
    %185 = vmatmul.mubr.f32.gmra.mxu0 %v114
    %v186 = vpop.f32.mrf.mxu0
    %v187 = vadd.f32 %v110, %v186
    %v188 = vpop.f32.mrf.mxu0
    %189 = vdwg.mxu0
    %v191 = vsel %vm112, %v87, 0
    %193 = vmatprep.subr.mxu0 0.0
    %194 = vmatpush1.msra.mxu0 0.0
    %195 = vmatprep.subr.mxu0 0.0
    %196 = vmatpush1.msra.mxu0 0.0
    %197 = vmatprep.subr.mxu0 0.0
    %198 = vmatpush1.msra.mxu0 0.0
    %199 = vmatprep.subr.mxu0 0.0
    %200 = vmatpush1.msra.mxu0 0.0
    %201 = vmatprep.subr.mxu0 0.0
    %202 = vmatpush1.msra.mxu0 0.0
    %203 = vmatprep.subr.mxu0 0.0
    %204 = vmatpush1.msra.mxu0 0.0
    %205 = vmatprep.subr.mxu0 0.0
    %206 = vmatpush1.msra.mxu0 0.0
    %207 = vmatprep.subr.mxu0 0.0
    %208 = vmatpush1.msra.mxu0 0.0
    %209 = vmatprep.subr.mxu0 0.0
    %210 = vmatpush1.msra.mxu0 0.0
    %211 = vmatprep.subr.mxu0 0.0
    %212 = vmatpush1.msra.mxu0 0.0
    %213 = vmatprep.subr.mxu0 0.0
    %214 = vmatpush1.msra.mxu0 0.0
    %215 = vmatprep.subr.mxu0 0.0
    %216 = vmatpush1.msra.mxu0 0.0
    %217 = vmatprep.subr.mxu0 0.0
    %218 = vmatpush1.msra.mxu0 0.0
    %219 = vmatprep.subr.mxu0 0.0
    %220 = vmatpush1.msra.mxu0 0.0
    %221 = vmatprep.subr.mxu0 0.0
    %222 = vmatpush1.msra.mxu0 0.0
    %223 = vmatprep.subr.mxu0 0.0
    %224 = vmatpush1.msra.mxu0 %v118
    %225 = vmatprep.subr.mxu0 0.0
    %226 = vmatpush2.msra.mxu0 0.0
    %227 = vmatprep.subr.mxu0 0.0
    %228 = vmatpush2.msra.mxu0 0.0
    %229 = vmatprep.subr.mxu0 0.0
    %230 = vmatpush2.msra.mxu0 0.0
    %231 = vmatprep.subr.mxu0 0.0
    %232 = vmatpush2.msra.mxu0 0.0
    %233 = vmatprep.subr.mxu0 0.0
    %234 = vmatpush2.msra.mxu0 0.0
    %235 = vmatprep.subr.mxu0 0.0
    %236 = vmatpush2.msra.mxu0 0.0
    %237 = vmatprep.subr.mxu0 0.0
    %238 = vmatpush2.msra.mxu0 0.0
    %239 = vmatprep.subr.mxu0 0.0
    %240 = vmatpush2.msra.mxu0 0.0
    %241 = vmatprep.subr.mxu0 0.0
    %242 = vmatpush2.msra.mxu0 0.0
    %243 = vmatprep.subr.mxu0 0.0
    %244 = vmatpush2.msra.mxu0 0.0
    %245 = vmatprep.subr.mxu0 0.0
    %246 = vmatpush2.msra.mxu0 0.0
    %247 = vmatprep.subr.mxu0 0.0
    %248 = vmatpush2.msra.mxu0 0.0
    %249 = vmatprep.subr.mxu0 0.0
    %250 = vmatpush2.msra.mxu0 0.0
    %251 = vmatprep.subr.mxu0 0.0
    %252 = vmatpush2.msra.mxu0 0.0
    %253 = vmatprep.subr.mxu0 0.0
    %254 = vmatpush2.msra.mxu0 0.0
    %255 = vmatprep.subr.mxu0 0.0
    %256 = vmatpush2.msra.mxu0 0.0
    %257 = vmatprep.mubr.f32.mxu0 0.0
    %258 = vmatmul.mubr.f32.gmra.mxu0 %v191
    %v259 = vpop.f32.mrf.mxu0
    %v260 = vadd.f32 %v110, %v259
    %v261 = vpop.f32.mrf.mxu0
    %262 = vdwg.mxu0
    %v264 = vsel %vm112, %v89, 0
    %266 = vmatprep.subr.mxu0 0.0
    %267 = vmatpush1.msra.mxu0 0.0
    %268 = vmatprep.subr.mxu0 0.0
    %269 = vmatpush1.msra.mxu0 0.0
    %270 = vmatprep.subr.mxu0 0.0
    %271 = vmatpush1.msra.mxu0 0.0
    %272 = vmatprep.subr.mxu0 0.0
    %273 = vmatpush1.msra.mxu0 0.0
    %274 = vmatprep.subr.mxu0 0.0
    %275 = vmatpush1.msra.mxu0 0.0
    %276 = vmatprep.subr.mxu0 0.0
    %277 = vmatpush1.msra.mxu0 0.0
    %278 = vmatprep.subr.mxu0 0.0
    %279 = vmatpush1.msra.mxu0 0.0
    %280 = vmatprep.subr.mxu0 0.0
    %281 = vmatpush1.msra.mxu0 0.0
    %282 = vmatprep.subr.mxu0 0.0
    %283 = vmatpush1.msra.mxu0 0.0
    %284 = vmatprep.subr.mxu0 0.0
    %285 = vmatpush1.msra.mxu0 0.0
    %286 = vmatprep.subr.mxu0 0.0
    %287 = vmatpush1.msra.mxu0 0.0
    %288 = vmatprep.subr.mxu0 0.0
    %289 = vmatpush1.msra.mxu0 0.0
    %290 = vmatprep.subr.mxu0 0.0
    %291 = vmatpush1.msra.mxu0 0.0
    %292 = vmatprep.subr.mxu0 0.0
    %293 = vmatpush1.msra.mxu0 0.0
    %294 = vmatprep.subr.mxu0 0.0
    %295 = vmatpush1.msra.mxu0 0.0
    %296 = vmatprep.subr.mxu0 0.0
    %297 = vmatpush1.msra.mxu0 %v118
    %298 = vmatprep.subr.mxu0 0.0
    %299 = vmatpush2.msra.mxu0 0.0
    %300 = vmatprep.subr.mxu0 0.0
    %301 = vmatpush2.msra.mxu0 0.0
    %302 = vmatprep.subr.mxu0 0.0
    %303 = vmatpush2.msra.mxu0 0.0
    %304 = vmatprep.subr.mxu0 0.0
    %305 = vmatpush2.msra.mxu0 0.0
    %306 = vmatprep.subr.mxu0 0.0
    %307 = vmatpush2.msra.mxu0 0.0
    %308 = vmatprep.subr.mxu0 0.0
    %309 = vmatpush2.msra.mxu0 0.0
    %310 = vmatprep.subr.mxu0 0.0
    %311 = vmatpush2.msra.mxu0 0.0
    %312 = vmatprep.subr.mxu0 0.0
    %313 = vmatpush2.msra.mxu0 0.0
    %314 = vmatprep.subr.mxu0 0.0
    %315 = vmatpush2.msra.mxu0 0.0
    %316 = vmatprep.subr.mxu0 0.0
    %317 = vmatpush2.msra.mxu0 0.0
    %318 = vmatprep.subr.mxu0 0.0
    %319 = vmatpush2.msra.mxu0 0.0
    %320 = vmatprep.subr.mxu0 0.0
    %321 = vmatpush2.msra.mxu0 0.0
    %322 = vmatprep.subr.mxu0 0.0
    %323 = vmatpush2.msra.mxu0 0.0
    %324 = vmatprep.subr.mxu0 0.0
    %325 = vmatpush2.msra.mxu0 0.0
    %326 = vmatprep.subr.mxu0 0.0
    %327 = vmatpush2.msra.mxu0 0.0
    %328 = vmatprep.subr.mxu0 0.0
    %329 = vmatpush2.msra.mxu0 0.0
    %330 = vmatprep.mubr.f32.mxu0 0.0
    %331 = vmatmul.mubr.f32.gmra.mxu0 %v264
    %v332 = vpop.f32.mrf.mxu0
    %v333 = vadd.f32 %v110, %v332
    %v334 = vpop.f32.mrf.mxu0
    %335 = vdwg.mxu0
    %v337 = vsel %vm112, %v91, 0
    %339 = vmatprep.subr.mxu0 0.0
    %340 = vmatpush1.msra.mxu0 0.0
    %341 = vmatprep.subr.mxu0 0.0
    %342 = vmatpush1.msra.mxu0 0.0
    %343 = vmatprep.subr.mxu0 0.0
    %344 = vmatpush1.msra.mxu0 0.0
    %345 = vmatprep.subr.mxu0 0.0
    %346 = vmatpush1.msra.mxu0 0.0
    %347 = vmatprep.subr.mxu0 0.0
    %348 = vmatpush1.msra.mxu0 0.0
    %349 = vmatprep.subr.mxu0 0.0
    %350 = vmatpush1.msra.mxu0 0.0
    %351 = vmatprep.subr.mxu0 0.0
    %352 = vmatpush1.msra.mxu0 0.0
    %353 = vmatprep.subr.mxu0 0.0
    %354 = vmatpush1.msra.mxu0 0.0
    %355 = vmatprep.subr.mxu0 0.0
    %356 = vmatpush1.msra.mxu0 0.0
    %357 = vmatprep.subr.mxu0 0.0
    %358 = vmatpush1.msra.mxu0 0.0
    %359 = vmatprep.subr.mxu0 0.0
    %360 = vmatpush1.msra.mxu0 0.0
    %361 = vmatprep.subr.mxu0 0.0
    %362 = vmatpush1.msra.mxu0 0.0
    %363 = vmatprep.subr.mxu0 0.0
    %364 = vmatpush1.msra.mxu0 0.0
    %365 = vmatprep.subr.mxu0 0.0
    %366 = vmatpush1.msra.mxu0 0.0
    %367 = vmatprep.subr.mxu0 0.0
    %368 = vmatpush1.msra.mxu0 0.0
    %369 = vmatprep.subr.mxu0 0.0
    %370 = vmatpush1.msra.mxu0 %v118
    %371 = vmatprep.subr.mxu0 0.0
    %372 = vmatpush2.msra.mxu0 0.0
    %373 = vmatprep.subr.mxu0 0.0
    %374 = vmatpush2.msra.mxu0 0.0
    %375 = vmatprep.subr.mxu0 0.0
    %376 = vmatpush2.msra.mxu0 0.0
    %377 = vmatprep.subr.mxu0 0.0
    %378 = vmatpush2.msra.mxu0 0.0
    %379 = vmatprep.subr.mxu0 0.0
    %380 = vmatpush2.msra.mxu0 0.0
    %381 = vmatprep.subr.mxu0 0.0
    %382 = vmatpush2.msra.mxu0 0.0
    %383 = vmatprep.subr.mxu0 0.0
    %384 = vmatpush2.msra.mxu0 0.0
    %385 = vmatprep.subr.mxu0 0.0
    %386 = vmatpush2.msra.mxu0 0.0
    %387 = vmatprep.subr.mxu0 0.0
    %388 = vmatpush2.msra.mxu0 0.0
    %389 = vmatprep.subr.mxu0 0.0
    %390 = vmatpush2.msra.mxu0 0.0
    %391 = vmatprep.subr.mxu0 0.0
    %392 = vmatpush2.msra.mxu0 0.0
    %393 = vmatprep.subr.mxu0 0.0
    %394 = vmatpush2.msra.mxu0 0.0
    %395 = vmatprep.subr.mxu0 0.0
    %396 = vmatpush2.msra.mxu0 0.0
    %397 = vmatprep.subr.mxu0 0.0
    %398 = vmatpush2.msra.mxu0 0.0
    %399 = vmatprep.subr.mxu0 0.0
    %400 = vmatpush2.msra.mxu0 0.0
    %401 = vmatprep.subr.mxu0 0.0
    %402 = vmatpush2.msra.mxu0 0.0
    %403 = vmatprep.mubr.f32.mxu0 0.0
    %404 = vmatmul.mubr.f32.gmra.mxu0 %v337
    %v405 = vpop.f32.mrf.mxu0
    %v406 = vadd.f32 %v110, %v405
    %v407 = vpop.f32.mrf.mxu0
    %408 = vdwg.mxu0
    %v410 = vsel %vm112, %v93, 0
    %412 = vmatprep.subr.mxu0 0.0
    %413 = vmatpush1.msra.mxu0 0.0
    %414 = vmatprep.subr.mxu0 0.0
    %415 = vmatpush1.msra.mxu0 0.0
    %416 = vmatprep.subr.mxu0 0.0
    %417 = vmatpush1.msra.mxu0 0.0
    %418 = vmatprep.subr.mxu0 0.0
    %419 = vmatpush1.msra.mxu0 0.0
    %420 = vmatprep.subr.mxu0 0.0
    %421 = vmatpush1.msra.mxu0 0.0
    %422 = vmatprep.subr.mxu0 0.0
    %423 = vmatpush1.msra.mxu0 0.0
    %424 = vmatprep.subr.mxu0 0.0
    %425 = vmatpush1.msra.mxu0 0.0
    %426 = vmatprep.subr.mxu0 0.0
    %427 = vmatpush1.msra.mxu0 0.0
    %428 = vmatprep.subr.mxu0 0.0
    %429 = vmatpush1.msra.mxu0 0.0
    %430 = vmatprep.subr.mxu0 0.0
    %431 = vmatpush1.msra.mxu0 0.0
    %432 = vmatprep.subr.mxu0 0.0
    %433 = vmatpush1.msra.mxu0 0.0
    %434 = vmatprep.subr.mxu0 0.0
    %435 = vmatpush1.msra.mxu0 0.0
    %436 = vmatprep.subr.mxu0 0.0
    %437 = vmatpush1.msra.mxu0 0.0
    %438 = vmatprep.subr.mxu0 0.0
    %439 = vmatpush1.msra.mxu0 0.0
    %440 = vmatprep.subr.mxu0 0.0
    %441 = vmatpush1.msra.mxu0 0.0
    %442 = vmatprep.subr.mxu0 0.0
    %443 = vmatpush1.msra.mxu0 %v118
    %444 = vmatprep.subr.mxu0 0.0
    %445 = vmatpush2.msra.mxu0 0.0
    %446 = vmatprep.subr.mxu0 0.0
    %447 = vmatpush2.msra.mxu0 0.0
    %448 = vmatprep.subr.mxu0 0.0
    %449 = vmatpush2.msra.mxu0 0.0
    %450 = vmatprep.subr.mxu0 0.0
    %451 = vmatpush2.msra.mxu0 0.0
    %452 = vmatprep.subr.mxu0 0.0
    %453 = vmatpush2.msra.mxu0 0.0
    %454 = vmatprep.subr.mxu0 0.0
    %455 = vmatpush2.msra.mxu0 0.0
    %456 = vmatprep.subr.mxu0 0.0
    %457 = vmatpush2.msra.mxu0 0.0
    %458 = vmatprep.subr.mxu0 0.0
    %459 = vmatpush2.msra.mxu0 0.0
    %460 = vmatprep.subr.mxu0 0.0
    %461 = vmatpush2.msra.mxu0 0.0
    %462 = vmatprep.subr.mxu0 0.0
    %463 = vmatpush2.msra.mxu0 0.0
    %464 = vmatprep.subr.mxu0 0.0
    %465 = vmatpush2.msra.mxu0 0.0
    %466 = vmatprep.subr.mxu0 0.0
    %467 = vmatpush2.msra.mxu0 0.0
    %468 = vmatprep.subr.mxu0 0.0
    %469 = vmatpush2.msra.mxu0 0.0
    %470 = vmatprep.subr.mxu0 0.0
    %471 = vmatpush2.msra.mxu0 0.0
    %472 = vmatprep.subr.mxu0 0.0
    %473 = vmatpush2.msra.mxu0 0.0
    %474 = vmatprep.subr.mxu0 0.0
    %475 = vmatpush2.msra.mxu0 0.0
    %476 = vmatprep.mubr.f32.mxu0 0.0
    %477 = vmatmul.mubr.f32.gmra.mxu0 %v410
    %v478 = vpop.f32.mrf.mxu0
    %v479 = vadd.f32 %v110, %v478
    %v480 = vpop.f32.mrf.mxu0
    %481 = vdwg.mxu0
    %v483 = vsel %vm112, %v95, 0
    %485 = vmatprep.subr.mxu0 0.0
    %486 = vmatpush1.msra.mxu0 0.0
    %487 = vmatprep.subr.mxu0 0.0
    %488 = vmatpush1.msra.mxu0 0.0
    %489 = vmatprep.subr.mxu0 0.0
    %490 = vmatpush1.msra.mxu0 0.0
    %491 = vmatprep.subr.mxu0 0.0
    %492 = vmatpush1.msra.mxu0 0.0
    %493 = vmatprep.subr.mxu0 0.0
    %494 = vmatpush1.msra.mxu0 0.0
    %495 = vmatprep.subr.mxu0 0.0
    %496 = vmatpush1.msra.mxu0 0.0
    %497 = vmatprep.subr.mxu0 0.0
    %498 = vmatpush1.msra.mxu0 0.0
    %499 = vmatprep.subr.mxu0 0.0
    %500 = vmatpush1.msra.mxu0 0.0
    %501 = vmatprep.subr.mxu0 0.0
    %502 = vmatpush1.msra.mxu0 0.0
    %503 = vmatprep.subr.mxu0 0.0
    %504 = vmatpush1.msra.mxu0 0.0
    %505 = vmatprep.subr.mxu0 0.0
    %506 = vmatpush1.msra.mxu0 0.0
    %507 = vmatprep.subr.mxu0 0.0
    %508 = vmatpush1.msra.mxu0 0.0
    %509 = vmatprep.subr.mxu0 0.0
    %510 = vmatpush1.msra.mxu0 0.0
    %511 = vmatprep.subr.mxu0 0.0
    %512 = vmatpush1.msra.mxu0 0.0
    %513 = vmatprep.subr.mxu0 0.0
    %514 = vmatpush1.msra.mxu0 0.0
    %515 = vmatprep.subr.mxu0 0.0
    %516 = vmatpush1.msra.mxu0 %v118
    %517 = vmatprep.subr.mxu0 0.0
    %518 = vmatpush2.msra.mxu0 0.0
    %519 = vmatprep.subr.mxu0 0.0
    %520 = vmatpush2.msra.mxu0 0.0
    %521 = vmatprep.subr.mxu0 0.0
    %522 = vmatpush2.msra.mxu0 0.0
    %523 = vmatprep.subr.mxu0 0.0
    %524 = vmatpush2.msra.mxu0 0.0
    %525 = vmatprep.subr.mxu0 0.0
    %526 = vmatpush2.msra.mxu0 0.0
    %527 = vmatprep.subr.mxu0 0.0
    %528 = vmatpush2.msra.mxu0 0.0
    %529 = vmatprep.subr.mxu0 0.0
    %530 = vmatpush2.msra.mxu0 0.0
    %531 = vmatprep.subr.mxu0 0.0
    %532 = vmatpush2.msra.mxu0 0.0
    %533 = vmatprep.subr.mxu0 0.0
    %534 = vmatpush2.msra.mxu0 0.0
    %535 = vmatprep.subr.mxu0 0.0
    %536 = vmatpush2.msra.mxu0 0.0
    %537 = vmatprep.subr.mxu0 0.0
    %538 = vmatpush2.msra.mxu0 0.0
    %539 = vmatprep.subr.mxu0 0.0
    %540 = vmatpush2.msra.mxu0 0.0
    %541 = vmatprep.subr.mxu0 0.0
    %542 = vmatpush2.msra.mxu0 0.0
    %543 = vmatprep.subr.mxu0 0.0
    %544 = vmatpush2.msra.mxu0 0.0
    %545 = vmatprep.subr.mxu0 0.0
    %546 = vmatpush2.msra.mxu0 0.0
    %547 = vmatprep.subr.mxu0 0.0
    %548 = vmatpush2.msra.mxu0 0.0
    %549 = vmatprep.mubr.f32.mxu0 0.0
    %550 = vmatmul.mubr.f32.gmra.mxu0 %v483
    %v551 = vpop.f32.mrf.mxu0
    %v552 = vadd.f32 %v110, %v551
    %v553 = vpop.f32.mrf.mxu0
    %554 = vdwg.mxu0
    %v556 = vsel %vm112, %v97, 0
    %558 = vmatprep.subr.mxu0 0.0
    %559 = vmatpush1.msra.mxu0 0.0
    %560 = vmatprep.subr.mxu0 0.0
    %561 = vmatpush1.msra.mxu0 0.0
    %562 = vmatprep.subr.mxu0 0.0
    %563 = vmatpush1.msra.mxu0 0.0
    %564 = vmatprep.subr.mxu0 0.0
    %565 = vmatpush1.msra.mxu0 0.0
    %566 = vmatprep.subr.mxu0 0.0
    %567 = vmatpush1.msra.mxu0 0.0
    %568 = vmatprep.subr.mxu0 0.0
    %569 = vmatpush1.msra.mxu0 0.0
    %570 = vmatprep.subr.mxu0 0.0
    %571 = vmatpush1.msra.mxu0 0.0
    %572 = vmatprep.subr.mxu0 0.0
    %573 = vmatpush1.msra.mxu0 0.0
    %574 = vmatprep.subr.mxu0 0.0
    %575 = vmatpush1.msra.mxu0 0.0
    %576 = vmatprep.subr.mxu0 0.0
    %577 = vmatpush1.msra.mxu0 0.0
    %578 = vmatprep.subr.mxu0 0.0
    %579 = vmatpush1.msra.mxu0 0.0
    %580 = vmatprep.subr.mxu0 0.0
    %581 = vmatpush1.msra.mxu0 0.0
    %582 = vmatprep.subr.mxu0 0.0
    %583 = vmatpush1.msra.mxu0 0.0
    %584 = vmatprep.subr.mxu0 0.0
    %585 = vmatpush1.msra.mxu0 0.0
    %586 = vmatprep.subr.mxu0 0.0
    %587 = vmatpush1.msra.mxu0 0.0
    %588 = vmatprep.subr.mxu0 0.0
    %589 = vmatpush1.msra.mxu0 %v118
    %590 = vmatprep.subr.mxu0 0.0
    %591 = vmatpush2.msra.mxu0 0.0
    %592 = vmatprep.subr.mxu0 0.0
    %593 = vmatpush2.msra.mxu0 0.0
    %594 = vmatprep.subr.mxu0 0.0
    %595 = vmatpush2.msra.mxu0 0.0
    %596 = vmatprep.subr.mxu0 0.0
    %597 = vmatpush2.msra.mxu0 0.0
    %598 = vmatprep.subr.mxu0 0.0
    %599 = vmatpush2.msra.mxu0 0.0
    %600 = vmatprep.subr.mxu0 0.0
    %601 = vmatpush2.msra.mxu0 0.0
    %602 = vmatprep.subr.mxu0 0.0
    %603 = vmatpush2.msra.mxu0 0.0
    %604 = vmatprep.subr.mxu0 0.0
    %605 = vmatpush2.msra.mxu0 0.0
    %606 = vmatprep.subr.mxu0 0.0
    %607 = vmatpush2.msra.mxu0 0.0
    %608 = vmatprep.subr.mxu0 0.0
    %609 = vmatpush2.msra.mxu0 0.0
    %610 = vmatprep.subr.mxu0 0.0
    %611 = vmatpush2.msra.mxu0 0.0
    %612 = vmatprep.subr.mxu0 0.0
    %613 = vmatpush2.msra.mxu0 0.0
    %614 = vmatprep.subr.mxu0 0.0
    %615 = vmatpush2.msra.mxu0 0.0
    %616 = vmatprep.subr.mxu0 0.0
    %617 = vmatpush2.msra.mxu0 0.0
    %618 = vmatprep.subr.mxu0 0.0
    %619 = vmatpush2.msra.mxu0 0.0
    %620 = vmatprep.subr.mxu0 0.0
    %621 = vmatpush2.msra.mxu0 0.0
    %622 = vmatprep.mubr.f32.mxu0 0.0
    %623 = vmatmul.mubr.f32.gmra.mxu0 %v556
    %v624 = vpop.f32.mrf.mxu0
    %v625 = vadd.f32 %v110, %v624
    %v626 = vpop.f32.mrf.mxu0
    %627 = vdwg.mxu0
    %v629 = vsel %vm112, %v99, 0
    %631 = vmatprep.subr.mxu0 0.0
    %632 = vmatpush1.msra.mxu0 0.0
    %633 = vmatprep.subr.mxu0 0.0
    %634 = vmatpush1.msra.mxu0 0.0
    %635 = vmatprep.subr.mxu0 0.0
    %636 = vmatpush1.msra.mxu0 0.0
    %637 = vmatprep.subr.mxu0 0.0
    %638 = vmatpush1.msra.mxu0 0.0
    %639 = vmatprep.subr.mxu0 0.0
    %640 = vmatpush1.msra.mxu0 0.0
    %641 = vmatprep.subr.mxu0 0.0
    %642 = vmatpush1.msra.mxu0 0.0
    %643 = vmatprep.subr.mxu0 0.0
    %644 = vmatpush1.msra.mxu0 0.0
    %645 = vmatprep.subr.mxu0 0.0
    %646 = vmatpush1.msra.mxu0 0.0
    %647 = vmatprep.subr.mxu0 0.0
    %648 = vmatpush1.msra.mxu0 0.0
    %649 = vmatprep.subr.mxu0 0.0
    %650 = vmatpush1.msra.mxu0 0.0
    %651 = vmatprep.subr.mxu0 0.0
    %652 = vmatpush1.msra.mxu0 0.0
    %653 = vmatprep.subr.mxu0 0.0
    %654 = vmatpush1.msra.mxu0 0.0
    %655 = vmatprep.subr.mxu0 0.0
    %656 = vmatpush1.msra.mxu0 0.0
    %657 = vmatprep.subr.mxu0 0.0
    %658 = vmatpush1.msra.mxu0 0.0
    %659 = vmatprep.subr.mxu0 0.0
    %660 = vmatpush1.msra.mxu0 0.0
    %661 = vmatprep.subr.mxu0 0.0
    %662 = vmatpush1.msra.mxu0 %v118
    %663 = vmatprep.subr.mxu0 0.0
    %664 = vmatpush2.msra.mxu0 0.0
    %665 = vmatprep.subr.mxu0 0.0
    %666 = vmatpush2.msra.mxu0 0.0
    %667 = vmatprep.subr.mxu0 0.0
    %668 = vmatpush2.msra.mxu0 0.0
    %669 = vmatprep.subr.mxu0 0.0
    %670 = vmatpush2.msra.mxu0 0.0
    %671 = vmatprep.subr.mxu0 0.0
    %672 = vmatpush2.msra.mxu0 0.0
    %673 = vmatprep.subr.mxu0 0.0
    %674 = vmatpush2.msra.mxu0 0.0
    %675 = vmatprep.subr.mxu0 0.0
    %676 = vmatpush2.msra.mxu0 0.0
    %677 = vmatprep.subr.mxu0 0.0
    %678 = vmatpush2.msra.mxu0 0.0
    %679 = vmatprep.subr.mxu0 0.0
    %680 = vmatpush2.msra.mxu0 0.0
    %681 = vmatprep.subr.mxu0 0.0
    %682 = vmatpush2.msra.mxu0 0.0
    %683 = vmatprep.subr.mxu0 0.0
    %684 = vmatpush2.msra.mxu0 0.0
    %685 = vmatprep.subr.mxu0 0.0
    %686 = vmatpush2.msra.mxu0 0.0
    %687 = vmatprep.subr.mxu0 0.0
    %688 = vmatpush2.msra.mxu0 0.0
    %689 = vmatprep.subr.mxu0 0.0
    %690 = vmatpush2.msra.mxu0 0.0
    %691 = vmatprep.subr.mxu0 0.0
    %692 = vmatpush2.msra.mxu0 0.0
    %693 = vmatprep.subr.mxu0 0.0
    %694 = vmatpush2.msra.mxu0 0.0
    %695 = vmatprep.mubr.f32.mxu0 0.0
    %696 = vmatmul.mubr.f32.gmra.mxu0 %v629
    %v697 = vpop.f32.mrf.mxu0
    %v698 = vadd.f32 %v110, %v697
    %v699 = vpop.f32.mrf.mxu0
    %700 = vdwg.mxu0
    %vm701 = vcmask 261120
    %v703 = vsel %vm701, 0.0, 0
    %705 = vmatprep.subr.mxu0 0.0
    %706 = vmatpush1.msra.mxu0 0.0
    %707 = vmatprep.subr.mxu0 0.0
    %708 = vmatpush1.msra.mxu0 0.0
    %709 = vmatprep.subr.mxu0 0.0
    %710 = vmatpush1.msra.mxu0 0.0
    %711 = vmatprep.subr.mxu0 0.0
    %712 = vmatpush1.msra.mxu0 0.0
    %713 = vmatprep.subr.mxu0 0.0
    %714 = vmatpush1.msra.mxu0 0.0
    %715 = vmatprep.subr.mxu0 0.0
    %716 = vmatpush1.msra.mxu0 0.0
    %717 = vmatprep.subr.mxu0 0.0
    %718 = vmatpush1.msra.mxu0 0.0
    %719 = vmatprep.subr.mxu0 0.0
    %720 = vmatpush1.msra.mxu0 0.0
    %721 = vmatprep.subr.mxu0 0.0
    %722 = vmatpush1.msra.mxu0 0.0
    %723 = vmatprep.subr.mxu0 0.0
    %724 = vmatpush1.msra.mxu0 0.0
    %725 = vmatprep.subr.mxu0 0.0
    %726 = vmatpush1.msra.mxu0 0.0
    %727 = vmatprep.subr.mxu0 0.0
    %728 = vmatpush1.msra.mxu0 0.0
    %729 = vmatprep.subr.mxu0 0.0
    %730 = vmatpush1.msra.mxu0 %v104
    %731 = vmatprep.subr.mxu0 0.0
    %732 = vmatpush1.msra.mxu0 %v103
    %733 = vmatprep.subr.mxu0 0.0
    %734 = vmatpush1.msra.mxu0 %v102
    %735 = vmatprep.subr.mxu0 0.0
    %736 = vmatpush1.msra.mxu0 %v101
    %737 = vmatprep.subr.mxu0 0.0
    %738 = vmatpush2.msra.mxu0 0.0
    %739 = vmatprep.subr.mxu0 0.0
    %740 = vmatpush2.msra.mxu0 0.0
    %741 = vmatprep.subr.mxu0 0.0
    %742 = vmatpush2.msra.mxu0 0.0
    %743 = vmatprep.subr.mxu0 0.0
    %744 = vmatpush2.msra.mxu0 0.0
    %745 = vmatprep.subr.mxu0 0.0
    %746 = vmatpush2.msra.mxu0 0.0
    %747 = vmatprep.subr.mxu0 0.0
    %748 = vmatpush2.msra.mxu0 0.0
    %749 = vmatprep.subr.mxu0 0.0
    %750 = vmatpush2.msra.mxu0 0.0
    %751 = vmatprep.subr.mxu0 0.0
    %752 = vmatpush2.msra.mxu0 0.0
    %753 = vmatprep.subr.mxu0 0.0
    %754 = vmatpush2.msra.mxu0 0.0
    %755 = vmatprep.subr.mxu0 0.0
    %756 = vmatpush2.msra.mxu0 0.0
    %757 = vmatprep.subr.mxu0 0.0
    %758 = vmatpush2.msra.mxu0 0.0
    %759 = vmatprep.subr.mxu0 0.0
    %760 = vmatpush2.msra.mxu0 0.0
    %761 = vmatprep.subr.mxu0 0.0
    %762 = vmatpush2.msra.mxu0 0.0
    %763 = vmatprep.subr.mxu0 0.0
    %764 = vmatpush2.msra.mxu0 0.0
    %765 = vmatprep.subr.mxu0 0.0
    %766 = vmatpush2.msra.mxu0 0.0
    %767 = vmatprep.subr.mxu0 0.0
    %768 = vmatpush2.msra.mxu0 0.0
    %769 = vmatprep.mubr.f32.mxu0 0.0
    %770 = vmatmul.mubr.f32.gmra.mxu0 %v703
    %v771 = vpop.f32.mrf.mxu0
    %v772 = vadd.f32 0.0, %v771
    %v773 = vpop.f32.mrf.mxu0
    %774 = vdwg.mxu0
    %v775 = vadd.f32 %v187, %v772
    %v776 = vxor.u32 %v775, 2147483648
    %v777 = vmul.f32 %v776, 1.442695
    %v778 = vpow.pop %v777
    %v779 = vadd.f32 %v778, 1.0
    %v780 = vrcp.pop %v779
    %v781 = vmul.f32 1.0, %v780
    %v782 = vtanh.pop %v775
    %v783 = vmul.f32 %v781, 0.0
    %785 = vrot.lane.b32.xlu0 %v782, 64
    %v786 = vpop.permute.xlu0 %785
    %v788 = vmul.f32 %v781, %v786
    %790 = vrot.lane.b32.xlu0 %v788, 32
    %v791 = vpop.permute.xlu0 %790
    %v793 = vadd.f32 %v783, %v791
    %v794 = vtanh.pop %v793
    %796 = vrot.lane.b32.xlu0 %v794, 64
    %v797 = vpop.permute.xlu0 %796
    %v799 = vmul.f32 %v781, %v797
    %801 = vrot.lane.b32.xlu0 %v799, 32
    %v802 = vpop.permute.xlu0 %801
    %v803 = vsel %vm701, %v802, 0
    %805 = vmatprep.subr.mxu0 0.0
    %806 = vmatpush1.msra.mxu0 0.0
    %807 = vmatprep.subr.mxu0 0.0
    %808 = vmatpush1.msra.mxu0 0.0
    %809 = vmatprep.subr.mxu0 0.0
    %810 = vmatpush1.msra.mxu0 0.0
    %811 = vmatprep.subr.mxu0 0.0
    %812 = vmatpush1.msra.mxu0 0.0
    %813 = vmatprep.subr.mxu0 0.0
    %814 = vmatpush1.msra.mxu0 0.0
    %815 = vmatprep.subr.mxu0 0.0
    %816 = vmatpush1.msra.mxu0 0.0
    %817 = vmatprep.subr.mxu0 0.0
    %818 = vmatpush1.msra.mxu0 0.0
    %819 = vmatprep.subr.mxu0 0.0
    %820 = vmatpush1.msra.mxu0 0.0
    %821 = vmatprep.subr.mxu0 0.0
    %822 = vmatpush1.msra.mxu0 0.0
    %823 = vmatprep.subr.mxu0 0.0
    %824 = vmatpush1.msra.mxu0 0.0
    %825 = vmatprep.subr.mxu0 0.0
    %826 = vmatpush1.msra.mxu0 0.0
    %827 = vmatprep.subr.mxu0 0.0
    %828 = vmatpush1.msra.mxu0 0.0
    %829 = vmatprep.subr.mxu0 0.0
    %830 = vmatpush1.msra.mxu0 %v104
    %831 = vmatprep.subr.mxu0 0.0
    %832 = vmatpush1.msra.mxu0 %v103
    %833 = vmatprep.subr.mxu0 0.0
    %834 = vmatpush1.msra.mxu0 %v102
    %835 = vmatprep.subr.mxu0 0.0
    %836 = vmatpush1.msra.mxu0 %v101
    %837 = vmatprep.subr.mxu0 0.0
    %838 = vmatpush2.msra.mxu0 0.0
    %839 = vmatprep.subr.mxu0 0.0
    %840 = vmatpush2.msra.mxu0 0.0
    %841 = vmatprep.subr.mxu0 0.0
    %842 = vmatpush2.msra.mxu0 0.0
    %843 = vmatprep.subr.mxu0 0.0
    %844 = vmatpush2.msra.mxu0 0.0
    %845 = vmatprep.subr.mxu0 0.0
    %846 = vmatpush2.msra.mxu0 0.0
    %847 = vmatprep.subr.mxu0 0.0
    %848 = vmatpush2.msra.mxu0 0.0
    %849 = vmatprep.subr.mxu0 0.0
    %850 = vmatpush2.msra.mxu0 0.0
    %851 = vmatprep.subr.mxu0 0.0
    %852 = vmatpush2.msra.mxu0 0.0
    %853 = vmatprep.subr.mxu0 0.0
    %854 = vmatpush2.msra.mxu0 0.0
    %855 = vmatprep.subr.mxu0 0.0
    %856 = vmatpush2.msra.mxu0 0.0
    %857 = vmatprep.subr.mxu0 0.0
    %858 = vmatpush2.msra.mxu0 0.0
    %859 = vmatprep.subr.mxu0 0.0
    %860 = vmatpush2.msra.mxu0 0.0
    %861 = vmatprep.subr.mxu0 0.0
    %862 = vmatpush2.msra.mxu0 0.0
    %863 = vmatprep.subr.mxu0 0.0
    %864 = vmatpush2.msra.mxu0 0.0
    %865 = vmatprep.subr.mxu0 0.0
    %866 = vmatpush2.msra.mxu0 0.0
    %867 = vmatprep.subr.mxu0 0.0
    %868 = vmatpush2.msra.mxu0 0.0
    %869 = vmatprep.mubr.f32.mxu0 0.0
    %870 = vmatmul.mubr.f32.gmra.mxu0 %v803
    %v871 = vpop.f32.mrf.mxu0
    %v872 = vadd.f32 0.0, %v871
    %v873 = vpop.f32.mrf.mxu0
    %874 = vdwg.mxu0
    %v875 = vadd.f32 %v260, %v872
    %v876 = vxor.u32 %v875, 2147483648
    %v877 = vmul.f32 %v876, 1.442695
    %v878 = vpow.pop %v877
    %v879 = vadd.f32 %v878, 1.0
    %v880 = vrcp.pop %v879
    %v881 = vmul.f32 1.0, %v880
    %v882 = vtanh.pop %v875
    %v883 = vmul.f32 %v881, %v793
    %885 = vrot.lane.b32.xlu0 %v882, 64
    %v886 = vpop.permute.xlu0 %885
    %v888 = vmul.f32 %v881, %v886
    %890 = vrot.lane.b32.xlu0 %v888, 32
    %v891 = vpop.permute.xlu0 %890
    %v893 = vadd.f32 %v883, %v891
    %v894 = vtanh.pop %v893
    %896 = vrot.lane.b32.xlu0 %v894, 64
    %v897 = vpop.permute.xlu0 %896
    %v899 = vmul.f32 %v881, %v897
    %901 = vrot.lane.b32.xlu0 %v899, 32
    %v902 = vpop.permute.xlu0 %901
    %v903 = vsel %vm701, %v902, 0
    %905 = vmatprep.subr.mxu0 0.0
    %906 = vmatpush1.msra.mxu0 0.0
    %907 = vmatprep.subr.mxu0 0.0
    %908 = vmatpush1.msra.mxu0 0.0
    %909 = vmatprep.subr.mxu0 0.0
    %910 = vmatpush1.msra.mxu0 0.0
    %911 = vmatprep.subr.mxu0 0.0
    %912 = vmatpush1.msra.mxu0 0.0
    %913 = vmatprep.subr.mxu0 0.0
    %914 = vmatpush1.msra.mxu0 0.0
    %915 = vmatprep.subr.mxu0 0.0
    %916 = vmatpush1.msra.mxu0 0.0
    %917 = vmatprep.subr.mxu0 0.0
    %918 = vmatpush1.msra.mxu0 0.0
    %919 = vmatprep.subr.mxu0 0.0
    %920 = vmatpush1.msra.mxu0 0.0
    %921 = vmatprep.subr.mxu0 0.0
    %922 = vmatpush1.msra.mxu0 0.0
    %923 = vmatprep.subr.mxu0 0.0
    %924 = vmatpush1.msra.mxu0 0.0
    %925 = vmatprep.subr.mxu0 0.0
    %926 = vmatpush1.msra.mxu0 0.0
    %927 = vmatprep.subr.mxu0 0.0
    %928 = vmatpush1.msra.mxu0 0.0
    %929 = vmatprep.subr.mxu0 0.0
    %930 = vmatpush1.msra.mxu0 %v104
    %931 = vmatprep.subr.mxu0 0.0
    %932 = vmatpush1.msra.mxu0 %v103
    %933 = vmatprep.subr.mxu0 0.0
    %934 = vmatpush1.msra.mxu0 %v102
    %935 = vmatprep.subr.mxu0 0.0
    %936 = vmatpush1.msra.mxu0 %v101
    %937 = vmatprep.subr.mxu0 0.0
    %938 = vmatpush2.msra.mxu0 0.0
    %939 = vmatprep.subr.mxu0 0.0
    %940 = vmatpush2.msra.mxu0 0.0
    %941 = vmatprep.subr.mxu0 0.0
    %942 = vmatpush2.msra.mxu0 0.0
    %943 = vmatprep.subr.mxu0 0.0
    %944 = vmatpush2.msra.mxu0 0.0
    %945 = vmatprep.subr.mxu0 0.0
    %946 = vmatpush2.msra.mxu0 0.0
    %947 = vmatprep.subr.mxu0 0.0
    %948 = vmatpush2.msra.mxu0 0.0
    %949 = vmatprep.subr.mxu0 0.0
    %950 = vmatpush2.msra.mxu0 0.0
    %951 = vmatprep.subr.mxu0 0.0
    %952 = vmatpush2.msra.mxu0 0.0
    %953 = vmatprep.subr.mxu0 0.0
    %954 = vmatpush2.msra.mxu0 0.0
    %955 = vmatprep.subr.mxu0 0.0
    %956 = vmatpush2.msra.mxu0 0.0
    %957 = vmatprep.subr.mxu0 0.0
    %958 = vmatpush2.msra.mxu0 0.0
    %959 = vmatprep.subr.mxu0 0.0
    %960 = vmatpush2.msra.mxu0 0.0
    %961 = vmatprep.subr.mxu0 0.0
    %962 = vmatpush2.msra.mxu0 0.0
    %963 = vmatprep.subr.mxu0 0.0
    %964 = vmatpush2.msra.mxu0 0.0
    %965 = vmatprep.subr.mxu0 0.0
    %966 = vmatpush2.msra.mxu0 0.0
    %967 = vmatprep.subr.mxu0 0.0
    %968 = vmatpush2.msra.mxu0 0.0
    %969 = vmatprep.mubr.f32.mxu0 0.0
    %970 = vmatmul.mubr.f32.gmra.mxu0 %v903
    %v971 = vpop.f32.mrf.mxu0
    %v972 = vadd.f32 0.0, %v971
    %v973 = vpop.f32.mrf.mxu0
    %974 = vdwg.mxu0
    %v975 = vadd.f32 %v333, %v972
    %v976 = vxor.u32 %v975, 2147483648
    %v977 = vmul.f32 %v976, 1.442695
    %v978 = vpow.pop %v977
    %v979 = vadd.f32 %v978, 1.0
    %v980 = vrcp.pop %v979
    %v981 = vmul.f32 1.0, %v980
    %v982 = vtanh.pop %v975
    %v983 = vmul.f32 %v981, %v893
    %985 = vrot.lane.b32.xlu0 %v982, 64
    %v986 = vpop.permute.xlu0 %985
    %v988 = vmul.f32 %v981, %v986
    %990 = vrot.lane.b32.xlu0 %v988, 32
    %v991 = vpop.permute.xlu0 %990
    %v993 = vadd.f32 %v983, %v991
    %v994 = vtanh.pop %v993
    %996 = vrot.lane.b32.xlu0 %v994, 64
    %v997 = vpop.permute.xlu0 %996
    %v999 = vmul.f32 %v981, %v997
    %1001 = vrot.lane.b32.xlu0 %v999, 32
    %v1002 = vpop.permute.xlu0 %1001
    %v1003 = vsel %vm701, %v1002, 0
    %1005 = vmatprep.subr.mxu0 0.0
    %1006 = vmatpush1.msra.mxu0 0.0
    %1007 = vmatprep.subr.mxu0 0.0
    %1008 = vmatpush1.msra.mxu0 0.0
    %1009 = vmatprep.subr.mxu0 0.0
    %1010 = vmatpush1.msra.mxu0 0.0
    %1011 = vmatprep.subr.mxu0 0.0
    %1012 = vmatpush1.msra.mxu0 0.0
    %1013 = vmatprep.subr.mxu0 0.0
    %1014 = vmatpush1.msra.mxu0 0.0
    %1015 = vmatprep.subr.mxu0 0.0
    %1016 = vmatpush1.msra.mxu0 0.0
    %1017 = vmatprep.subr.mxu0 0.0
    %1018 = vmatpush1.msra.mxu0 0.0
    %1019 = vmatprep.subr.mxu0 0.0
    %1020 = vmatpush1.msra.mxu0 0.0
    %1021 = vmatprep.subr.mxu0 0.0
    %1022 = vmatpush1.msra.mxu0 0.0
    %1023 = vmatprep.subr.mxu0 0.0
    %1024 = vmatpush1.msra.mxu0 0.0
    %1025 = vmatprep.subr.mxu0 0.0
    %1026 = vmatpush1.msra.mxu0 0.0
    %1027 = vmatprep.subr.mxu0 0.0
    %1028 = vmatpush1.msra.mxu0 0.0
    %1029 = vmatprep.subr.mxu0 0.0
    %1030 = vmatpush1.msra.mxu0 %v104
    %1031 = vmatprep.subr.mxu0 0.0
    %1032 = vmatpush1.msra.mxu0 %v103
    %1033 = vmatprep.subr.mxu0 0.0
    %1034 = vmatpush1.msra.mxu0 %v102
    %1035 = vmatprep.subr.mxu0 0.0
    %1036 = vmatpush1.msra.mxu0 %v101
    %1037 = vmatprep.subr.mxu0 0.0
    %1038 = vmatpush2.msra.mxu0 0.0
    %1039 = vmatprep.subr.mxu0 0.0
    %1040 = vmatpush2.msra.mxu0 0.0
    %1041 = vmatprep.subr.mxu0 0.0
    %1042 = vmatpush2.msra.mxu0 0.0
    %1043 = vmatprep.subr.mxu0 0.0
    %1044 = vmatpush2.msra.mxu0 0.0
    %1045 = vmatprep.subr.mxu0 0.0
    %1046 = vmatpush2.msra.mxu0 0.0
    %1047 = vmatprep.subr.mxu0 0.0
    %1048 = vmatpush2.msra.mxu0 0.0
    %1049 = vmatprep.subr.mxu0 0.0
    %1050 = vmatpush2.msra.mxu0 0.0
    %1051 = vmatprep.subr.mxu0 0.0
    %1052 = vmatpush2.msra.mxu0 0.0
    %1053 = vmatprep.subr.mxu0 0.0
    %1054 = vmatpush2.msra.mxu0 0.0
    %1055 = vmatprep.subr.mxu0 0.0
    %1056 = vmatpush2.msra.mxu0 0.0
    %1057 = vmatprep.subr.mxu0 0.0
    %1058 = vmatpush2.msra.mxu0 0.0
    %1059 = vmatprep.subr.mxu0 0.0
    %1060 = vmatpush2.msra.mxu0 0.0
    %1061 = vmatprep.subr.mxu0 0.0
    %1062 = vmatpush2.msra.mxu0 0.0
    %1063 = vmatprep.subr.mxu0 0.0
    %1064 = vmatpush2.msra.mxu0 0.0
    %1065 = vmatprep.subr.mxu0 0.0
    %1066 = vmatpush2.msra.mxu0 0.0
    %1067 = vmatprep.subr.mxu0 0.0
    %1068 = vmatpush2.msra.mxu0 0.0
    %1069 = vmatprep.mubr.f32.mxu0 0.0
    %1070 = vmatmul.mubr.f32.gmra.mxu0 %v1003
    %v1071 = vpop.f32.mrf.mxu0
    %v1072 = vadd.f32 0.0, %v1071
    %v1073 = vpop.f32.mrf.mxu0
    %1074 = vdwg.mxu0
    %v1075 = vadd.f32 %v406, %v1072
    %v1076 = vxor.u32 %v1075, 2147483648
    %v1077 = vmul.f32 %v1076, 1.442695
    %v1078 = vpow.pop %v1077
    %v1079 = vadd.f32 %v1078, 1.0
    %v1080 = vrcp.pop %v1079
    %v1081 = vmul.f32 1.0, %v1080
    %v1082 = vtanh.pop %v1075
    %v1083 = vmul.f32 %v1081, %v993
    %1085 = vrot.lane.b32.xlu0 %v1082, 64
    %v1086 = vpop.permute.xlu0 %1085
    %v1088 = vmul.f32 %v1081, %v1086
    %1090 = vrot.lane.b32.xlu0 %v1088, 32
    %v1091 = vpop.permute.xlu0 %1090
    %v1093 = vadd.f32 %v1083, %v1091
    %v1094 = vtanh.pop %v1093
    %1096 = vrot.lane.b32.xlu0 %v1094, 64
    %v1097 = vpop.permute.xlu0 %1096
    %v1099 = vmul.f32 %v1081, %v1097
    %1101 = vrot.lane.b32.xlu0 %v1099, 32
    %v1102 = vpop.permute.xlu0 %1101
    %v1103 = vsel %vm701, %v1102, 0
    %1105 = vmatprep.subr.mxu0 0.0
    %1106 = vmatpush1.msra.mxu0 0.0
    %1107 = vmatprep.subr.mxu0 0.0
    %1108 = vmatpush1.msra.mxu0 0.0
    %1109 = vmatprep.subr.mxu0 0.0
    %1110 = vmatpush1.msra.mxu0 0.0
    %1111 = vmatprep.subr.mxu0 0.0
    %1112 = vmatpush1.msra.mxu0 0.0
    %1113 = vmatprep.subr.mxu0 0.0
    %1114 = vmatpush1.msra.mxu0 0.0
    %1115 = vmatprep.subr.mxu0 0.0
    %1116 = vmatpush1.msra.mxu0 0.0
    %1117 = vmatprep.subr.mxu0 0.0
    %1118 = vmatpush1.msra.mxu0 0.0
    %1119 = vmatprep.subr.mxu0 0.0
    %1120 = vmatpush1.msra.mxu0 0.0
    %1121 = vmatprep.subr.mxu0 0.0
    %1122 = vmatpush1.msra.mxu0 0.0
    %1123 = vmatprep.subr.mxu0 0.0
    %1124 = vmatpush1.msra.mxu0 0.0
    %1125 = vmatprep.subr.mxu0 0.0
    %1126 = vmatpush1.msra.mxu0 0.0
    %1127 = vmatprep.subr.mxu0 0.0
    %1128 = vmatpush1.msra.mxu0 0.0
    %1129 = vmatprep.subr.mxu0 0.0
    %1130 = vmatpush1.msra.mxu0 %v104
    %1131 = vmatprep.subr.mxu0 0.0
    %1132 = vmatpush1.msra.mxu0 %v103
    %1133 = vmatprep.subr.mxu0 0.0
    %1134 = vmatpush1.msra.mxu0 %v102
    %1135 = vmatprep.subr.mxu0 0.0
    %1136 = vmatpush1.msra.mxu0 %v101
    %1137 = vmatprep.subr.mxu0 0.0
    %1138 = vmatpush2.msra.mxu0 0.0
    %1139 = vmatprep.subr.mxu0 0.0
    %1140 = vmatpush2.msra.mxu0 0.0
    %1141 = vmatprep.subr.mxu0 0.0
    %1142 = vmatpush2.msra.mxu0 0.0
    %1143 = vmatprep.subr.mxu0 0.0
    %1144 = vmatpush2.msra.mxu0 0.0
    %1145 = vmatprep.subr.mxu0 0.0
    %1146 = vmatpush2.msra.mxu0 0.0
    %1147 = vmatprep.subr.mxu0 0.0
    %1148 = vmatpush2.msra.mxu0 0.0
    %1149 = vmatprep.subr.mxu0 0.0
    %1150 = vmatpush2.msra.mxu0 0.0
    %1151 = vmatprep.subr.mxu0 0.0
    %1152 = vmatpush2.msra.mxu0 0.0
    %1153 = vmatprep.subr.mxu0 0.0
    %1154 = vmatpush2.msra.mxu0 0.0
    %1155 = vmatprep.subr.mxu0 0.0
    %1156 = vmatpush2.msra.mxu0 0.0
    %1157 = vmatprep.subr.mxu0 0.0
    %1158 = vmatpush2.msra.mxu0 0.0
    %1159 = vmatprep.subr.mxu0 0.0
    %1160 = vmatpush2.msra.mxu0 0.0
    %1161 = vmatprep.subr.mxu0 0.0
    %1162 = vmatpush2.msra.mxu0 0.0
    %1163 = vmatprep.subr.mxu0 0.0
    %1164 = vmatpush2.msra.mxu0 0.0
    %1165 = vmatprep.subr.mxu0 0.0
    %1166 = vmatpush2.msra.mxu0 0.0
    %1167 = vmatprep.subr.mxu0 0.0
    %1168 = vmatpush2.msra.mxu0 0.0
    %1169 = vmatprep.mubr.f32.mxu0 0.0
    %1170 = vmatmul.mubr.f32.gmra.mxu0 %v1103
    %v1171 = vpop.f32.mrf.mxu0
    %v1172 = vadd.f32 0.0, %v1171
    %v1173 = vpop.f32.mrf.mxu0
    %1174 = vdwg.mxu0
    %v1175 = vadd.f32 %v479, %v1172
    %v1176 = vxor.u32 %v1175, 2147483648
    %v1177 = vmul.f32 %v1176, 1.442695
    %v1178 = vpow.pop %v1177
    %v1179 = vadd.f32 %v1178, 1.0
    %v1180 = vrcp.pop %v1179
    %v1181 = vmul.f32 1.0, %v1180
    %v1182 = vtanh.pop %v1175
    %v1183 = vmul.f32 %v1181, %v1093
    %1185 = vrot.lane.b32.xlu0 %v1182, 64
    %v1186 = vpop.permute.xlu0 %1185
    %v1188 = vmul.f32 %v1181, %v1186
    %1190 = vrot.lane.b32.xlu0 %v1188, 32
    %v1191 = vpop.permute.xlu0 %1190
    %v1193 = vadd.f32 %v1183, %v1191
    %v1194 = vtanh.pop %v1193
    %1196 = vrot.lane.b32.xlu0 %v1194, 64
    %v1197 = vpop.permute.xlu0 %1196
    %v1199 = vmul.f32 %v1181, %v1197
    %1201 = vrot.lane.b32.xlu0 %v1199, 32
    %v1202 = vpop.permute.xlu0 %1201
    %v1203 = vsel %vm701, %v1202, 0
    %1205 = vmatprep.subr.mxu0 0.0
    %1206 = vmatpush1.msra.mxu0 0.0
    %1207 = vmatprep.subr.mxu0 0.0
    %1208 = vmatpush1.msra.mxu0 0.0
    %1209 = vmatprep.subr.mxu0 0.0
    %1210 = vmatpush1.msra.mxu0 0.0
    %1211 = vmatprep.subr.mxu0 0.0
    %1212 = vmatpush1.msra.mxu0 0.0
    %1213 = vmatprep.subr.mxu0 0.0
    %1214 = vmatpush1.msra.mxu0 0.0
    %1215 = vmatprep.subr.mxu0 0.0
    %1216 = vmatpush1.msra.mxu0 0.0
    %1217 = vmatprep.subr.mxu0 0.0
    %1218 = vmatpush1.msra.mxu0 0.0
    %1219 = vmatprep.subr.mxu0 0.0
    %1220 = vmatpush1.msra.mxu0 0.0
    %1221 = vmatprep.subr.mxu0 0.0
    %1222 = vmatpush1.msra.mxu0 0.0
    %1223 = vmatprep.subr.mxu0 0.0
    %1224 = vmatpush1.msra.mxu0 0.0
    %1225 = vmatprep.subr.mxu0 0.0
    %1226 = vmatpush1.msra.mxu0 0.0
    %1227 = vmatprep.subr.mxu0 0.0
    %1228 = vmatpush1.msra.mxu0 0.0
    %1229 = vmatprep.subr.mxu0 0.0
    %1230 = vmatpush1.msra.mxu0 %v104
    %1231 = vmatprep.subr.mxu0 0.0
    %1232 = vmatpush1.msra.mxu0 %v103
    %1233 = vmatprep.subr.mxu0 0.0
    %1234 = vmatpush1.msra.mxu0 %v102
    %1235 = vmatprep.subr.mxu0 0.0
    %1236 = vmatpush1.msra.mxu0 %v101
    %1237 = vmatprep.subr.mxu0 0.0
    %1238 = vmatpush2.msra.mxu0 0.0
    %1239 = vmatprep.subr.mxu0 0.0
    %1240 = vmatpush2.msra.mxu0 0.0
    %1241 = vmatprep.subr.mxu0 0.0
    %1242 = vmatpush2.msra.mxu0 0.0
    %1243 = vmatprep.subr.mxu0 0.0
    %1244 = vmatpush2.msra.mxu0 0.0
    %1245 = vmatprep.subr.mxu0 0.0
    %1246 = vmatpush2.msra.mxu0 0.0
    %1247 = vmatprep.subr.mxu0 0.0
    %1248 = vmatpush2.msra.mxu0 0.0
    %1249 = vmatprep.subr.mxu0 0.0
    %1250 = vmatpush2.msra.mxu0 0.0
    %1251 = vmatprep.subr.mxu0 0.0
    %1252 = vmatpush2.msra.mxu0 0.0
    %1253 = vmatprep.subr.mxu0 0.0
    %1254 = vmatpush2.msra.mxu0 0.0
    %1255 = vmatprep.subr.mxu0 0.0
    %1256 = vmatpush2.msra.mxu0 0.0
    %1257 = vmatprep.subr.mxu0 0.0
    %1258 = vmatpush2.msra.mxu0 0.0
    %1259 = vmatprep.subr.mxu0 0.0
    %1260 = vmatpush2.msra.mxu0 0.0
    %1261 = vmatprep.subr.mxu0 0.0
    %1262 = vmatpush2.msra.mxu0 0.0
    %1263 = vmatprep.subr.mxu0 0.0
    %1264 = vmatpush2.msra.mxu0 0.0
    %1265 = vmatprep.subr.mxu0 0.0
    %1266 = vmatpush2.msra.mxu0 0.0
    %1267 = vmatprep.subr.mxu0 0.0
    %1268 = vmatpush2.msra.mxu0 0.0
    %1269 = vmatprep.mubr.f32.mxu0 0.0
    %1270 = vmatmul.mubr.f32.gmra.mxu0 %v1203
    %v1271 = vpop.f32.mrf.mxu0
    %v1272 = vadd.f32 0.0, %v1271
    %v1273 = vpop.f32.mrf.mxu0
    %1274 = vdwg.mxu0
    %v1275 = vadd.f32 %v552, %v1272
    %v1276 = vxor.u32 %v1275, 2147483648
    %v1277 = vmul.f32 %v1276, 1.442695
    %v1278 = vpow.pop %v1277
    %v1279 = vadd.f32 %v1278, 1.0
    %v1280 = vrcp.pop %v1279
    %v1281 = vmul.f32 1.0, %v1280
    %v1282 = vtanh.pop %v1275
    %v1283 = vmul.f32 %v1281, %v1193
    %1285 = vrot.lane.b32.xlu0 %v1282, 64
    %v1286 = vpop.permute.xlu0 %1285
    %v1288 = vmul.f32 %v1281, %v1286
    %1290 = vrot.lane.b32.xlu0 %v1288, 32
    %v1291 = vpop.permute.xlu0 %1290
    %v1293 = vadd.f32 %v1283, %v1291
    %v1294 = vtanh.pop %v1293
    %1296 = vrot.lane.b32.xlu0 %v1294, 64
    %v1297 = vpop.permute.xlu0 %1296
    %v1299 = vmul.f32 %v1281, %v1297
    %1301 = vrot.lane.b32.xlu0 %v1299, 32
    %v1302 = vpop.permute.xlu0 %1301
    %v1303 = vsel %vm701, %v1302, 0
    %1305 = vmatprep.subr.mxu0 0.0
    %1306 = vmatpush1.msra.mxu0 0.0
    %1307 = vmatprep.subr.mxu0 0.0
    %1308 = vmatpush1.msra.mxu0 0.0
    %1309 = vmatprep.subr.mxu0 0.0
    %1310 = vmatpush1.msra.mxu0 0.0
    %1311 = vmatprep.subr.mxu0 0.0
    %1312 = vmatpush1.msra.mxu0 0.0
    %1313 = vmatprep.subr.mxu0 0.0
    %1314 = vmatpush1.msra.mxu0 0.0
    %1315 = vmatprep.subr.mxu0 0.0
    %1316 = vmatpush1.msra.mxu0 0.0
    %1317 = vmatprep.subr.mxu0 0.0
    %1318 = vmatpush1.msra.mxu0 0.0
    %1319 = vmatprep.subr.mxu0 0.0
    %1320 = vmatpush1.msra.mxu0 0.0
    %1321 = vmatprep.subr.mxu0 0.0
    %1322 = vmatpush1.msra.mxu0 0.0
    %1323 = vmatprep.subr.mxu0 0.0
    %1324 = vmatpush1.msra.mxu0 0.0
    %1325 = vmatprep.subr.mxu0 0.0
    %1326 = vmatpush1.msra.mxu0 0.0
    %1327 = vmatprep.subr.mxu0 0.0
    %1328 = vmatpush1.msra.mxu0 0.0
    %1329 = vmatprep.subr.mxu0 0.0
    %1330 = vmatpush1.msra.mxu0 %v104
    %1331 = vmatprep.subr.mxu0 0.0
    %1332 = vmatpush1.msra.mxu0 %v103
    %1333 = vmatprep.subr.mxu0 0.0
    %1334 = vmatpush1.msra.mxu0 %v102
    %1335 = vmatprep.subr.mxu0 0.0
    %1336 = vmatpush1.msra.mxu0 %v101
    %1337 = vmatprep.subr.mxu0 0.0
    %1338 = vmatpush2.msra.mxu0 0.0
    %1339 = vmatprep.subr.mxu0 0.0
    %1340 = vmatpush2.msra.mxu0 0.0
    %1341 = vmatprep.subr.mxu0 0.0
    %1342 = vmatpush2.msra.mxu0 0.0
    %1343 = vmatprep.subr.mxu0 0.0
    %1344 = vmatpush2.msra.mxu0 0.0
    %1345 = vmatprep.subr.mxu0 0.0
    %1346 = vmatpush2.msra.mxu0 0.0
    %1347 = vmatprep.subr.mxu0 0.0
    %1348 = vmatpush2.msra.mxu0 0.0
    %1349 = vmatprep.subr.mxu0 0.0
    %1350 = vmatpush2.msra.mxu0 0.0
    %1351 = vmatprep.subr.mxu0 0.0
    %1352 = vmatpush2.msra.mxu0 0.0
    %1353 = vmatprep.subr.mxu0 0.0
    %1354 = vmatpush2.msra.mxu0 0.0
    %1355 = vmatprep.subr.mxu0 0.0
    %1356 = vmatpush2.msra.mxu0 0.0
    %1357 = vmatprep.subr.mxu0 0.0
    %1358 = vmatpush2.msra.mxu0 0.0
    %1359 = vmatprep.subr.mxu0 0.0
    %1360 = vmatpush2.msra.mxu0 0.0
    %1361 = vmatprep.subr.mxu0 0.0
    %1362 = vmatpush2.msra.mxu0 0.0
    %1363 = vmatprep.subr.mxu0 0.0
    %1364 = vmatpush2.msra.mxu0 0.0
    %1365 = vmatprep.subr.mxu0 0.0
    %1366 = vmatpush2.msra.mxu0 0.0
    %1367 = vmatprep.subr.mxu0 0.0
    %1368 = vmatpush2.msra.mxu0 0.0
    %1369 = vmatprep.mubr.f32.mxu0 0.0
    %1370 = vmatmul.mubr.f32.gmra.mxu0 %v1303
    %v1371 = vpop.f32.mrf.mxu0
    %v1372 = vadd.f32 0.0, %v1371
    %v1373 = vpop.f32.mrf.mxu0
    %1374 = vdwg.mxu0
    %v1375 = vadd.f32 %v625, %v1372
    %v1376 = vxor.u32 %v1375, 2147483648
    %v1377 = vmul.f32 %v1376, 1.442695
    %v1378 = vpow.pop %v1377
    %v1379 = vadd.f32 %v1378, 1.0
    %v1380 = vrcp.pop %v1379
    %v1381 = vmul.f32 1.0, %v1380
    %v1382 = vtanh.pop %v1375
    %v1383 = vmul.f32 %v1381, %v1293
    %1385 = vrot.lane.b32.xlu0 %v1382, 64
    %v1386 = vpop.permute.xlu0 %1385
    %v1388 = vmul.f32 %v1381, %v1386
    %1390 = vrot.lane.b32.xlu0 %v1388, 32
    %v1391 = vpop.permute.xlu0 %1390
    %v1393 = vadd.f32 %v1383, %v1391
    %v1394 = vtanh.pop %v1393
    %1396 = vrot.lane.b32.xlu0 %v1394, 64
    %v1397 = vpop.permute.xlu0 %1396
    %v1399 = vmul.f32 %v1381, %v1397
    %1401 = vrot.lane.b32.xlu0 %v1399, 32
    %v1402 = vpop.permute.xlu0 %1401
    %v1403 = vsel %vm701, %v1402, 0
    %1405 = vmatprep.subr.mxu0 0.0
    %1406 = vmatpush1.msra.mxu0 0.0
    %1407 = vmatprep.subr.mxu0 0.0
    %1408 = vmatpush1.msra.mxu0 0.0
    %1409 = vmatprep.subr.mxu0 0.0
    %1410 = vmatpush1.msra.mxu0 0.0
    %1411 = vmatprep.subr.mxu0 0.0
    %1412 = vmatpush1.msra.mxu0 0.0
    %1413 = vmatprep.subr.mxu0 0.0
    %1414 = vmatpush1.msra.mxu0 0.0
    %1415 = vmatprep.subr.mxu0 0.0
    %1416 = vmatpush1.msra.mxu0 0.0
    %1417 = vmatprep.subr.mxu0 0.0
    %1418 = vmatpush1.msra.mxu0 0.0
    %1419 = vmatprep.subr.mxu0 0.0
    %1420 = vmatpush1.msra.mxu0 0.0
    %1421 = vmatprep.subr.mxu0 0.0
    %1422 = vmatpush1.msra.mxu0 0.0
    %1423 = vmatprep.subr.mxu0 0.0
    %1424 = vmatpush1.msra.mxu0 0.0
    %1425 = vmatprep.subr.mxu0 0.0
    %1426 = vmatpush1.msra.mxu0 0.0
    %1427 = vmatprep.subr.mxu0 0.0
    %1428 = vmatpush1.msra.mxu0 0.0
    %1429 = vmatprep.subr.mxu0 0.0
    %1430 = vmatpush1.msra.mxu0 %v104
    %1431 = vmatprep.subr.mxu0 0.0
    %1432 = vmatpush1.msra.mxu0 %v103
    %1433 = vmatprep.subr.mxu0 0.0
    %1434 = vmatpush1.msra.mxu0 %v102
    %1435 = vmatprep.subr.mxu0 0.0
    %1436 = vmatpush1.msra.mxu0 %v101
    %1437 = vmatprep.subr.mxu0 0.0
    %1438 = vmatpush2.msra.mxu0 0.0
    %1439 = vmatprep.subr.mxu0 0.0
    %1440 = vmatpush2.msra.mxu0 0.0
    %1441 = vmatprep.subr.mxu0 0.0
    %1442 = vmatpush2.msra.mxu0 0.0
    %1443 = vmatprep.subr.mxu0 0.0
    %1444 = vmatpush2.msra.mxu0 0.0
    %1445 = vmatprep.subr.mxu0 0.0
    %1446 = vmatpush2.msra.mxu0 0.0
    %1447 = vmatprep.subr.mxu0 0.0
    %1448 = vmatpush2.msra.mxu0 0.0
    %1449 = vmatprep.subr.mxu0 0.0
    %1450 = vmatpush2.msra.mxu0 0.0
    %1451 = vmatprep.subr.mxu0 0.0
    %1452 = vmatpush2.msra.mxu0 0.0
    %1453 = vmatprep.subr.mxu0 0.0
    %1454 = vmatpush2.msra.mxu0 0.0
    %1455 = vmatprep.subr.mxu0 0.0
    %1456 = vmatpush2.msra.mxu0 0.0
    %1457 = vmatprep.subr.mxu0 0.0
    %1458 = vmatpush2.msra.mxu0 0.0
    %1459 = vmatprep.subr.mxu0 0.0
    %1460 = vmatpush2.msra.mxu0 0.0
    %1461 = vmatprep.subr.mxu0 0.0
    %1462 = vmatpush2.msra.mxu0 0.0
    %1463 = vmatprep.subr.mxu0 0.0
    %1464 = vmatpush2.msra.mxu0 0.0
    %1465 = vmatprep.subr.mxu0 0.0
    %1466 = vmatpush2.msra.mxu0 0.0
    %1467 = vmatprep.subr.mxu0 0.0
    %1468 = vmatpush2.msra.mxu0 0.0
    %1469 = vmatprep.mubr.f32.mxu0 0.0
    %1470 = vmatmul.mubr.f32.gmra.mxu0 %v1403
    %v1471 = vpop.f32.mrf.mxu0
    %v1472 = vadd.f32 0.0, %v1471
    %v1473 = vpop.f32.mrf.mxu0
    %1474 = vdwg.mxu0
    %v1475 = vadd.f32 %v698, %v1472
    %v1476 = vxor.u32 %v1475, 2147483648
    %v1477 = vmul.f32 %v1476, 1.442695
    %v1478 = vpow.pop %v1477
    %v1479 = vadd.f32 %v1478, 1.0
    %v1480 = vrcp.pop %v1479
    %v1481 = vmul.f32 1.0, %v1480
    %v1482 = vtanh.pop %v1475
    %v1483 = vmul.f32 %v1481, %v1393
    %1485 = vrot.lane.b32.xlu0 %v1482, 64
    %v1486 = vpop.permute.xlu0 %1485
    %v1488 = vmul.f32 %v1481, %v1486
    %1490 = vrot.lane.b32.xlu0 %v1488, 32
    %v1491 = vpop.permute.xlu0 %1490
    %v1493 = vadd.f32 %v1483, %v1491
    %v1494 = vtanh.pop %v1493
    %1496 = vrot.lane.b32.xlu0 %v1494, 64
    %v1497 = vpop.permute.xlu0 %1496
    %v1499 = vmul.f32 %v1481, %v1497
    %v1500 = vld [vmem:[%s4] sm:$0xff]
    %v1501 = vld [vmem:[%s4 + $0x8] sm:$0xff]
    %v1502 = vld [vmem:[%s4 + $0x10] sm:$0xff]
    %v1503 = vld [vmem:[%s4 + $0x18] sm:$0xff]
    %v1504 = vld [vmem:[%s5] sm:$0xff]
    %v1505 = vld [vmem:[%s5 + $0x8] sm:$0xff]
    %v1506 = vld [vmem:[%s5 + $0x10] sm:$0xff]
    %v1507 = vld [vmem:[%s5 + $0x18] sm:$0xff]
    %v1508 = vld [vmem:[#allocation7] sm:$0x1]
    %v1510 = vlaneseq
    %v1511 = vshrl.u32 %v1510, 7
    %v1512 = vsub.s32 0, %v1511
    %v1513 = vrot.slane %v1508, %v1512
    %1515 = vmatprep.subr.mxu0 0.0
    %1516 = vmatpush1.msra.mxu0 0.0
    %1517 = vmatprep.subr.mxu0 0.0
    %1518 = vmatpush1.msra.mxu0 0.0
    %1519 = vmatprep.subr.mxu0 0.0
    %1520 = vmatpush1.msra.mxu0 0.0
    %1521 = vmatprep.subr.mxu0 0.0
    %1522 = vmatpush1.msra.mxu0 0.0
    %1523 = vmatprep.subr.mxu0 0.0
    %1524 = vmatpush1.msra.mxu0 0.0
    %1525 = vmatprep.subr.mxu0 0.0
    %1526 = vmatpush1.msra.mxu0 0.0
    %1527 = vmatprep.subr.mxu0 0.0
    %1528 = vmatpush1.msra.mxu0 0.0
    %1529 = vmatprep.subr.mxu0 0.0
    %1530 = vmatpush1.msra.mxu0 0.0
    %1531 = vmatprep.subr.mxu0 0.0
    %1532 = vmatpush1.msra.mxu0 0.0
    %1533 = vmatprep.subr.mxu0 0.0
    %1534 = vmatpush1.msra.mxu0 0.0
    %1535 = vmatprep.subr.mxu0 0.0
    %1536 = vmatpush1.msra.mxu0 0.0
    %1537 = vmatprep.subr.mxu0 0.0
    %1538 = vmatpush1.msra.mxu0 0.0
    %1539 = vmatprep.subr.mxu0 0.0
    %1540 = vmatpush1.msra.mxu0 %v1503
    %1541 = vmatprep.subr.mxu0 0.0
    %1542 = vmatpush1.msra.mxu0 %v1502
    %1543 = vmatprep.subr.mxu0 0.0
    %1544 = vmatpush1.msra.mxu0 %v1501
    %1545 = vmatprep.subr.mxu0 0.0
    %1546 = vmatpush1.msra.mxu0 %v1500
    %1547 = vmatprep.subr.mxu0 0.0
    %1548 = vmatpush2.msra.mxu0 0.0
    %1549 = vmatprep.subr.mxu0 0.0
    %1550 = vmatpush2.msra.mxu0 0.0
    %1551 = vmatprep.subr.mxu0 0.0
    %1552 = vmatpush2.msra.mxu0 0.0
    %1553 = vmatprep.subr.mxu0 0.0
    %1554 = vmatpush2.msra.mxu0 0.0
    %1555 = vmatprep.subr.mxu0 0.0
    %1556 = vmatpush2.msra.mxu0 0.0
    %1557 = vmatprep.subr.mxu0 0.0
    %1558 = vmatpush2.msra.mxu0 0.0
    %1559 = vmatprep.subr.mxu0 0.0
    %1560 = vmatpush2.msra.mxu0 0.0
    %1561 = vmatprep.subr.mxu0 0.0
    %1562 = vmatpush2.msra.mxu0 0.0
    %1563 = vmatprep.subr.mxu0 0.0
    %1564 = vmatpush2.msra.mxu0 0.0
    %1565 = vmatprep.subr.mxu0 0.0
    %1566 = vmatpush2.msra.mxu0 0.0
    %1567 = vmatprep.subr.mxu0 0.0
    %1568 = vmatpush2.msra.mxu0 0.0
    %1569 = vmatprep.subr.mxu0 0.0
    %1570 = vmatpush2.msra.mxu0 0.0
    %1571 = vmatprep.subr.mxu0 0.0
    %1572 = vmatpush2.msra.mxu0 0.0
    %1573 = vmatprep.subr.mxu0 0.0
    %1574 = vmatpush2.msra.mxu0 0.0
    %1575 = vmatprep.subr.mxu0 0.0
    %1576 = vmatpush2.msra.mxu0 0.0
    %1577 = vmatprep.subr.mxu0 0.0
    %1578 = vmatpush2.msra.mxu0 0.0
    %1579 = vmatprep.mubr.f32.mxu0 0.0
    %1580 = vmatmul.mubr.f32.gmra.mxu0 %v803
    %v1581 = vpop.f32.mrf.mxu0
    %v1582 = vadd.f32 %v1513, %v1581
    %v1583 = vpop.f32.mrf.mxu0
    %1584 = vdwg.mxu0
    %1585 = vmatprep.subr.mxu0 0.0
    %1586 = vmatpush1.msra.mxu0 0.0
    %1587 = vmatprep.subr.mxu0 0.0
    %1588 = vmatpush1.msra.mxu0 0.0
    %1589 = vmatprep.subr.mxu0 0.0
    %1590 = vmatpush1.msra.mxu0 0.0
    %1591 = vmatprep.subr.mxu0 0.0
    %1592 = vmatpush1.msra.mxu0 0.0
    %1593 = vmatprep.subr.mxu0 0.0
    %1594 = vmatpush1.msra.mxu0 0.0
    %1595 = vmatprep.subr.mxu0 0.0
    %1596 = vmatpush1.msra.mxu0 0.0
    %1597 = vmatprep.subr.mxu0 0.0
    %1598 = vmatpush1.msra.mxu0 0.0
    %1599 = vmatprep.subr.mxu0 0.0
    %1600 = vmatpush1.msra.mxu0 0.0
    %1601 = vmatprep.subr.mxu0 0.0
    %1602 = vmatpush1.msra.mxu0 0.0
    %1603 = vmatprep.subr.mxu0 0.0
    %1604 = vmatpush1.msra.mxu0 0.0
    %1605 = vmatprep.subr.mxu0 0.0
    %1606 = vmatpush1.msra.mxu0 0.0
    %1607 = vmatprep.subr.mxu0 0.0
    %1608 = vmatpush1.msra.mxu0 0.0
    %1609 = vmatprep.subr.mxu0 0.0
    %1610 = vmatpush1.msra.mxu0 %v1503
    %1611 = vmatprep.subr.mxu0 0.0
    %1612 = vmatpush1.msra.mxu0 %v1502
    %1613 = vmatprep.subr.mxu0 0.0
    %1614 = vmatpush1.msra.mxu0 %v1501
    %1615 = vmatprep.subr.mxu0 0.0
    %1616 = vmatpush1.msra.mxu0 %v1500
    %1617 = vmatprep.subr.mxu0 0.0
    %1618 = vmatpush2.msra.mxu0 0.0
    %1619 = vmatprep.subr.mxu0 0.0
    %1620 = vmatpush2.msra.mxu0 0.0
    %1621 = vmatprep.subr.mxu0 0.0
    %1622 = vmatpush2.msra.mxu0 0.0
    %1623 = vmatprep.subr.mxu0 0.0
    %1624 = vmatpush2.msra.mxu0 0.0
    %1625 = vmatprep.subr.mxu0 0.0
    %1626 = vmatpush2.msra.mxu0 0.0
    %1627 = vmatprep.subr.mxu0 0.0
    %1628 = vmatpush2.msra.mxu0 0.0
    %1629 = vmatprep.subr.mxu0 0.0
    %1630 = vmatpush2.msra.mxu0 0.0
    %1631 = vmatprep.subr.mxu0 0.0
    %1632 = vmatpush2.msra.mxu0 0.0
    %1633 = vmatprep.subr.mxu0 0.0
    %1634 = vmatpush2.msra.mxu0 0.0
    %1635 = vmatprep.subr.mxu0 0.0
    %1636 = vmatpush2.msra.mxu0 0.0
    %1637 = vmatprep.subr.mxu0 0.0
    %1638 = vmatpush2.msra.mxu0 0.0
    %1639 = vmatprep.subr.mxu0 0.0
    %1640 = vmatpush2.msra.mxu0 0.0
    %1641 = vmatprep.subr.mxu0 0.0
    %1642 = vmatpush2.msra.mxu0 0.0
    %1643 = vmatprep.subr.mxu0 0.0
    %1644 = vmatpush2.msra.mxu0 0.0
    %1645 = vmatprep.subr.mxu0 0.0
    %1646 = vmatpush2.msra.mxu0 0.0
    %1647 = vmatprep.subr.mxu0 0.0
    %1648 = vmatpush2.msra.mxu0 0.0
    %1649 = vmatprep.mubr.f32.mxu0 0.0
    %1650 = vmatmul.mubr.f32.gmra.mxu0 %v903
    %v1651 = vpop.f32.mrf.mxu0
    %v1652 = vadd.f32 %v1513, %v1651
    %v1653 = vpop.f32.mrf.mxu0
    %1654 = vdwg.mxu0
    %1655 = vmatprep.subr.mxu0 0.0
    %1656 = vmatpush1.msra.mxu0 0.0
    %1657 = vmatprep.subr.mxu0 0.0
    %1658 = vmatpush1.msra.mxu0 0.0
    %1659 = vmatprep.subr.mxu0 0.0
    %1660 = vmatpush1.msra.mxu0 0.0
    %1661 = vmatprep.subr.mxu0 0.0
    %1662 = vmatpush1.msra.mxu0 0.0
    %1663 = vmatprep.subr.mxu0 0.0
    %1664 = vmatpush1.msra.mxu0 0.0
    %1665 = vmatprep.subr.mxu0 0.0
    %1666 = vmatpush1.msra.mxu0 0.0
    %1667 = vmatprep.subr.mxu0 0.0
    %1668 = vmatpush1.msra.mxu0 0.0
    %1669 = vmatprep.subr.mxu0 0.0
    %1670 = vmatpush1.msra.mxu0 0.0
    %1671 = vmatprep.subr.mxu0 0.0
    %1672 = vmatpush1.msra.mxu0 0.0
    %1673 = vmatprep.subr.mxu0 0.0
    %1674 = vmatpush1.msra.mxu0 0.0
    %1675 = vmatprep.subr.mxu0 0.0
    %1676 = vmatpush1.msra.mxu0 0.0
    %1677 = vmatprep.subr.mxu0 0.0
    %1678 = vmatpush1.msra.mxu0 0.0
    %1679 = vmatprep.subr.mxu0 0.0
    %1680 = vmatpush1.msra.mxu0 %v1503
    %1681 = vmatprep.subr.mxu0 0.0
    %1682 = vmatpush1.msra.mxu0 %v1502
    %1683 = vmatprep.subr.mxu0 0.0
    %1684 = vmatpush1.msra.mxu0 %v1501
    %1685 = vmatprep.subr.mxu0 0.0
    %1686 = vmatpush1.msra.mxu0 %v1500
    %1687 = vmatprep.subr.mxu0 0.0
    %1688 = vmatpush2.msra.mxu0 0.0
    %1689 = vmatprep.subr.mxu0 0.0
    %1690 = vmatpush2.msra.mxu0 0.0
    %1691 = vmatprep.subr.mxu0 0.0
    %1692 = vmatpush2.msra.mxu0 0.0
    %1693 = vmatprep.subr.mxu0 0.0
    %1694 = vmatpush2.msra.mxu0 0.0
    %1695 = vmatprep.subr.mxu0 0.0
    %1696 = vmatpush2.msra.mxu0 0.0
    %1697 = vmatprep.subr.mxu0 0.0
    %1698 = vmatpush2.msra.mxu0 0.0
    %1699 = vmatprep.subr.mxu0 0.0
    %1700 = vmatpush2.msra.mxu0 0.0
    %1701 = vmatprep.subr.mxu0 0.0
    %1702 = vmatpush2.msra.mxu0 0.0
    %1703 = vmatprep.subr.mxu0 0.0
    %1704 = vmatpush2.msra.mxu0 0.0
    %1705 = vmatprep.subr.mxu0 0.0
    %1706 = vmatpush2.msra.mxu0 0.0
    %1707 = vmatprep.subr.mxu0 0.0
    %1708 = vmatpush2.msra.mxu0 0.0
    %1709 = vmatprep.subr.mxu0 0.0
    %1710 = vmatpush2.msra.mxu0 0.0
    %1711 = vmatprep.subr.mxu0 0.0
    %1712 = vmatpush2.msra.mxu0 0.0
    %1713 = vmatprep.subr.mxu0 0.0
    %1714 = vmatpush2.msra.mxu0 0.0
    %1715 = vmatprep.subr.mxu0 0.0
    %1716 = vmatpush2.msra.mxu0 0.0
    %1717 = vmatprep.subr.mxu0 0.0
    %1718 = vmatpush2.msra.mxu0 0.0
    %1719 = vmatprep.mubr.f32.mxu0 0.0
    %1720 = vmatmul.mubr.f32.gmra.mxu0 %v1003
    %v1721 = vpop.f32.mrf.mxu0
    %v1722 = vadd.f32 %v1513, %v1721
    %v1723 = vpop.f32.mrf.mxu0
    %1724 = vdwg.mxu0
    %1725 = vmatprep.subr.mxu0 0.0
    %1726 = vmatpush1.msra.mxu0 0.0
    %1727 = vmatprep.subr.mxu0 0.0
    %1728 = vmatpush1.msra.mxu0 0.0
    %1729 = vmatprep.subr.mxu0 0.0
    %1730 = vmatpush1.msra.mxu0 0.0
    %1731 = vmatprep.subr.mxu0 0.0
    %1732 = vmatpush1.msra.mxu0 0.0
    %1733 = vmatprep.subr.mxu0 0.0
    %1734 = vmatpush1.msra.mxu0 0.0
    %1735 = vmatprep.subr.mxu0 0.0
    %1736 = vmatpush1.msra.mxu0 0.0
    %1737 = vmatprep.subr.mxu0 0.0
    %1738 = vmatpush1.msra.mxu0 0.0
    %1739 = vmatprep.subr.mxu0 0.0
    %1740 = vmatpush1.msra.mxu0 0.0
    %1741 = vmatprep.subr.mxu0 0.0
    %1742 = vmatpush1.msra.mxu0 0.0
    %1743 = vmatprep.subr.mxu0 0.0
    %1744 = vmatpush1.msra.mxu0 0.0
    %1745 = vmatprep.subr.mxu0 0.0
    %1746 = vmatpush1.msra.mxu0 0.0
    %1747 = vmatprep.subr.mxu0 0.0
    %1748 = vmatpush1.msra.mxu0 0.0
    %1749 = vmatprep.subr.mxu0 0.0
    %1750 = vmatpush1.msra.mxu0 %v1503
    %1751 = vmatprep.subr.mxu0 0.0
    %1752 = vmatpush1.msra.mxu0 %v1502
    %1753 = vmatprep.subr.mxu0 0.0
    %1754 = vmatpush1.msra.mxu0 %v1501
    %1755 = vmatprep.subr.mxu0 0.0
    %1756 = vmatpush1.msra.mxu0 %v1500
    %1757 = vmatprep.subr.mxu0 0.0
    %1758 = vmatpush2.msra.mxu0 0.0
    %1759 = vmatprep.subr.mxu0 0.0
    %1760 = vmatpush2.msra.mxu0 0.0
    %1761 = vmatprep.subr.mxu0 0.0
    %1762 = vmatpush2.msra.mxu0 0.0
    %1763 = vmatprep.subr.mxu0 0.0
    %1764 = vmatpush2.msra.mxu0 0.0
    %1765 = vmatprep.subr.mxu0 0.0
    %1766 = vmatpush2.msra.mxu0 0.0
    %1767 = vmatprep.subr.mxu0 0.0
    %1768 = vmatpush2.msra.mxu0 0.0
    %1769 = vmatprep.subr.mxu0 0.0
    %1770 = vmatpush2.msra.mxu0 0.0
    %1771 = vmatprep.subr.mxu0 0.0
    %1772 = vmatpush2.msra.mxu0 0.0
    %1773 = vmatprep.subr.mxu0 0.0
    %1774 = vmatpush2.msra.mxu0 0.0
    %1775 = vmatprep.subr.mxu0 0.0
    %1776 = vmatpush2.msra.mxu0 0.0
    %1777 = vmatprep.subr.mxu0 0.0
    %1778 = vmatpush2.msra.mxu0 0.0
    %1779 = vmatprep.subr.mxu0 0.0
    %1780 = vmatpush2.msra.mxu0 0.0
    %1781 = vmatprep.subr.mxu0 0.0
    %1782 = vmatpush2.msra.mxu0 0.0
    %1783 = vmatprep.subr.mxu0 0.0
    %1784 = vmatpush2.msra.mxu0 0.0
    %1785 = vmatprep.subr.mxu0 0.0
    %1786 = vmatpush2.msra.mxu0 0.0
    %1787 = vmatprep.subr.mxu0 0.0
    %1788 = vmatpush2.msra.mxu0 0.0
    %1789 = vmatprep.mubr.f32.mxu0 0.0
    %1790 = vmatmul.mubr.f32.gmra.mxu0 %v1103
    %v1791 = vpop.f32.mrf.mxu0
    %v1792 = vadd.f32 %v1513, %v1791
    %v1793 = vpop.f32.mrf.mxu0
    %1794 = vdwg.mxu0
    %1795 = vmatprep.subr.mxu0 0.0
    %1796 = vmatpush1.msra.mxu0 0.0
    %1797 = vmatprep.subr.mxu0 0.0
    %1798 = vmatpush1.msra.mxu0 0.0
    %1799 = vmatprep.subr.mxu0 0.0
    %1800 = vmatpush1.msra.mxu0 0.0
    %1801 = vmatprep.subr.mxu0 0.0
    %1802 = vmatpush1.msra.mxu0 0.0
    %1803 = vmatprep.subr.mxu0 0.0
    %1804 = vmatpush1.msra.mxu0 0.0
    %1805 = vmatprep.subr.mxu0 0.0
    %1806 = vmatpush1.msra.mxu0 0.0
    %1807 = vmatprep.subr.mxu0 0.0
    %1808 = vmatpush1.msra.mxu0 0.0
    %1809 = vmatprep.subr.mxu0 0.0
    %1810 = vmatpush1.msra.mxu0 0.0
    %1811 = vmatprep.subr.mxu0 0.0
    %1812 = vmatpush1.msra.mxu0 0.0
    %1813 = vmatprep.subr.mxu0 0.0
    %1814 = vmatpush1.msra.mxu0 0.0
    %1815 = vmatprep.subr.mxu0 0.0
    %1816 = vmatpush1.msra.mxu0 0.0
    %1817 = vmatprep.subr.mxu0 0.0
    %1818 = vmatpush1.msra.mxu0 0.0
    %1819 = vmatprep.subr.mxu0 0.0
    %1820 = vmatpush1.msra.mxu0 %v1503
    %1821 = vmatprep.subr.mxu0 0.0
    %1822 = vmatpush1.msra.mxu0 %v1502
    %1823 = vmatprep.subr.mxu0 0.0
    %1824 = vmatpush1.msra.mxu0 %v1501
    %1825 = vmatprep.subr.mxu0 0.0
    %1826 = vmatpush1.msra.mxu0 %v1500
    %1827 = vmatprep.subr.mxu0 0.0
    %1828 = vmatpush2.msra.mxu0 0.0
    %1829 = vmatprep.subr.mxu0 0.0
    %1830 = vmatpush2.msra.mxu0 0.0
    %1831 = vmatprep.subr.mxu0 0.0
    %1832 = vmatpush2.msra.mxu0 0.0
    %1833 = vmatprep.subr.mxu0 0.0
    %1834 = vmatpush2.msra.mxu0 0.0
    %1835 = vmatprep.subr.mxu0 0.0
    %1836 = vmatpush2.msra.mxu0 0.0
    %1837 = vmatprep.subr.mxu0 0.0
    %1838 = vmatpush2.msra.mxu0 0.0
    %1839 = vmatprep.subr.mxu0 0.0
    %1840 = vmatpush2.msra.mxu0 0.0
    %1841 = vmatprep.subr.mxu0 0.0
    %1842 = vmatpush2.msra.mxu0 0.0
    %1843 = vmatprep.subr.mxu0 0.0
    %1844 = vmatpush2.msra.mxu0 0.0
    %1845 = vmatprep.subr.mxu0 0.0
    %1846 = vmatpush2.msra.mxu0 0.0
    %1847 = vmatprep.subr.mxu0 0.0
    %1848 = vmatpush2.msra.mxu0 0.0
    %1849 = vmatprep.subr.mxu0 0.0
    %1850 = vmatpush2.msra.mxu0 0.0
    %1851 = vmatprep.subr.mxu0 0.0
    %1852 = vmatpush2.msra.mxu0 0.0
    %1853 = vmatprep.subr.mxu0 0.0
    %1854 = vmatpush2.msra.mxu0 0.0
    %1855 = vmatprep.subr.mxu0 0.0
    %1856 = vmatpush2.msra.mxu0 0.0
    %1857 = vmatprep.subr.mxu0 0.0
    %1858 = vmatpush2.msra.mxu0 0.0
    %1859 = vmatprep.mubr.f32.mxu0 0.0
    %1860 = vmatmul.mubr.f32.gmra.mxu0 %v1203
    %v1861 = vpop.f32.mrf.mxu0
    %v1862 = vadd.f32 %v1513, %v1861
    %v1863 = vpop.f32.mrf.mxu0
    %1864 = vdwg.mxu0
    %1865 = vmatprep.subr.mxu0 0.0
    %1866 = vmatpush1.msra.mxu0 0.0
    %1867 = vmatprep.subr.mxu0 0.0
    %1868 = vmatpush1.msra.mxu0 0.0
    %1869 = vmatprep.subr.mxu0 0.0
    %1870 = vmatpush1.msra.mxu0 0.0
    %1871 = vmatprep.subr.mxu0 0.0
    %1872 = vmatpush1.msra.mxu0 0.0
    %1873 = vmatprep.subr.mxu0 0.0
    %1874 = vmatpush1.msra.mxu0 0.0
    %1875 = vmatprep.subr.mxu0 0.0
    %1876 = vmatpush1.msra.mxu0 0.0
    %1877 = vmatprep.subr.mxu0 0.0
    %1878 = vmatpush1.msra.mxu0 0.0
    %1879 = vmatprep.subr.mxu0 0.0
    %1880 = vmatpush1.msra.mxu0 0.0
    %1881 = vmatprep.subr.mxu0 0.0
    %1882 = vmatpush1.msra.mxu0 0.0
    %1883 = vmatprep.subr.mxu0 0.0
    %1884 = vmatpush1.msra.mxu0 0.0
    %1885 = vmatprep.subr.mxu0 0.0
    %1886 = vmatpush1.msra.mxu0 0.0
    %1887 = vmatprep.subr.mxu0 0.0
    %1888 = vmatpush1.msra.mxu0 0.0
    %1889 = vmatprep.subr.mxu0 0.0
    %1890 = vmatpush1.msra.mxu0 %v1503
    %1891 = vmatprep.subr.mxu0 0.0
    %1892 = vmatpush1.msra.mxu0 %v1502
    %1893 = vmatprep.subr.mxu0 0.0
    %1894 = vmatpush1.msra.mxu0 %v1501
    %1895 = vmatprep.subr.mxu0 0.0
    %1896 = vmatpush1.msra.mxu0 %v1500
    %1897 = vmatprep.subr.mxu0 0.0
    %1898 = vmatpush2.msra.mxu0 0.0
    %1899 = vmatprep.subr.mxu0 0.0
    %1900 = vmatpush2.msra.mxu0 0.0
    %1901 = vmatprep.subr.mxu0 0.0
    %1902 = vmatpush2.msra.mxu0 0.0
    %1903 = vmatprep.subr.mxu0 0.0
    %1904 = vmatpush2.msra.mxu0 0.0
    %1905 = vmatprep.subr.mxu0 0.0
    %1906 = vmatpush2.msra.mxu0 0.0
    %1907 = vmatprep.subr.mxu0 0.0
    %1908 = vmatpush2.msra.mxu0 0.0
    %1909 = vmatprep.subr.mxu0 0.0
    %1910 = vmatpush2.msra.mxu0 0.0
    %1911 = vmatprep.subr.mxu0 0.0
    %1912 = vmatpush2.msra.mxu0 0.0
    %1913 = vmatprep.subr.mxu0 0.0
    %1914 = vmatpush2.msra.mxu0 0.0
    %1915 = vmatprep.subr.mxu0 0.0
    %1916 = vmatpush2.msra.mxu0 0.0
    %1917 = vmatprep.subr.mxu0 0.0
    %1918 = vmatpush2.msra.mxu0 0.0
    %1919 = vmatprep.subr.mxu0 0.0
    %1920 = vmatpush2.msra.mxu0 0.0
    %1921 = vmatprep.subr.mxu0 0.0
    %1922 = vmatpush2.msra.mxu0 0.0
    %1923 = vmatprep.subr.mxu0 0.0
    %1924 = vmatpush2.msra.mxu0 0.0
    %1925 = vmatprep.subr.mxu0 0.0
    %1926 = vmatpush2.msra.mxu0 0.0
    %1927 = vmatprep.subr.mxu0 0.0
    %1928 = vmatpush2.msra.mxu0 0.0
    %1929 = vmatprep.mubr.f32.mxu0 0.0
    %1930 = vmatmul.mubr.f32.gmra.mxu0 %v1303
    %v1931 = vpop.f32.mrf.mxu0
    %v1932 = vadd.f32 %v1513, %v1931
    %v1933 = vpop.f32.mrf.mxu0
    %1934 = vdwg.mxu0
    %1935 = vmatprep.subr.mxu0 0.0
    %1936 = vmatpush1.msra.mxu0 0.0
    %1937 = vmatprep.subr.mxu0 0.0
    %1938 = vmatpush1.msra.mxu0 0.0
    %1939 = vmatprep.subr.mxu0 0.0
    %1940 = vmatpush1.msra.mxu0 0.0
    %1941 = vmatprep.subr.mxu0 0.0
    %1942 = vmatpush1.msra.mxu0 0.0
    %1943 = vmatprep.subr.mxu0 0.0
    %1944 = vmatpush1.msra.mxu0 0.0
    %1945 = vmatprep.subr.mxu0 0.0
    %1946 = vmatpush1.msra.mxu0 0.0
    %1947 = vmatprep.subr.mxu0 0.0
    %1948 = vmatpush1.msra.mxu0 0.0
    %1949 = vmatprep.subr.mxu0 0.0
    %1950 = vmatpush1.msra.mxu0 0.0
    %1951 = vmatprep.subr.mxu0 0.0
    %1952 = vmatpush1.msra.mxu0 0.0
    %1953 = vmatprep.subr.mxu0 0.0
    %1954 = vmatpush1.msra.mxu0 0.0
    %1955 = vmatprep.subr.mxu0 0.0
    %1956 = vmatpush1.msra.mxu0 0.0
    %1957 = vmatprep.subr.mxu0 0.0
    %1958 = vmatpush1.msra.mxu0 0.0
    %1959 = vmatprep.subr.mxu0 0.0
    %1960 = vmatpush1.msra.mxu0 %v1503
    %1961 = vmatprep.subr.mxu0 0.0
    %1962 = vmatpush1.msra.mxu0 %v1502
    %1963 = vmatprep.subr.mxu0 0.0
    %1964 = vmatpush1.msra.mxu0 %v1501
    %1965 = vmatprep.subr.mxu0 0.0
    %1966 = vmatpush1.msra.mxu0 %v1500
    %1967 = vmatprep.subr.mxu0 0.0
    %1968 = vmatpush2.msra.mxu0 0.0
    %1969 = vmatprep.subr.mxu0 0.0
    %1970 = vmatpush2.msra.mxu0 0.0
    %1971 = vmatprep.subr.mxu0 0.0
    %1972 = vmatpush2.msra.mxu0 0.0
    %1973 = vmatprep.subr.mxu0 0.0
    %1974 = vmatpush2.msra.mxu0 0.0
    %1975 = vmatprep.subr.mxu0 0.0
    %1976 = vmatpush2.msra.mxu0 0.0
    %1977 = vmatprep.subr.mxu0 0.0
    %1978 = vmatpush2.msra.mxu0 0.0
    %1979 = vmatprep.subr.mxu0 0.0
    %1980 = vmatpush2.msra.mxu0 0.0
    %1981 = vmatprep.subr.mxu0 0.0
    %1982 = vmatpush2.msra.mxu0 0.0
    %1983 = vmatprep.subr.mxu0 0.0
    %1984 = vmatpush2.msra.mxu0 0.0
    %1985 = vmatprep.subr.mxu0 0.0
    %1986 = vmatpush2.msra.mxu0 0.0
    %1987 = vmatprep.subr.mxu0 0.0
    %1988 = vmatpush2.msra.mxu0 0.0
    %1989 = vmatprep.subr.mxu0 0.0
    %1990 = vmatpush2.msra.mxu0 0.0
    %1991 = vmatprep.subr.mxu0 0.0
    %1992 = vmatpush2.msra.mxu0 0.0
    %1993 = vmatprep.subr.mxu0 0.0
    %1994 = vmatpush2.msra.mxu0 0.0
    %1995 = vmatprep.subr.mxu0 0.0
    %1996 = vmatpush2.msra.mxu0 0.0
    %1997 = vmatprep.subr.mxu0 0.0
    %1998 = vmatpush2.msra.mxu0 0.0
    %1999 = vmatprep.mubr.f32.mxu0 0.0
    %2000 = vmatmul.mubr.f32.gmra.mxu0 %v1403
    %v2001 = vpop.f32.mrf.mxu0
    %v2002 = vadd.f32 %v1513, %v2001
    %v2003 = vpop.f32.mrf.mxu0
    %2004 = vdwg.mxu0
    %2006 = vrot.lane.b32.xlu0 %v1499, 32
    %v2007 = vpop.permute.xlu0 %2006
    %v2008 = vsel %vm701, %v2007, 0
    %2010 = vmatprep.subr.mxu0 0.0
    %2011 = vmatpush1.msra.mxu0 0.0
    %2012 = vmatprep.subr.mxu0 0.0
    %2013 = vmatpush1.msra.mxu0 0.0
    %2014 = vmatprep.subr.mxu0 0.0
    %2015 = vmatpush1.msra.mxu0 0.0
    %2016 = vmatprep.subr.mxu0 0.0
    %2017 = vmatpush1.msra.mxu0 0.0
    %2018 = vmatprep.subr.mxu0 0.0
    %2019 = vmatpush1.msra.mxu0 0.0
    %2020 = vmatprep.subr.mxu0 0.0
    %2021 = vmatpush1.msra.mxu0 0.0
    %2022 = vmatprep.subr.mxu0 0.0
    %2023 = vmatpush1.msra.mxu0 0.0
    %2024 = vmatprep.subr.mxu0 0.0
    %2025 = vmatpush1.msra.mxu0 0.0
    %2026 = vmatprep.subr.mxu0 0.0
    %2027 = vmatpush1.msra.mxu0 0.0
    %2028 = vmatprep.subr.mxu0 0.0
    %2029 = vmatpush1.msra.mxu0 0.0
    %2030 = vmatprep.subr.mxu0 0.0
    %2031 = vmatpush1.msra.mxu0 0.0
    %2032 = vmatprep.subr.mxu0 0.0
    %2033 = vmatpush1.msra.mxu0 0.0
    %2034 = vmatprep.subr.mxu0 0.0
    %2035 = vmatpush1.msra.mxu0 %v1503
    %2036 = vmatprep.subr.mxu0 0.0
    %2037 = vmatpush1.msra.mxu0 %v1502
    %2038 = vmatprep.subr.mxu0 0.0
    %2039 = vmatpush1.msra.mxu0 %v1501
    %2040 = vmatprep.subr.mxu0 0.0
    %2041 = vmatpush1.msra.mxu0 %v1500
    %2042 = vmatprep.subr.mxu0 0.0
    %2043 = vmatpush2.msra.mxu0 0.0
    %2044 = vmatprep.subr.mxu0 0.0
    %2045 = vmatpush2.msra.mxu0 0.0
    %2046 = vmatprep.subr.mxu0 0.0
    %2047 = vmatpush2.msra.mxu0 0.0
    %2048 = vmatprep.subr.mxu0 0.0
    %2049 = vmatpush2.msra.mxu0 0.0
    %2050 = vmatprep.subr.mxu0 0.0
    %2051 = vmatpush2.msra.mxu0 0.0
    %2052 = vmatprep.subr.mxu0 0.0
    %2053 = vmatpush2.msra.mxu0 0.0
    %2054 = vmatprep.subr.mxu0 0.0
    %2055 = vmatpush2.msra.mxu0 0.0
    %2056 = vmatprep.subr.mxu0 0.0
    %2057 = vmatpush2.msra.mxu0 0.0
    %2058 = vmatprep.subr.mxu0 0.0
    %2059 = vmatpush2.msra.mxu0 0.0
    %2060 = vmatprep.subr.mxu0 0.0
    %2061 = vmatpush2.msra.mxu0 0.0
    %2062 = vmatprep.subr.mxu0 0.0
    %2063 = vmatpush2.msra.mxu0 0.0
    %2064 = vmatprep.subr.mxu0 0.0
    %2065 = vmatpush2.msra.mxu0 0.0
    %2066 = vmatprep.subr.mxu0 0.0
    %2067 = vmatpush2.msra.mxu0 0.0
    %2068 = vmatprep.subr.mxu0 0.0
    %2069 = vmatpush2.msra.mxu0 0.0
    %2070 = vmatprep.subr.mxu0 0.0
    %2071 = vmatpush2.msra.mxu0 0.0
    %2072 = vmatprep.subr.mxu0 0.0
    %2073 = vmatpush2.msra.mxu0 0.0
    %2074 = vmatprep.mubr.f32.mxu0 0.0
    %2075 = vmatmul.mubr.f32.gmra.mxu0 %v2008
    %v2076 = vpop.f32.mrf.mxu0
    %v2077 = vadd.f32 %v1513, %v2076
    %v2078 = vpop.f32.mrf.mxu0
    %2079 = vdwg.mxu0
    %2080 = vmatprep.subr.mxu0 0.0
    %2081 = vmatpush1.msra.mxu0 0.0
    %2082 = vmatprep.subr.mxu0 0.0
    %2083 = vmatpush1.msra.mxu0 0.0
    %2084 = vmatprep.subr.mxu0 0.0
    %2085 = vmatpush1.msra.mxu0 0.0
    %2086 = vmatprep.subr.mxu0 0.0
    %2087 = vmatpush1.msra.mxu0 0.0
    %2088 = vmatprep.subr.mxu0 0.0
    %2089 = vmatpush1.msra.mxu0 0.0
    %2090 = vmatprep.subr.mxu0 0.0
    %2091 = vmatpush1.msra.mxu0 0.0
    %2092 = vmatprep.subr.mxu0 0.0
    %2093 = vmatpush1.msra.mxu0 0.0
    %2094 = vmatprep.subr.mxu0 0.0
    %2095 = vmatpush1.msra.mxu0 0.0
    %2096 = vmatprep.subr.mxu0 0.0
    %2097 = vmatpush1.msra.mxu0 0.0
    %2098 = vmatprep.subr.mxu0 0.0
    %2099 = vmatpush1.msra.mxu0 0.0
    %2100 = vmatprep.subr.mxu0 0.0
    %2101 = vmatpush1.msra.mxu0 0.0
    %2102 = vmatprep.subr.mxu0 0.0
    %2103 = vmatpush1.msra.mxu0 0.0
    %2104 = vmatprep.subr.mxu0 0.0
    %2105 = vmatpush1.msra.mxu0 %v1507
    %2106 = vmatprep.subr.mxu0 0.0
    %2107 = vmatpush1.msra.mxu0 %v1506
    %2108 = vmatprep.subr.mxu0 0.0
    %2109 = vmatpush1.msra.mxu0 %v1505
    %2110 = vmatprep.subr.mxu0 0.0
    %2111 = vmatpush1.msra.mxu0 %v1504
    %2112 = vmatprep.subr.mxu0 0.0
    %2113 = vmatpush2.msra.mxu0 0.0
    %2114 = vmatprep.subr.mxu0 0.0
    %2115 = vmatpush2.msra.mxu0 0.0
    %2116 = vmatprep.subr.mxu0 0.0
    %2117 = vmatpush2.msra.mxu0 0.0
    %2118 = vmatprep.subr.mxu0 0.0
    %2119 = vmatpush2.msra.mxu0 0.0
    %2120 = vmatprep.subr.mxu0 0.0
    %2121 = vmatpush2.msra.mxu0 0.0
    %2122 = vmatprep.subr.mxu0 0.0
    %2123 = vmatpush2.msra.mxu0 0.0
    %2124 = vmatprep.subr.mxu0 0.0
    %2125 = vmatpush2.msra.mxu0 0.0
    %2126 = vmatprep.subr.mxu0 0.0
    %2127 = vmatpush2.msra.mxu0 0.0
    %2128 = vmatprep.subr.mxu0 0.0
    %2129 = vmatpush2.msra.mxu0 0.0
    %2130 = vmatprep.subr.mxu0 0.0
    %2131 = vmatpush2.msra.mxu0 0.0
    %2132 = vmatprep.subr.mxu0 0.0
    %2133 = vmatpush2.msra.mxu0 0.0
    %2134 = vmatprep.subr.mxu0 0.0
    %2135 = vmatpush2.msra.mxu0 0.0
    %2136 = vmatprep.subr.mxu0 0.0
    %2137 = vmatpush2.msra.mxu0 0.0
    %2138 = vmatprep.subr.mxu0 0.0
    %2139 = vmatpush2.msra.mxu0 0.0
    %2140 = vmatprep.subr.mxu0 0.0
    %2141 = vmatpush2.msra.mxu0 0.0
    %2142 = vmatprep.subr.mxu0 0.0
    %2143 = vmatpush2.msra.mxu0 0.0
    %2144 = vmatprep.mubr.f32.mxu0 0.0
    %2145 = vmatmul.mubr.f32.gmra.mxu0 %v703
    %v2146 = vpop.f32.mrf.mxu0
    %v2147 = vadd.f32 0.0, %v2146
    %v2148 = vpop.f32.mrf.mxu0
    %2149 = vdwg.mxu0
    %v2150 = vadd.f32 %v1582, %v2147
    %v2151 = vxor.u32 %v2150, 2147483648
    %v2152 = vmul.f32 %v2151, 1.442695
    %v2153 = vpow.pop %v2152
    %v2154 = vadd.f32 %v2153, 1.0
    %v2155 = vrcp.pop %v2154
    %v2156 = vmul.f32 1.0, %v2155
    %v2157 = vtanh.pop %v2150
    %v2158 = vmul.f32 %v2156, 0.0
    %2160 = vrot.lane.b32.xlu0 %v2157, 64
    %v2161 = vpop.permute.xlu0 %2160
    %v2163 = vmul.f32 %v2156, %v2161
    %2165 = vrot.lane.b32.xlu0 %v2163, 32
    %v2166 = vpop.permute.xlu0 %2165
    %v2168 = vadd.f32 %v2158, %v2166
    %v2169 = vtanh.pop %v2168
    %2171 = vrot.lane.b32.xlu0 %v2169, 64
    %v2172 = vpop.permute.xlu0 %2171
    %v2174 = vmul.f32 %v2156, %v2172
    %2176 = vrot.lane.b32.xlu0 %v2174, 32
    %v2177 = vpop.permute.xlu0 %2176
    %vm2179 = vcmask 254976
    %2180 = vst.msk [vmem:[#allocation2] sm:$0x3] %vm2179, %v2177
    %v2181 = vsel %vm701, %v2177, 0
    %2183 = vmatprep.subr.mxu0 0.0
    %2184 = vmatpush1.msra.mxu0 0.0
    %2185 = vmatprep.subr.mxu0 0.0
    %2186 = vmatpush1.msra.mxu0 0.0
    %2187 = vmatprep.subr.mxu0 0.0
    %2188 = vmatpush1.msra.mxu0 0.0
    %2189 = vmatprep.subr.mxu0 0.0
    %2190 = vmatpush1.msra.mxu0 0.0
    %2191 = vmatprep.subr.mxu0 0.0
    %2192 = vmatpush1.msra.mxu0 0.0
    %2193 = vmatprep.subr.mxu0 0.0
    %2194 = vmatpush1.msra.mxu0 0.0
    %2195 = vmatprep.subr.mxu0 0.0
    %2196 = vmatpush1.msra.mxu0 0.0
    %2197 = vmatprep.subr.mxu0 0.0
    %2198 = vmatpush1.msra.mxu0 0.0
    %2199 = vmatprep.subr.mxu0 0.0
    %2200 = vmatpush1.msra.mxu0 0.0
    %2201 = vmatprep.subr.mxu0 0.0
    %2202 = vmatpush1.msra.mxu0 0.0
    %2203 = vmatprep.subr.mxu0 0.0
    %2204 = vmatpush1.msra.mxu0 0.0
    %2205 = vmatprep.subr.mxu0 0.0
    %2206 = vmatpush1.msra.mxu0 0.0
    %2207 = vmatprep.subr.mxu0 0.0
    %2208 = vmatpush1.msra.mxu0 %v1507
    %2209 = vmatprep.subr.mxu0 0.0
    %2210 = vmatpush1.msra.mxu0 %v1506
    %2211 = vmatprep.subr.mxu0 0.0
    %2212 = vmatpush1.msra.mxu0 %v1505
    %2213 = vmatprep.subr.mxu0 0.0
    %2214 = vmatpush1.msra.mxu0 %v1504
    %2215 = vmatprep.subr.mxu0 0.0
    %2216 = vmatpush2.msra.mxu0 0.0
    %2217 = vmatprep.subr.mxu0 0.0
    %2218 = vmatpush2.msra.mxu0 0.0
    %2219 = vmatprep.subr.mxu0 0.0
    %2220 = vmatpush2.msra.mxu0 0.0
    %2221 = vmatprep.subr.mxu0 0.0
    %2222 = vmatpush2.msra.mxu0 0.0
    %2223 = vmatprep.subr.mxu0 0.0
    %2224 = vmatpush2.msra.mxu0 0.0
    %2225 = vmatprep.subr.mxu0 0.0
    %2226 = vmatpush2.msra.mxu0 0.0
    %2227 = vmatprep.subr.mxu0 0.0
    %2228 = vmatpush2.msra.mxu0 0.0
    %2229 = vmatprep.subr.mxu0 0.0
    %2230 = vmatpush2.msra.mxu0 0.0
    %2231 = vmatprep.subr.mxu0 0.0
    %2232 = vmatpush2.msra.mxu0 0.0
    %2233 = vmatprep.subr.mxu0 0.0
    %2234 = vmatpush2.msra.mxu0 0.0
    %2235 = vmatprep.subr.mxu0 0.0
    %2236 = vmatpush2.msra.mxu0 0.0
    %2237 = vmatprep.subr.mxu0 0.0
    %2238 = vmatpush2.msra.mxu0 0.0
    %2239 = vmatprep.subr.mxu0 0.0
    %2240 = vmatpush2.msra.mxu0 0.0
    %2241 = vmatprep.subr.mxu0 0.0
    %2242 = vmatpush2.msra.mxu0 0.0
    %2243 = vmatprep.subr.mxu0 0.0
    %2244 = vmatpush2.msra.mxu0 0.0
    %2245 = vmatprep.subr.mxu0 0.0
    %2246 = vmatpush2.msra.mxu0 0.0
    %2247 = vmatprep.mubr.f32.mxu0 0.0
    %2248 = vmatmul.mubr.f32.gmra.mxu0 %v2181
    %v2249 = vpop.f32.mrf.mxu0
    %v2250 = vadd.f32 0.0, %v2249
    %v2251 = vpop.f32.mrf.mxu0
    %2252 = vdwg.mxu0
    %v2253 = vadd.f32 %v1652, %v2250
    %v2254 = vxor.u32 %v2253, 2147483648
    %v2255 = vmul.f32 %v2254, 1.442695
    %v2256 = vpow.pop %v2255
    %v2257 = vadd.f32 %v2256, 1.0
    %v2258 = vrcp.pop %v2257
    %v2259 = vmul.f32 1.0, %v2258
    %v2260 = vtanh.pop %v2253
    %v2261 = vmul.f32 %v2259, %v2168
    %2263 = vrot.lane.b32.xlu0 %v2260, 64
    %v2264 = vpop.permute.xlu0 %2263
    %v2266 = vmul.f32 %v2259, %v2264
    %2268 = vrot.lane.b32.xlu0 %v2266, 32
    %v2269 = vpop.permute.xlu0 %2268
    %v2271 = vadd.f32 %v2261, %v2269
    %v2272 = vtanh.pop %v2271
    %2274 = vrot.lane.b32.xlu0 %v2272, 64
    %v2275 = vpop.permute.xlu0 %2274
    %v2277 = vmul.f32 %v2259, %v2275
    %2279 = vrot.lane.b32.xlu0 %v2277, 32
    %v2280 = vpop.permute.xlu0 %2279
    %s2282 = scalar_lea.vmem [#allocation2], 2
    %2283 = vst.msk [vmem:[%s2282] sm:$0x3] %vm2179, %v2280
    %v2284 = vsel %vm701, %v2280, 0
    %2286 = vmatprep.subr.mxu0 0.0
    %2287 = vmatpush1.msra.mxu0 0.0
    %2288 = vmatprep.subr.mxu0 0.0
    %2289 = vmatpush1.msra.mxu0 0.0
    %2290 = vmatprep.subr.mxu0 0.0
    %2291 = vmatpush1.msra.mxu0 0.0
    %2292 = vmatprep.subr.mxu0 0.0
    %2293 = vmatpush1.msra.mxu0 0.0
    %2294 = vmatprep.subr.mxu0 0.0
    %2295 = vmatpush1.msra.mxu0 0.0
    %2296 = vmatprep.subr.mxu0 0.0
    %2297 = vmatpush1.msra.mxu0 0.0
    %2298 = vmatprep.subr.mxu0 0.0
    %2299 = vmatpush1.msra.mxu0 0.0
    %2300 = vmatprep.subr.mxu0 0.0
    %2301 = vmatpush1.msra.mxu0 0.0
    %2302 = vmatprep.subr.mxu0 0.0
    %2303 = vmatpush1.msra.mxu0 0.0
    %2304 = vmatprep.subr.mxu0 0.0
    %2305 = vmatpush1.msra.mxu0 0.0
    %2306 = vmatprep.subr.mxu0 0.0
    %2307 = vmatpush1.msra.mxu0 0.0
    %2308 = vmatprep.subr.mxu0 0.0
    %2309 = vmatpush1.msra.mxu0 0.0
    %2310 = vmatprep.subr.mxu0 0.0
    %2311 = vmatpush1.msra.mxu0 %v1507
    %2312 = vmatprep.subr.mxu0 0.0
    %2313 = vmatpush1.msra.mxu0 %v1506
    %2314 = vmatprep.subr.mxu0 0.0
    %2315 = vmatpush1.msra.mxu0 %v1505
    %2316 = vmatprep.subr.mxu0 0.0
    %2317 = vmatpush1.msra.mxu0 %v1504
    %2318 = vmatprep.subr.mxu0 0.0
    %2319 = vmatpush2.msra.mxu0 0.0
    %2320 = vmatprep.subr.mxu0 0.0
    %2321 = vmatpush2.msra.mxu0 0.0
    %2322 = vmatprep.subr.mxu0 0.0
    %2323 = vmatpush2.msra.mxu0 0.0
    %2324 = vmatprep.subr.mxu0 0.0
    %2325 = vmatpush2.msra.mxu0 0.0
    %2326 = vmatprep.subr.mxu0 0.0
    %2327 = vmatpush2.msra.mxu0 0.0
    %2328 = vmatprep.subr.mxu0 0.0
    %2329 = vmatpush2.msra.mxu0 0.0
    %2330 = vmatprep.subr.mxu0 0.0
    %2331 = vmatpush2.msra.mxu0 0.0
    %2332 = vmatprep.subr.mxu0 0.0
    %2333 = vmatpush2.msra.mxu0 0.0
    %2334 = vmatprep.subr.mxu0 0.0
    %2335 = vmatpush2.msra.mxu0 0.0
    %2336 = vmatprep.subr.mxu0 0.0
    %2337 = vmatpush2.msra.mxu0 0.0
    %2338 = vmatprep.subr.mxu0 0.0
    %2339 = vmatpush2.msra.mxu0 0.0
    %2340 = vmatprep.subr.mxu0 0.0
    %2341 = vmatpush2.msra.mxu0 0.0
    %2342 = vmatprep.subr.mxu0 0.0
    %2343 = vmatpush2.msra.mxu0 0.0
    %2344 = vmatprep.subr.mxu0 0.0
    %2345 = vmatpush2.msra.mxu0 0.0
    %2346 = vmatprep.subr.mxu0 0.0
    %2347 = vmatpush2.msra.mxu0 0.0
    %2348 = vmatprep.subr.mxu0 0.0
    %2349 = vmatpush2.msra.mxu0 0.0
    %2350 = vmatprep.mubr.f32.mxu0 0.0
    %2351 = vmatmul.mubr.f32.gmra.mxu0 %v2284
    %v2352 = vpop.f32.mrf.mxu0
    %v2353 = vadd.f32 0.0, %v2352
    %v2354 = vpop.f32.mrf.mxu0
    %2355 = vdwg.mxu0
    %v2356 = vadd.f32 %v1722, %v2353
    %v2357 = vxor.u32 %v2356, 2147483648
    %v2358 = vmul.f32 %v2357, 1.442695
    %v2359 = vpow.pop %v2358
    %v2360 = vadd.f32 %v2359, 1.0
    %v2361 = vrcp.pop %v2360
    %v2362 = vmul.f32 1.0, %v2361
    %v2363 = vtanh.pop %v2356
    %v2364 = vmul.f32 %v2362, %v2271
    %2366 = vrot.lane.b32.xlu0 %v2363, 64
    %v2367 = vpop.permute.xlu0 %2366
    %v2369 = vmul.f32 %v2362, %v2367
    %2371 = vrot.lane.b32.xlu0 %v2369, 32
    %v2372 = vpop.permute.xlu0 %2371
    %v2374 = vadd.f32 %v2364, %v2372
    %v2375 = vtanh.pop %v2374
    %2377 = vrot.lane.b32.xlu0 %v2375, 64
    %v2378 = vpop.permute.xlu0 %2377
    %v2380 = vmul.f32 %v2362, %v2378
    %2382 = vrot.lane.b32.xlu0 %v2380, 32
    %v2383 = vpop.permute.xlu0 %2382
    %s2385 = scalar_lea.vmem [#allocation2], 4
    %2386 = vst.msk [vmem:[%s2385] sm:$0x3] %vm2179, %v2383
    %v2387 = vsel %vm701, %v2383, 0
    %2389 = vmatprep.subr.mxu0 0.0
    %2390 = vmatpush1.msra.mxu0 0.0
    %2391 = vmatprep.subr.mxu0 0.0
    %2392 = vmatpush1.msra.mxu0 0.0
    %2393 = vmatprep.subr.mxu0 0.0
    %2394 = vmatpush1.msra.mxu0 0.0
    %2395 = vmatprep.subr.mxu0 0.0
    %2396 = vmatpush1.msra.mxu0 0.0
    %2397 = vmatprep.subr.mxu0 0.0
    %2398 = vmatpush1.msra.mxu0 0.0
    %2399 = vmatprep.subr.mxu0 0.0
    %2400 = vmatpush1.msra.mxu0 0.0
    %2401 = vmatprep.subr.mxu0 0.0
    %2402 = vmatpush1.msra.mxu0 0.0
    %2403 = vmatprep.subr.mxu0 0.0
    %2404 = vmatpush1.msra.mxu0 0.0
    %2405 = vmatprep.subr.mxu0 0.0
    %2406 = vmatpush1.msra.mxu0 0.0
    %2407 = vmatprep.subr.mxu0 0.0
    %2408 = vmatpush1.msra.mxu0 0.0
    %2409 = vmatprep.subr.mxu0 0.0
    %2410 = vmatpush1.msra.mxu0 0.0
    %2411 = vmatprep.subr.mxu0 0.0
    %2412 = vmatpush1.msra.mxu0 0.0
    %2413 = vmatprep.subr.mxu0 0.0
    %2414 = vmatpush1.msra.mxu0 %v1507
    %2415 = vmatprep.subr.mxu0 0.0
    %2416 = vmatpush1.msra.mxu0 %v1506
    %2417 = vmatprep.subr.mxu0 0.0
    %2418 = vmatpush1.msra.mxu0 %v1505
    %2419 = vmatprep.subr.mxu0 0.0
    %2420 = vmatpush1.msra.mxu0 %v1504
    %2421 = vmatprep.subr.mxu0 0.0
    %2422 = vmatpush2.msra.mxu0 0.0
    %2423 = vmatprep.subr.mxu0 0.0
    %2424 = vmatpush2.msra.mxu0 0.0
    %2425 = vmatprep.subr.mxu0 0.0
    %2426 = vmatpush2.msra.mxu0 0.0
    %2427 = vmatprep.subr.mxu0 0.0
    %2428 = vmatpush2.msra.mxu0 0.0
    %2429 = vmatprep.subr.mxu0 0.0
    %2430 = vmatpush2.msra.mxu0 0.0
    %2431 = vmatprep.subr.mxu0 0.0
    %2432 = vmatpush2.msra.mxu0 0.0
    %2433 = vmatprep.subr.mxu0 0.0
    %2434 = vmatpush2.msra.mxu0 0.0
    %2435 = vmatprep.subr.mxu0 0.0
    %2436 = vmatpush2.msra.mxu0 0.0
    %2437 = vmatprep.subr.mxu0 0.0
    %2438 = vmatpush2.msra.mxu0 0.0
    %2439 = vmatprep.subr.mxu0 0.0
    %2440 = vmatpush2.msra.mxu0 0.0
    %2441 = vmatprep.subr.mxu0 0.0
    %2442 = vmatpush2.msra.mxu0 0.0
    %2443 = vmatprep.subr.mxu0 0.0
    %2444 = vmatpush2.msra.mxu0 0.0
    %2445 = vmatprep.subr.mxu0 0.0
    %2446 = vmatpush2.msra.mxu0 0.0
    %2447 = vmatprep.subr.mxu0 0.0
    %2448 = vmatpush2.msra.mxu0 0.0
    %2449 = vmatprep.subr.mxu0 0.0
    %2450 = vmatpush2.msra.mxu0 0.0
    %2451 = vmatprep.subr.mxu0 0.0
    %2452 = vmatpush2.msra.mxu0 0.0
    %2453 = vmatprep.mubr.f32.mxu0 0.0
    %2454 = vmatmul.mubr.f32.gmra.mxu0 %v2387
    %v2455 = vpop.f32.mrf.mxu0
    %v2456 = vadd.f32 0.0, %v2455
    %v2457 = vpop.f32.mrf.mxu0
    %2458 = vdwg.mxu0
    %v2459 = vadd.f32 %v1792, %v2456
    %v2460 = vxor.u32 %v2459, 2147483648
    %v2461 = vmul.f32 %v2460, 1.442695
    %v2462 = vpow.pop %v2461
    %v2463 = vadd.f32 %v2462, 1.0
    %v2464 = vrcp.pop %v2463
    %v2465 = vmul.f32 1.0, %v2464
    %v2466 = vtanh.pop %v2459
    %v2467 = vmul.f32 %v2465, %v2374
    %2469 = vrot.lane.b32.xlu0 %v2466, 64
    %v2470 = vpop.permute.xlu0 %2469
    %v2472 = vmul.f32 %v2465, %v2470
    %2474 = vrot.lane.b32.xlu0 %v2472, 32
    %v2475 = vpop.permute.xlu0 %2474
    %v2477 = vadd.f32 %v2467, %v2475
    %v2478 = vtanh.pop %v2477
    %2480 = vrot.lane.b32.xlu0 %v2478, 64
    %v2481 = vpop.permute.xlu0 %2480
    %v2483 = vmul.f32 %v2465, %v2481
    %2485 = vrot.lane.b32.xlu0 %v2483, 32
    %v2486 = vpop.permute.xlu0 %2485
    %s2488 = scalar_lea.vmem [#allocation2], 6
    %2489 = vst.msk [vmem:[%s2488] sm:$0x3] %vm2179, %v2486
    %v2490 = vsel %vm701, %v2486, 0
    %2492 = vmatprep.subr.mxu0 0.0
    %2493 = vmatpush1.msra.mxu0 0.0
    %2494 = vmatprep.subr.mxu0 0.0
    %2495 = vmatpush1.msra.mxu0 0.0
    %2496 = vmatprep.subr.mxu0 0.0
    %2497 = vmatpush1.msra.mxu0 0.0
    %2498 = vmatprep.subr.mxu0 0.0
    %2499 = vmatpush1.msra.mxu0 0.0
    %2500 = vmatprep.subr.mxu0 0.0
    %2501 = vmatpush1.msra.mxu0 0.0
    %2502 = vmatprep.subr.mxu0 0.0
    %2503 = vmatpush1.msra.mxu0 0.0
    %2504 = vmatprep.subr.mxu0 0.0
    %2505 = vmatpush1.msra.mxu0 0.0
    %2506 = vmatprep.subr.mxu0 0.0
    %2507 = vmatpush1.msra.mxu0 0.0
    %2508 = vmatprep.subr.mxu0 0.0
    %2509 = vmatpush1.msra.mxu0 0.0
    %2510 = vmatprep.subr.mxu0 0.0
    %2511 = vmatpush1.msra.mxu0 0.0
    %2512 = vmatprep.subr.mxu0 0.0
    %2513 = vmatpush1.msra.mxu0 0.0
    %2514 = vmatprep.subr.mxu0 0.0
    %2515 = vmatpush1.msra.mxu0 0.0
    %2516 = vmatprep.subr.mxu0 0.0
    %2517 = vmatpush1.msra.mxu0 %v1507
    %2518 = vmatprep.subr.mxu0 0.0
    %2519 = vmatpush1.msra.mxu0 %v1506
    %2520 = vmatprep.subr.mxu0 0.0
    %2521 = vmatpush1.msra.mxu0 %v1505
    %2522 = vmatprep.subr.mxu0 0.0
    %2523 = vmatpush1.msra.mxu0 %v1504
    %2524 = vmatprep.subr.mxu0 0.0
    %2525 = vmatpush2.msra.mxu0 0.0
    %2526 = vmatprep.subr.mxu0 0.0
    %2527 = vmatpush2.msra.mxu0 0.0
    %2528 = vmatprep.subr.mxu0 0.0
    %2529 = vmatpush2.msra.mxu0 0.0
    %2530 = vmatprep.subr.mxu0 0.0
    %2531 = vmatpush2.msra.mxu0 0.0
    %2532 = vmatprep.subr.mxu0 0.0
    %2533 = vmatpush2.msra.mxu0 0.0
    %2534 = vmatprep.subr.mxu0 0.0
    %2535 = vmatpush2.msra.mxu0 0.0
    %2536 = vmatprep.subr.mxu0 0.0
    %2537 = vmatpush2.msra.mxu0 0.0
    %2538 = vmatprep.subr.mxu0 0.0
    %2539 = vmatpush2.msra.mxu0 0.0
    %2540 = vmatprep.subr.mxu0 0.0
    %2541 = vmatpush2.msra.mxu0 0.0
    %2542 = vmatprep.subr.mxu0 0.0
    %2543 = vmatpush2.msra.mxu0 0.0
    %2544 = vmatprep.subr.mxu0 0.0
    %2545 = vmatpush2.msra.mxu0 0.0
    %2546 = vmatprep.subr.mxu0 0.0
    %2547 = vmatpush2.msra.mxu0 0.0
    %2548 = vmatprep.subr.mxu0 0.0
    %2549 = vmatpush2.msra.mxu0 0.0
    %2550 = vmatprep.subr.mxu0 0.0
    %2551 = vmatpush2.msra.mxu0 0.0
    %2552 = vmatprep.subr.mxu0 0.0
    %2553 = vmatpush2.msra.mxu0 0.0
    %2554 = vmatprep.subr.mxu0 0.0
    %2555 = vmatpush2.msra.mxu0 0.0
    %2556 = vmatprep.mubr.f32.mxu0 0.0
    %2557 = vmatmul.mubr.f32.gmra.mxu0 %v2490
    %v2558 = vpop.f32.mrf.mxu0
    %v2559 = vadd.f32 0.0, %v2558
    %v2560 = vpop.f32.mrf.mxu0
    %2561 = vdwg.mxu0
    %v2562 = vadd.f32 %v1862, %v2559
    %v2563 = vxor.u32 %v2562, 2147483648
    %v2564 = vmul.f32 %v2563, 1.442695
    %v2565 = vpow.pop %v2564
    %v2566 = vadd.f32 %v2565, 1.0
    %v2567 = vrcp.pop %v2566
    %v2568 = vmul.f32 1.0, %v2567
    %v2569 = vtanh.pop %v2562
    %v2570 = vmul.f32 %v2568, %v2477
    %2572 = vrot.lane.b32.xlu0 %v2569, 64
    %v2573 = vpop.permute.xlu0 %2572
    %v2575 = vmul.f32 %v2568, %v2573
    %2577 = vrot.lane.b32.xlu0 %v2575, 32
    %v2578 = vpop.permute.xlu0 %2577
    %v2580 = vadd.f32 %v2570, %v2578
    %v2581 = vtanh.pop %v2580
    %2583 = vrot.lane.b32.xlu0 %v2581, 64
    %v2584 = vpop.permute.xlu0 %2583
    %v2586 = vmul.f32 %v2568, %v2584
    %2588 = vrot.lane.b32.xlu0 %v2586, 32
    %v2589 = vpop.permute.xlu0 %2588
    %s2591 = scalar_lea.vmem [#allocation2], 8
    %2592 = vst.msk [vmem:[%s2591] sm:$0x3] %vm2179, %v2589
    %v2593 = vsel %vm701, %v2589, 0
    %2595 = vmatprep.subr.mxu0 0.0
    %2596 = vmatpush1.msra.mxu0 0.0
    %2597 = vmatprep.subr.mxu0 0.0
    %2598 = vmatpush1.msra.mxu0 0.0
    %2599 = vmatprep.subr.mxu0 0.0
    %2600 = vmatpush1.msra.mxu0 0.0
    %2601 = vmatprep.subr.mxu0 0.0
    %2602 = vmatpush1.msra.mxu0 0.0
    %2603 = vmatprep.subr.mxu0 0.0
    %2604 = vmatpush1.msra.mxu0 0.0
    %2605 = vmatprep.subr.mxu0 0.0
    %2606 = vmatpush1.msra.mxu0 0.0
    %2607 = vmatprep.subr.mxu0 0.0
    %2608 = vmatpush1.msra.mxu0 0.0
    %2609 = vmatprep.subr.mxu0 0.0
    %2610 = vmatpush1.msra.mxu0 0.0
    %2611 = vmatprep.subr.mxu0 0.0
    %2612 = vmatpush1.msra.mxu0 0.0
    %2613 = vmatprep.subr.mxu0 0.0
    %2614 = vmatpush1.msra.mxu0 0.0
    %2615 = vmatprep.subr.mxu0 0.0
    %2616 = vmatpush1.msra.mxu0 0.0
    %2617 = vmatprep.subr.mxu0 0.0
    %2618 = vmatpush1.msra.mxu0 0.0
    %2619 = vmatprep.subr.mxu0 0.0
    %2620 = vmatpush1.msra.mxu0 %v1507
    %2621 = vmatprep.subr.mxu0 0.0
    %2622 = vmatpush1.msra.mxu0 %v1506
    %2623 = vmatprep.subr.mxu0 0.0
    %2624 = vmatpush1.msra.mxu0 %v1505
    %2625 = vmatprep.subr.mxu0 0.0
    %2626 = vmatpush1.msra.mxu0 %v1504
    %2627 = vmatprep.subr.mxu0 0.0
    %2628 = vmatpush2.msra.mxu0 0.0
    %2629 = vmatprep.subr.mxu0 0.0
    %2630 = vmatpush2.msra.mxu0 0.0
    %2631 = vmatprep.subr.mxu0 0.0
    %2632 = vmatpush2.msra.mxu0 0.0
    %2633 = vmatprep.subr.mxu0 0.0
    %2634 = vmatpush2.msra.mxu0 0.0
    %2635 = vmatprep.subr.mxu0 0.0
    %2636 = vmatpush2.msra.mxu0 0.0
    %2637 = vmatprep.subr.mxu0 0.0
    %2638 = vmatpush2.msra.mxu0 0.0
    %2639 = vmatprep.subr.mxu0 0.0
    %2640 = vmatpush2.msra.mxu0 0.0
    %2641 = vmatprep.subr.mxu0 0.0
    %2642 = vmatpush2.msra.mxu0 0.0
    %2643 = vmatprep.subr.mxu0 0.0
    %2644 = vmatpush2.msra.mxu0 0.0
    %2645 = vmatprep.subr.mxu0 0.0
    %2646 = vmatpush2.msra.mxu0 0.0
    %2647 = vmatprep.subr.mxu0 0.0
    %2648 = vmatpush2.msra.mxu0 0.0
    %2649 = vmatprep.subr.mxu0 0.0
    %2650 = vmatpush2.msra.mxu0 0.0
    %2651 = vmatprep.subr.mxu0 0.0
    %2652 = vmatpush2.msra.mxu0 0.0
    %2653 = vmatprep.subr.mxu0 0.0
    %2654 = vmatpush2.msra.mxu0 0.0
    %2655 = vmatprep.subr.mxu0 0.0
    %2656 = vmatpush2.msra.mxu0 0.0
    %2657 = vmatprep.subr.mxu0 0.0
    %2658 = vmatpush2.msra.mxu0 0.0
    %2659 = vmatprep.mubr.f32.mxu0 0.0
    %2660 = vmatmul.mubr.f32.gmra.mxu0 %v2593
    %v2661 = vpop.f32.mrf.mxu0
    %v2662 = vadd.f32 0.0, %v2661
    %v2663 = vpop.f32.mrf.mxu0
    %2664 = vdwg.mxu0
    %v2665 = vadd.f32 %v1932, %v2662
    %v2666 = vxor.u32 %v2665, 2147483648
    %v2667 = vmul.f32 %v2666, 1.442695
    %v2668 = vpow.pop %v2667
    %v2669 = vadd.f32 %v2668, 1.0
    %v2670 = vrcp.pop %v2669
    %v2671 = vmul.f32 1.0, %v2670
    %v2672 = vtanh.pop %v2665
    %v2673 = vmul.f32 %v2671, %v2580
    %2675 = vrot.lane.b32.xlu0 %v2672, 64
    %v2676 = vpop.permute.xlu0 %2675
    %v2678 = vmul.f32 %v2671, %v2676
    %2680 = vrot.lane.b32.xlu0 %v2678, 32
    %v2681 = vpop.permute.xlu0 %2680
    %v2683 = vadd.f32 %v2673, %v2681
    %v2684 = vtanh.pop %v2683
    %2686 = vrot.lane.b32.xlu0 %v2684, 64
    %v2687 = vpop.permute.xlu0 %2686
    %v2689 = vmul.f32 %v2671, %v2687
    %2691 = vrot.lane.b32.xlu0 %v2689, 32
    %v2692 = vpop.permute.xlu0 %2691
    %s2694 = scalar_lea.vmem [#allocation2], 10
    %2695 = vst.msk [vmem:[%s2694] sm:$0x3] %vm2179, %v2692
    %v2696 = vsel %vm701, %v2692, 0
    %2698 = vmatprep.subr.mxu0 0.0
    %2699 = vmatpush1.msra.mxu0 0.0
    %2700 = vmatprep.subr.mxu0 0.0
    %2701 = vmatpush1.msra.mxu0 0.0
    %2702 = vmatprep.subr.mxu0 0.0
    %2703 = vmatpush1.msra.mxu0 0.0
    %2704 = vmatprep.subr.mxu0 0.0
    %2705 = vmatpush1.msra.mxu0 0.0
    %2706 = vmatprep.subr.mxu0 0.0
    %2707 = vmatpush1.msra.mxu0 0.0
    %2708 = vmatprep.subr.mxu0 0.0
    %2709 = vmatpush1.msra.mxu0 0.0
    %2710 = vmatprep.subr.mxu0 0.0
    %2711 = vmatpush1.msra.mxu0 0.0
    %2712 = vmatprep.subr.mxu0 0.0
    %2713 = vmatpush1.msra.mxu0 0.0
    %2714 = vmatprep.subr.mxu0 0.0
    %2715 = vmatpush1.msra.mxu0 0.0
    %2716 = vmatprep.subr.mxu0 0.0
    %2717 = vmatpush1.msra.mxu0 0.0
    %2718 = vmatprep.subr.mxu0 0.0
    %2719 = vmatpush1.msra.mxu0 0.0
    %2720 = vmatprep.subr.mxu0 0.0
    %2721 = vmatpush1.msra.mxu0 0.0
    %2722 = vmatprep.subr.mxu0 0.0
    %2723 = vmatpush1.msra.mxu0 %v1507
    %2724 = vmatprep.subr.mxu0 0.0
    %2725 = vmatpush1.msra.mxu0 %v1506
    %2726 = vmatprep.subr.mxu0 0.0
    %2727 = vmatpush1.msra.mxu0 %v1505
    %2728 = vmatprep.subr.mxu0 0.0
    %2729 = vmatpush1.msra.mxu0 %v1504
    %2730 = vmatprep.subr.mxu0 0.0
    %2731 = vmatpush2.msra.mxu0 0.0
    %2732 = vmatprep.subr.mxu0 0.0
    %2733 = vmatpush2.msra.mxu0 0.0
    %2734 = vmatprep.subr.mxu0 0.0
    %2735 = vmatpush2.msra.mxu0 0.0
    %2736 = vmatprep.subr.mxu0 0.0
    %2737 = vmatpush2.msra.mxu0 0.0
    %2738 = vmatprep.subr.mxu0 0.0
    %2739 = vmatpush2.msra.mxu0 0.0
    %2740 = vmatprep.subr.mxu0 0.0
    %2741 = vmatpush2.msra.mxu0 0.0
    %2742 = vmatprep.subr.mxu0 0.0
    %2743 = vmatpush2.msra.mxu0 0.0
    %2744 = vmatprep.subr.mxu0 0.0
    %2745 = vmatpush2.msra.mxu0 0.0
    %2746 = vmatprep.subr.mxu0 0.0
    %2747 = vmatpush2.msra.mxu0 0.0
    %2748 = vmatprep.subr.mxu0 0.0
    %2749 = vmatpush2.msra.mxu0 0.0
    %2750 = vmatprep.subr.mxu0 0.0
    %2751 = vmatpush2.msra.mxu0 0.0
    %2752 = vmatprep.subr.mxu0 0.0
    %2753 = vmatpush2.msra.mxu0 0.0
    %2754 = vmatprep.subr.mxu0 0.0
    %2755 = vmatpush2.msra.mxu0 0.0
    %2756 = vmatprep.subr.mxu0 0.0
    %2757 = vmatpush2.msra.mxu0 0.0
    %2758 = vmatprep.subr.mxu0 0.0
    %2759 = vmatpush2.msra.mxu0 0.0
    %2760 = vmatprep.subr.mxu0 0.0
    %2761 = vmatpush2.msra.mxu0 0.0
    %2762 = vmatprep.mubr.f32.mxu0 0.0
    %2763 = vmatmul.mubr.f32.gmra.mxu0 %v2696
    %v2764 = vpop.f32.mrf.mxu0
    %v2765 = vadd.f32 0.0, %v2764
    %v2766 = vpop.f32.mrf.mxu0
    %2767 = vdwg.mxu0
    %v2768 = vadd.f32 %v2002, %v2765
    %v2769 = vxor.u32 %v2768, 2147483648
    %v2770 = vmul.f32 %v2769, 1.442695
    %v2771 = vpow.pop %v2770
    %v2772 = vadd.f32 %v2771, 1.0
    %v2773 = vrcp.pop %v2772
    %v2774 = vmul.f32 1.0, %v2773
    %v2775 = vtanh.pop %v2768
    %v2776 = vmul.f32 %v2774, %v2683
    %2778 = vrot.lane.b32.xlu0 %v2775, 64
    %v2779 = vpop.permute.xlu0 %2778
    %v2781 = vmul.f32 %v2774, %v2779
    %2783 = vrot.lane.b32.xlu0 %v2781, 32
    %v2784 = vpop.permute.xlu0 %2783
    %v2786 = vadd.f32 %v2776, %v2784
    %v2787 = vtanh.pop %v2786
    %2789 = vrot.lane.b32.xlu0 %v2787, 64
    %v2790 = vpop.permute.xlu0 %2789
    %v2792 = vmul.f32 %v2774, %v2790
    %2794 = vrot.lane.b32.xlu0 %v2792, 32
    %v2795 = vpop.permute.xlu0 %2794
    %s2797 = scalar_lea.vmem [#allocation2], 12
    %2798 = vst.msk [vmem:[%s2797] sm:$0x3] %vm2179, %v2795
    %v2799 = vsel %vm701, %v2795, 0
    %2801 = vmatprep.subr.mxu0 0.0
    %2802 = vmatpush1.msra.mxu0 0.0
    %2803 = vmatprep.subr.mxu0 0.0
    %2804 = vmatpush1.msra.mxu0 0.0
    %2805 = vmatprep.subr.mxu0 0.0
    %2806 = vmatpush1.msra.mxu0 0.0
    %2807 = vmatprep.subr.mxu0 0.0
    %2808 = vmatpush1.msra.mxu0 0.0
    %2809 = vmatprep.subr.mxu0 0.0
    %2810 = vmatpush1.msra.mxu0 0.0
    %2811 = vmatprep.subr.mxu0 0.0
    %2812 = vmatpush1.msra.mxu0 0.0
    %2813 = vmatprep.subr.mxu0 0.0
    %2814 = vmatpush1.msra.mxu0 0.0
    %2815 = vmatprep.subr.mxu0 0.0
    %2816 = vmatpush1.msra.mxu0 0.0
    %2817 = vmatprep.subr.mxu0 0.0
    %2818 = vmatpush1.msra.mxu0 0.0
    %2819 = vmatprep.subr.mxu0 0.0
    %2820 = vmatpush1.msra.mxu0 0.0
    %2821 = vmatprep.subr.mxu0 0.0
    %2822 = vmatpush1.msra.mxu0 0.0
    %2823 = vmatprep.subr.mxu0 0.0
    %2824 = vmatpush1.msra.mxu0 0.0
    %2825 = vmatprep.subr.mxu0 0.0
    %2826 = vmatpush1.msra.mxu0 %v1507
    %2827 = vmatprep.subr.mxu0 0.0
    %2828 = vmatpush1.msra.mxu0 %v1506
    %2829 = vmatprep.subr.mxu0 0.0
    %2830 = vmatpush1.msra.mxu0 %v1505
    %2831 = vmatprep.subr.mxu0 0.0
    %2832 = vmatpush1.msra.mxu0 %v1504
    %2833 = vmatprep.subr.mxu0 0.0
    %2834 = vmatpush2.msra.mxu0 0.0
    %2835 = vmatprep.subr.mxu0 0.0
    %2836 = vmatpush2.msra.mxu0 0.0
    %2837 = vmatprep.subr.mxu0 0.0
    %2838 = vmatpush2.msra.mxu0 0.0
    %2839 = vmatprep.subr.mxu0 0.0
    %2840 = vmatpush2.msra.mxu0 0.0
    %2841 = vmatprep.subr.mxu0 0.0
    %2842 = vmatpush2.msra.mxu0 0.0
    %2843 = vmatprep.subr.mxu0 0.0
    %2844 = vmatpush2.msra.mxu0 0.0
    %2845 = vmatprep.subr.mxu0 0.0
    %2846 = vmatpush2.msra.mxu0 0.0
    %2847 = vmatprep.subr.mxu0 0.0
    %2848 = vmatpush2.msra.mxu0 0.0
    %2849 = vmatprep.subr.mxu0 0.0
    %2850 = vmatpush2.msra.mxu0 0.0
    %2851 = vmatprep.subr.mxu0 0.0
    %2852 = vmatpush2.msra.mxu0 0.0
    %2853 = vmatprep.subr.mxu0 0.0
    %2854 = vmatpush2.msra.mxu0 0.0
    %2855 = vmatprep.subr.mxu0 0.0
    %2856 = vmatpush2.msra.mxu0 0.0
    %2857 = vmatprep.subr.mxu0 0.0
    %2858 = vmatpush2.msra.mxu0 0.0
    %2859 = vmatprep.subr.mxu0 0.0
    %2860 = vmatpush2.msra.mxu0 0.0
    %2861 = vmatprep.subr.mxu0 0.0
    %2862 = vmatpush2.msra.mxu0 0.0
    %2863 = vmatprep.subr.mxu0 0.0
    %2864 = vmatpush2.msra.mxu0 0.0
    %2865 = vmatprep.mubr.f32.mxu0 0.0
    %2866 = vmatmul.mubr.f32.gmra.mxu0 %v2799
    %v2867 = vpop.f32.mrf.mxu0
    %v2868 = vadd.f32 0.0, %v2867
    %v2869 = vpop.f32.mrf.mxu0
    %2870 = vdwg.mxu0
    %v2871 = vadd.f32 %v2077, %v2868
    %v2872 = vxor.u32 %v2871, 2147483648
    %v2873 = vmul.f32 %v2872, 1.442695
    %v2874 = vpow.pop %v2873
    %v2875 = vadd.f32 %v2874, 1.0
    %v2876 = vrcp.pop %v2875
    %v2877 = vmul.f32 1.0, %v2876
    %v2878 = vtanh.pop %v2871
    %v2879 = vmul.f32 %v2877, %v2786
    %2881 = vrot.lane.b32.xlu0 %v2878, 64
    %v2882 = vpop.permute.xlu0 %2881
    %v2884 = vmul.f32 %v2877, %v2882
    %2886 = vrot.lane.b32.xlu0 %v2884, 32
    %v2887 = vpop.permute.xlu0 %2886
    %v2889 = vadd.f32 %v2879, %v2887
    %v2890 = vtanh.pop %v2889
    %2892 = vrot.lane.b32.xlu0 %v2890, 64
    %v2893 = vpop.permute.xlu0 %2892
    %v2895 = vmul.f32 %v2877, %v2893
    %2897 = vrot.lane.b32.xlu0 %v2895, 32
    %v2898 = vpop.permute.xlu0 %2897
    %s2900 = scalar_lea.vmem [#allocation2], 14
    %2901 = vst.msk [vmem:[%s2900] sm:$0x3] %vm2179, %v2898
    %v2902 = vld [vmem:[#allocation2] sm:$0x3]
    %v2903 = vld [vmem:[#allocation2 + $0x2] sm:$0x3]
    %v2904 = vld [vmem:[#allocation2 + $0x4] sm:$0x3]
    %v2905 = vld [vmem:[#allocation2 + $0x6] sm:$0x3]
    %v2906 = vld [vmem:[#allocation2 + $0x8] sm:$0x3]
    %v2907 = vld [vmem:[#allocation2 + $0xa] sm:$0x3]
    %v2908 = vld [vmem:[#allocation2 + $0xc] sm:$0x3]
    %v2909 = vld [vmem:[#allocation2 + $0xe] sm:$0x3]
    %v2910 = vsel %vm2179, %v2902, -inf
    %v2911 = vrot.slane %v2910, 4
    %v2912 = vmax.f32 %v2910, %v2911
    %v2913 = vrot.slane %v2912, 2
    %v2914 = vmax.f32 %v2912, %v2913
    %v2915 = vrot.slane %v2914, 1
    %v2916 = vmax.f32 %v2914, %v2915
    %v2917 = vsel %vm2179, %v2903, -inf
    %v2918 = vrot.slane %v2917, 4
    %v2919 = vmax.f32 %v2917, %v2918
    %v2920 = vrot.slane %v2919, 2
    %v2921 = vmax.f32 %v2919, %v2920
    %v2922 = vrot.slane %v2921, 1
    %v2923 = vmax.f32 %v2921, %v2922
    %v2924 = vsel %vm2179, %v2904, -inf
    %v2925 = vrot.slane %v2924, 4
    %v2926 = vmax.f32 %v2924, %v2925
    %v2927 = vrot.slane %v2926, 2
    %v2928 = vmax.f32 %v2926, %v2927
    %v2929 = vrot.slane %v2928, 1
    %v2930 = vmax.f32 %v2928, %v2929
    %v2931 = vsel %vm2179, %v2905, -inf
    %v2932 = vrot.slane %v2931, 4
    %v2933 = vmax.f32 %v2931, %v2932
    %v2934 = vrot.slane %v2933, 2
    %v2935 = vmax.f32 %v2933, %v2934
    %v2936 = vrot.slane %v2935, 1
    %v2937 = vmax.f32 %v2935, %v2936
    %v2938 = vsel %vm2179, %v2906, -inf
    %v2939 = vrot.slane %v2938, 4
    %v2940 = vmax.f32 %v2938, %v2939
    %v2941 = vrot.slane %v2940, 2
    %v2942 = vmax.f32 %v2940, %v2941
    %v2943 = vrot.slane %v2942, 1
    %v2944 = vmax.f32 %v2942, %v2943
    %v2945 = vsel %vm2179, %v2907, -inf
    %v2946 = vrot.slane %v2945, 4
    %v2947 = vmax.f32 %v2945, %v2946
    %v2948 = vrot.slane %v2947, 2
    %v2949 = vmax.f32 %v2947, %v2948
    %v2950 = vrot.slane %v2949, 1
    %v2951 = vmax.f32 %v2949, %v2950
    %v2952 = vsel %vm2179, %v2908, -inf
    %v2953 = vrot.slane %v2952, 4
    %v2954 = vmax.f32 %v2952, %v2953
    %v2955 = vrot.slane %v2954, 2
    %v2956 = vmax.f32 %v2954, %v2955
    %v2957 = vrot.slane %v2956, 1
    %v2958 = vmax.f32 %v2956, %v2957
    %v2959 = vsel %vm2179, %v2909, -inf
    %v2960 = vrot.slane %v2959, 4
    %v2961 = vmax.f32 %v2959, %v2960
    %v2962 = vrot.slane %v2961, 2
    %v2963 = vmax.f32 %v2961, %v2962
    %v2964 = vrot.slane %v2963, 1
    %v2965 = vmax.f32 %v2963, %v2964
    %v2966 = vld [vmem:[%s7] sm:$0xff]
    %v2967 = vld [vmem:[%s7 + $0x8] sm:$0xff]
    %v2968 = vld [vmem:[%s7 + $0x10] sm:$0xff]
    %v2969 = vld [vmem:[%s7 + $0x18] sm:$0xff]
    %v2970 = vld [vmem:[#allocation8] sm:$0x1]
    %v2972 = vlaneseq
    %v2973 = vshrl.u32 %v2972, 7
    %v2974 = vsub.s32 0, %v2973
    %v2975 = vrot.slane %v2970, %v2974
    %vm2985 = vcmask 1041409
    %v2986 = vsel %vm2985, %v2923, %v2916
    %vm2987 = vcmask 1042434
    %v2988 = vsel %vm2987, %v2930, %v2986
    %vm2989 = vcmask 1043459
    %v2990 = vsel %vm2989, %v2937, %v2988
    %vm2991 = vcmask 1044484
    %v2992 = vsel %vm2991, %v2944, %v2990
    %vm2993 = vcmask 1045509
    %v2994 = vsel %vm2993, %v2951, %v2992
    %vm2995 = vcmask 1046534
    %v2996 = vsel %vm2995, %v2958, %v2994
    %vm2997 = vcmask 1047559
    %v2998 = vsel %vm2997, %v2965, %v2996
    %v2999 = vsel %vm701, %v2998, 0
    %3001 = vmatprep.subr.mxu0 0.0
    %3002 = vmatpush1.msra.mxu0 0.0
    %3003 = vmatprep.subr.mxu0 0.0
    %3004 = vmatpush1.msra.mxu0 0.0
    %3005 = vmatprep.subr.mxu0 0.0
    %3006 = vmatpush1.msra.mxu0 0.0
    %3007 = vmatprep.subr.mxu0 0.0
    %3008 = vmatpush1.msra.mxu0 0.0
    %3009 = vmatprep.subr.mxu0 0.0
    %3010 = vmatpush1.msra.mxu0 0.0
    %3011 = vmatprep.subr.mxu0 0.0
    %3012 = vmatpush1.msra.mxu0 0.0
    %3013 = vmatprep.subr.mxu0 0.0
    %3014 = vmatpush1.msra.mxu0 0.0
    %3015 = vmatprep.subr.mxu0 0.0
    %3016 = vmatpush1.msra.mxu0 0.0
    %3017 = vmatprep.subr.mxu0 0.0
    %3018 = vmatpush1.msra.mxu0 0.0
    %3019 = vmatprep.subr.mxu0 0.0
    %3020 = vmatpush1.msra.mxu0 0.0
    %3021 = vmatprep.subr.mxu0 0.0
    %3022 = vmatpush1.msra.mxu0 0.0
    %3023 = vmatprep.subr.mxu0 0.0
    %3024 = vmatpush1.msra.mxu0 0.0
    %3025 = vmatprep.subr.mxu0 0.0
    %3026 = vmatpush1.msra.mxu0 %v2969
    %3027 = vmatprep.subr.mxu0 0.0
    %3028 = vmatpush1.msra.mxu0 %v2968
    %3029 = vmatprep.subr.mxu0 0.0
    %3030 = vmatpush1.msra.mxu0 %v2967
    %3031 = vmatprep.subr.mxu0 0.0
    %3032 = vmatpush1.msra.mxu0 %v2966
    %3033 = vmatprep.subr.mxu0 0.0
    %3034 = vmatpush2.msra.mxu0 0.0
    %3035 = vmatprep.subr.mxu0 0.0
    %3036 = vmatpush2.msra.mxu0 0.0
    %3037 = vmatprep.subr.mxu0 0.0
    %3038 = vmatpush2.msra.mxu0 0.0
    %3039 = vmatprep.subr.mxu0 0.0
    %3040 = vmatpush2.msra.mxu0 0.0
    %3041 = vmatprep.subr.mxu0 0.0
    %3042 = vmatpush2.msra.mxu0 0.0
    %3043 = vmatprep.subr.mxu0 0.0
    %3044 = vmatpush2.msra.mxu0 0.0
    %3045 = vmatprep.subr.mxu0 0.0
    %3046 = vmatpush2.msra.mxu0 0.0
    %3047 = vmatprep.subr.mxu0 0.0
    %3048 = vmatpush2.msra.mxu0 0.0
    %3049 = vmatprep.subr.mxu0 0.0
    %3050 = vmatpush2.msra.mxu0 0.0
    %3051 = vmatprep.subr.mxu0 0.0
    %3052 = vmatpush2.msra.mxu0 0.0
    %3053 = vmatprep.subr.mxu0 0.0
    %3054 = vmatpush2.msra.mxu0 0.0
    %3055 = vmatprep.subr.mxu0 0.0
    %3056 = vmatpush2.msra.mxu0 0.0
    %3057 = vmatprep.subr.mxu0 0.0
    %3058 = vmatpush2.msra.mxu0 0.0
    %3059 = vmatprep.subr.mxu0 0.0
    %3060 = vmatpush2.msra.mxu0 0.0
    %3061 = vmatprep.subr.mxu0 0.0
    %3062 = vmatpush2.msra.mxu0 0.0
    %3063 = vmatprep.subr.mxu0 0.0
    %3064 = vmatpush2.msra.mxu0 0.0
    %3065 = vmatprep.mubr.f32.mxu0 0.0
    %3066 = vmatmul.mubr.f32.gmra.mxu0 %v2999
    %v3067 = vpop.f32.mrf.mxu0
    %v3068 = vadd.f32 %v2975, %v3067
    %v3069 = vpop.f32.mrf.mxu0
    %3070 = vdwg.mxu0
    %v3071 = vmax.f32 %v3068, 0.0
    %v3072 = vld [vmem:[%s9] sm:$0xff]
    %v3073 = vld [vmem:[%s9 + $0x8] sm:$0xff]
    %v3074 = vld [vmem:[%s9 + $0x10] sm:$0xff]
    %v3075 = vld [vmem:[%s9 + $0x18] sm:$0xff]
    %v3076 = vld [vmem:[%s10] sm:$0x1]
    %v3078 = vlaneseq
    %v3079 = vshrl.u32 %v3078, 7
    %v3080 = vsub.s32 0, %v3079
    %v3081 = vrot.slane %v3076, %v3080
    %v3084 = vsel %vm701, %v3071, 0
    %3086 = vmatprep.subr.mxu0 0.0
    %3087 = vmatpush1.msra.mxu0 0.0
    %3088 = vmatprep.subr.mxu0 0.0
    %3089 = vmatpush1.msra.mxu0 0.0
    %3090 = vmatprep.subr.mxu0 0.0
    %3091 = vmatpush1.msra.mxu0 0.0
    %3092 = vmatprep.subr.mxu0 0.0
    %3093 = vmatpush1.msra.mxu0 0.0
    %3094 = vmatprep.subr.mxu0 0.0
    %3095 = vmatpush1.msra.mxu0 0.0
    %3096 = vmatprep.subr.mxu0 0.0
    %3097 = vmatpush1.msra.mxu0 0.0
    %3098 = vmatprep.subr.mxu0 0.0
    %3099 = vmatpush1.msra.mxu0 0.0
    %3100 = vmatprep.subr.mxu0 0.0
    %3101 = vmatpush1.msra.mxu0 0.0
    %3102 = vmatprep.subr.mxu0 0.0
    %3103 = vmatpush1.msra.mxu0 0.0
    %3104 = vmatprep.subr.mxu0 0.0
    %3105 = vmatpush1.msra.mxu0 0.0
    %3106 = vmatprep.subr.mxu0 0.0
    %3107 = vmatpush1.msra.mxu0 0.0
    %3108 = vmatprep.subr.mxu0 0.0
    %3109 = vmatpush1.msra.mxu0 0.0
    %3110 = vmatprep.subr.mxu0 0.0
    %3111 = vmatpush1.msra.mxu0 %v3075
    %3112 = vmatprep.subr.mxu0 0.0
    %3113 = vmatpush1.msra.mxu0 %v3074
    %3114 = vmatprep.subr.mxu0 0.0
    %3115 = vmatpush1.msra.mxu0 %v3073
    %3116 = vmatprep.subr.mxu0 0.0
    %3117 = vmatpush1.msra.mxu0 %v3072
    %3118 = vmatprep.subr.mxu0 0.0
    %3119 = vmatpush2.msra.mxu0 0.0
    %3120 = vmatprep.subr.mxu0 0.0
    %3121 = vmatpush2.msra.mxu0 0.0
    %3122 = vmatprep.subr.mxu0 0.0
    %3123 = vmatpush2.msra.mxu0 0.0
    %3124 = vmatprep.subr.mxu0 0.0
    %3125 = vmatpush2.msra.mxu0 0.0
    %3126 = vmatprep.subr.mxu0 0.0
    %3127 = vmatpush2.msra.mxu0 0.0
    %3128 = vmatprep.subr.mxu0 0.0
    %3129 = vmatpush2.msra.mxu0 0.0
    %3130 = vmatprep.subr.mxu0 0.0
    %3131 = vmatpush2.msra.mxu0 0.0
    %3132 = vmatprep.subr.mxu0 0.0
    %3133 = vmatpush2.msra.mxu0 0.0
    %3134 = vmatprep.subr.mxu0 0.0
    %3135 = vmatpush2.msra.mxu0 0.0
    %3136 = vmatprep.subr.mxu0 0.0
    %3137 = vmatpush2.msra.mxu0 0.0
    %3138 = vmatprep.subr.mxu0 0.0
    %3139 = vmatpush2.msra.mxu0 0.0
    %3140 = vmatprep.subr.mxu0 0.0
    %3141 = vmatpush2.msra.mxu0 0.0
    %3142 = vmatprep.subr.mxu0 0.0
    %3143 = vmatpush2.msra.mxu0 0.0
    %3144 = vmatprep.subr.mxu0 0.0
    %3145 = vmatpush2.msra.mxu0 0.0
    %3146 = vmatprep.subr.mxu0 0.0
    %3147 = vmatpush2.msra.mxu0 0.0
    %3148 = vmatprep.subr.mxu0 0.0
    %3149 = vmatpush2.msra.mxu0 0.0
    %3150 = vmatprep.mubr.f32.mxu0 0.0
    %3151 = vmatmul.mubr.f32.gmra.mxu0 %v3084
    %v3152 = vpop.f32.mrf.mxu0
    %v3153 = vadd.f32 %v3081, %v3152
    %v3154 = vpop.f32.mrf.mxu0
    %3155 = vdwg.mxu0
    %3156 = vst [vmem:[%s11] sm:$0xff] %v3153
    // Predicated region
    $region62: #{rnn_model_forward.1} parent=1 // pred_check
      _
    $region63: #{rnn_model_forward.1} parent=1 // pred_check_branch
      %3158 = sbr.rel (0) target = $region65
    $region64: #{rnn_model_forward.1} parent=1 // pred_region
      _
    $region65: #{rnn_model_forward.1} parent=1 // pred_fallthru
      _
    // Predicated region
    $region66: #{rnn_model_forward.1} parent=1 // pred_check
      _
    $region67: #{rnn_model_forward.1} parent=1 // pred_check_branch
      %3160 = sbr.rel (0) target = $region69
    $region68: #{rnn_model_forward.1} parent=1 // pred_region
      _
    $region69: #{rnn_model_forward.1} parent=1 // pred_fallthru
      _
    %3161 = vsyncpa [#allocation4], 1
    %3162 = vsyncpa [#allocation6], 1
    %3163 = vsyncpa [#allocation9], 1

</llo_original>
